<compile_context>
chip_gen: v5e
topology: v5e:2x2
jax: 0.10.0
libtpu: 0.0.40
codegen_flags: <defaults>
</compile_context>

<pallas_src>
import functools

import jax
import jax.numpy as jnp
from jax.experimental import pallas as pl
from jax.experimental.pallas import tpu as pltpu


def _round_up(x, m):
    return (x + m - 1) // m * m


def _vmem_budget_bytes():
    """Usable VMEM budget (75% of capacity); conservative fallback fits every gen."""
    try:
        cap = int(pltpu.get_tpu_info().vmem_capacity_bytes)
    except Exception:
        cap = 64 * 1024 * 1024          # v7x per-TensorCore VMEM (smallest of the gens)
    return max(int(cap * 0.75), 24 * 1024 * 1024)


def _choose_time_chunk(S, Bb, D, Hp, x_bytes, y_bytes, budget, cap=128):
    """Largest time chunk whose VMEM working set fits the budget, minimizing
    (padded work + per-chunk overhead)."""
    def need(tc):
        return (D * 4 * Hp * 2                 # W_ih^T (bf16, single copy)
                + Hp * 4 * Hp * 2              # W_hh^T (bf16, single copy)
                + 2 * 4 * Hp * 4               # bias (double-buffered, tiny)
                + 6 * Bb * Hp * 4              # hN/cN out blocks + h/c scratch
                + 2 * tc * Bb * D * x_bytes    # x double buffer
                + 2 * tc * Bb * Hp * y_bytes   # y double buffer
                + tc * Bb * 4 * Hp * 4)        # gx scratch (f32)

    candidates = [tc for tc in (1, 2, 4, 8, 16, 32, 64, 128)
                  if tc <= cap and need(tc) <= budget]
    if not candidates:
        return 1
    # cost ~ padded timesteps + number of grid steps (per-step overhead ~ 1 timestep)
    return min(candidates,
               key=lambda tc: (_round_up(S, tc) + _round_up(S, tc) // tc, -tc))


def _lstm_layer_kernel(x_ref, wih_hbm, whh_hbm, bias_ref,          # inputs
                       y_ref, hN_ref, cN_ref,                       # outputs
                       wih_vmem, whh_vmem, gx_sc, h_sc, c_sc, dma_sem,  # scratch
                       *, seq_len, time_chunk, hidden_p, unroll, mask_tail):
    """One grid step = one (batch block, time chunk) tile of the LSTM.

    x_ref   : (TC, Bb, D)      input slice for this chunk (bf16 or f32)
    wih_hbm : (D, 4*Hp) bf16   W_ih^T in HBM (copied once into wih_vmem)
    whh_hbm : (Hp, 4*Hp) bf16  W_hh^T in HBM (copied once into whh_vmem)
    bias_ref: (1, 4*Hp) f32    b_ih + b_hh (gate-blocked, lane-padded)
    y_ref   : (TC, Bb, Hp)     hidden outputs for this chunk
    hN/cN   : (Bb, Hp) f32     final state for this batch block (written on last chunk)
    gx_sc   : (TC, Bb, 4*Hp) f32  fused input projection for this chunk
    h_sc/c_sc: (Bb, Hp) f32    state carried across time chunks
    """
    c_idx = pl.program_id(1)            # time-chunk index ("arbitrary" axis)
    n_chunks = pl.num_programs(1)
    Hp = hidden_p
    TC = time_chunk
    Bb = h_sc.shape[0]

    @pl.when(c_idx == 0)
    def _():
        # Single-copy weight residency: DMA W_ih^T / W_hh^T once per batch block.
        cp_ih = pltpu.make_async_copy(wih_hbm, wih_vmem, dma_sem.at[0])
        cp_hh = pltpu.make_async_copy(whh_hbm, whh_vmem, dma_sem.at[1])
        cp_ih.start()
        cp_hh.start()
        cp_ih.wait()
        cp_hh.wait()
        h_sc[...] = jnp.zeros_like(h_sc)
        c_sc[...] = jnp.zeros_like(c_sc)

    # ---- Fused input projection for the whole chunk: one large MXU matmul ----------
    D = x_ref.shape[-1]
    x2 = x_ref[...].reshape(TC * Bb, D).astype(jnp.bfloat16)
    gx = jnp.dot(x2, wih_vmem[...], preferred_element_type=jnp.float32)
    gx = gx + bias_ref[...]                            # (1, 4Hp) broadcast over rows
    gx_sc[...] = gx.reshape(TC, Bb, 4 * Hp)

    whh = whh_vmem[...]                                # hoisted bf16 recurrent weight

    def step(t, carry):
        h_prev = h_sc[...]
        c_prev = c_sc[...]
        # Only the (small-M) recurrent matmul stays inside the serial loop.
        gates = gx_sc[t] + jnp.dot(h_prev.astype(jnp.bfloat16), whh,
                                   preferred_element_type=jnp.float32)
        i = jax.nn.sigmoid(gates[:, 0 * Hp:1 * Hp])
        f = jax.nn.sigmoid(gates[:, 1 * Hp:2 * Hp])
        g = jnp.tanh(gates[:, 2 * Hp:3 * Hp])
        o = jax.nn.sigmoid(gates[:, 3 * Hp:4 * Hp])
        c_new = f * c_prev + i * g
        h_new = o * jnp.tanh(c_new)
        if mask_tail:
            # Padded timesteps must hold state (zero gx does NOT preserve it).
            valid = (c_idx * TC + t) < seq_len
            h_new = jnp.where(valid, h_new, h_prev)
            c_new = jnp.where(valid, c_new, c_prev)
        h_sc[...] = h_new
        c_sc[...] = c_new
        y_ref[t] = h_new.astype(y_ref.dtype)
        return carry

    jax.lax.fori_loop(0, TC, step, 0, unroll=unroll)

    @pl.when(c_idx == n_chunks - 1)
    def _():
        hN_ref[...] = h_sc[...].astype(hN_ref.dtype)
        cN_ref[...] = c_sc[...].astype(cN_ref.dtype)


def lstm_layer_pallas(x_tm, layer_prep, *, hidden_p, n_batch_blocks, batch_block,
                      out_dtype, vmem_budget, max_time_chunk=128):
    """One LSTM layer on (already batch-padded) time-major input.

    x_tm: (S, Bp_tot, D); returns (y (S, Bp_tot, Hp) out_dtype, h_n, c_n (Bp_tot, Hp) f32).
    """
    S, Bp_tot, D = x_tm.shape
    Hp = hidden_p
    Bb = batch_block
    NB = n_batch_blocks
    assert Bp_tot == NB * Bb

    TC = _choose_time_chunk(S, Bb, D, Hp,
                            x_bytes=jnp.dtype(x_tm.dtype).itemsize,
                            y_bytes=jnp.dtype(out_dtype).itemsize,
                            budget=vmem_budget, cap=max_time_chunk)
    S_pad = _round_up(S, TC)
    mask_tail = S_pad != S
    if mask_tail:
        x_tm = jnp.pad(x_tm, ((0, S_pad - S), (0, 0), (0, 0)))
    NC = S_pad // TC

    kernel = functools.partial(
        _lstm_layer_kernel,
        seq_len=S, time_chunk=TC, hidden_p=Hp,
        unroll=min(8, TC), mask_tail=mask_tail)

    grid_spec = pltpu.PrefetchScalarGridSpec(
        num_scalar_prefetch=0,
        grid=(NB, NC),                                     # (batch blocks, time chunks)
        in_specs=[
            pl.BlockSpec((TC, Bb, D), lambda b, c: (c, b, 0)),
            pl.BlockSpec(memory_space=pl.ANY),             # W_ih^T stays in HBM
            pl.BlockSpec(memory_space=pl.ANY),             # W_hh^T stays in HBM
            pl.BlockSpec((1, 4 * Hp), lambda b, c: (0, 0)),
        ],
        out_specs=[
            pl.BlockSpec((TC, Bb, Hp), lambda b, c: (c, b, 0)),
            pl.BlockSpec((Bb, Hp), lambda b, c: (b, 0)),
            pl.BlockSpec((Bb, Hp), lambda b, c: (b, 0)),
        ],
        scratch_shapes=[
            pltpu.VMEM((D, 4 * Hp), jnp.bfloat16),         # W_ih^T (single copy)
            pltpu.VMEM((Hp, 4 * Hp), jnp.bfloat16),        # W_hh^T (single copy)
            pltpu.VMEM((TC, Bb, 4 * Hp), jnp.float32),     # fused gx for this chunk
            pltpu.VMEM((Bb, Hp), jnp.float32),             # h state
            pltpu.VMEM((Bb, Hp), jnp.float32),             # c state
            pltpu.SemaphoreType.DMA((2,)),
        ],
    )

    y_p, h_n, c_n = pl.pallas_call(
        kernel,
        out_shape=(
            jax.ShapeDtypeStruct((S_pad, Bp_tot, Hp), out_dtype),
            jax.ShapeDtypeStruct((Bp_tot, Hp), jnp.float32),
            jax.ShapeDtypeStruct((Bp_tot, Hp), jnp.float32),
        ),
        grid_spec=grid_spec,
        compiler_params=pltpu.CompilerParams(
            dimension_semantics=("parallel", "arbitrary"),  # time is a true recurrence
            vmem_limit_bytes=int(vmem_budget)),
    )(x_tm, layer_prep["w_ih_t"], layer_prep["w_hh_t"], layer_prep["bias"])

    if mask_tail:
        y_p = y_p[:S]
    return y_p, h_n, c_n


def prepare_encoder_params(params, num_layers, hidden_size, embedding_dim):
    """One-time weight prep (done OUTSIDE the forward path): gate-blocked lane padding,
    transpose to (D_in, 4*Hp), bf16 cast, bias fold."""
    H = hidden_size
    Hp = _round_up(H, 128)
    layers = []
    for layer in range(num_layers):
        d_in = embedding_dim if layer == 0 else hidden_size
        d_in_p = d_in if layer == 0 else Hp                 # layers >= 1 consume padded h
        w_ih = params[f"w_ih_l{layer}"]                     # (4H, d_in)
        w_hh = params[f"w_hh_l{layer}"]                     # (4H, H)
        bias = params[f"b_ih_l{layer}"] + params[f"b_hh_l{layer}"]
        w_ih_t = jnp.transpose(
            jnp.pad(w_ih.reshape(4, H, d_in),
                    ((0, 0), (0, Hp - H), (0, d_in_p - d_in))).reshape(4 * Hp, d_in_p)
        ).astype(jnp.bfloat16)                              # (d_in_p, 4*Hp)
        w_hh_t = jnp.transpose(
            jnp.pad(w_hh.reshape(4, H, H),
                    ((0, 0), (0, Hp - H), (0, Hp - H))).reshape(4 * Hp, Hp)
        ).astype(jnp.bfloat16)                              # (Hp, 4*Hp)
        bias_p = jnp.pad(bias.reshape(4, H), ((0, 0), (0, Hp - H))).reshape(1, 4 * Hp)
        layers.append({"w_ih_t": w_ih_t, "w_hh_t": w_hh_t, "bias": bias_p})
    return {"embedding": params["embedding"], "layers": layers}


@functools.partial(jax.jit, static_argnames=("hidden_size",))
def encoder_lstm_forward(token_ids, prep, *, hidden_size):
    """Matches EncoderLSTM.forward: returns (output, (h_n, c_n)).

    token_ids: (batch, seq) int32 -> output (batch, seq, hidden), states (L, batch, hidden).
    """
    embedded = jnp.take(prep["embedding"], token_ids, axis=0)   # (B, S, E) glue gather
    B, S, _ = embedded.shape
    H = hidden_size
    Hp = _round_up(H, 128)

    # Batch blocking: 2 blocks (one per v7x TensorCore) once batch is large enough.
    NB = 2 if B >= 16 else 1
    Bb = _round_up((B + NB - 1) // NB, 8)
    Bp_tot = NB * Bb

    x_tm = jnp.transpose(embedded, (1, 0, 2)).astype(jnp.bfloat16)  # time-major bf16
    x_tm = jnp.pad(x_tm, ((0, 0), (0, Bp_tot - B), (0, 0)))

    budget = _vmem_budget_bytes()
    num_layers = len(prep["layers"])
    h_list, c_list = [], []
    for layer in range(num_layers):
        last = layer == num_layers - 1
        y_tm, h_n, c_n = lstm_layer_pallas(
            x_tm, prep["layers"][layer],
            hidden_p=Hp, n_batch_blocks=NB, batch_block=Bb,
            out_dtype=jnp.float32 if last else jnp.bfloat16,   # bf16 inter-layer acts
            vmem_budget=budget)
        h_list.append(h_n[:B, :H])
        c_list.append(c_n[:B, :H])
        x_tm = y_tm                                           # padded lanes stay zero
        # TODO(synk): nn.LSTM inter-layer dropout applies only in training mode;
        # deterministic inference behavior is reproduced here, so it is skipped.

    output = jnp.transpose(x_tm[:, :B, :H], (1, 0, 2))        # (B, S, H) float32
    h_n = jnp.stack(h_list, axis=0)                           # (num_layers, B, H)
    c_n = jnp.stack(c_list, axis=0)
    return output, (h_n, c_n)


def encoder_lstm_reference(token_ids, params, num_layers):
    """Pure-JAX f32 reference (PyTorch LSTM semantics) for validation."""
    x = jnp.take(params["embedding"], token_ids, axis=0)       # (B, S, E)
    B = x.shape[0]
    H = params["w_hh_l0"].shape[1]
    h_list, c_list = [], []
    for layer in range(num_layers):
        w_ih = params[f"w_ih_l{layer}"]
        w_hh = params[f"w_hh_l{layer}"]
        b = params[f"b_ih_l{layer}"] + params[f"b_hh_l{layer}"]

        def step(carry, x_t):
            h, c = carry
            gates = x_t @ w_ih.T + h @ w_hh.T + b
            i, f, g, o = jnp.split(gates, 4, axis=-1)
            i = jax.nn.sigmoid(i); f = jax.nn.sigmoid(f)
            g = jnp.tanh(g); o = jax.nn.sigmoid(o)
            c = f * c + i * g
            h = o * jnp.tanh(c)
            return (h, c), h

        init = (jnp.zeros((B, H), jnp.float32), jnp.zeros((B, H), jnp.float32))
        (h_n, c_n), ys = jax.lax.scan(step, init, jnp.transpose(x, (1, 0, 2)))
        x = jnp.transpose(ys, (1, 0, 2))
        h_list.append(h_n); c_list.append(c_n)
    return x, (jnp.stack(h_list), jnp.stack(c_list))


def init_params(key, eng_vocab_size, embedding_dim, hidden_size, num_layers):
    """Deterministic parameter init mirroring PyTorch shapes (gates i,f,g,o)."""
    params = {}
    k_emb, key = jax.random.split(key)
    params["embedding"] = jax.random.normal(
        k_emb, (eng_vocab_size, embedding_dim), jnp.float32)
    bound = 1.0 / (hidden_size ** 0.5)
    for layer in range(num_layers):
        d_in = embedding_dim if layer == 0 else hidden_size
        key, k1, k2, k3, k4 = jax.random.split(key, 5)
        params[f"w_ih_l{layer}"] = jax.random.uniform(
            k1, (4 * hidden_size, d_in), jnp.float32, -bound, bound)
        params[f"w_hh_l{layer}"] = jax.random.uniform(
            k2, (4 * hidden_size, hidden_size), jnp.float32, -bound, bound)
        params[f"b_ih_l{layer}"] = jax.random.uniform(
            k3, (4 * hidden_size,), jnp.float32, -bound, bound)
        params[f"b_hh_l{layer}"] = jax.random.uniform(
            k4, (4 * hidden_size,), jnp.float32, -bound, bound)
    return params


if __name__ == "__main__":
    batch = 2
    seq = 8
    embedding_dim = 16
    hidden_size = 32
    num_layers = 2
    eng_vocab_size = 50

    key = jax.random.PRNGKey(0)
    k_params, k_tokens = jax.random.split(key)
    params = init_params(k_params, eng_vocab_size, embedding_dim,
                         hidden_size, num_layers)
    token_ids = jax.random.randint(
        k_tokens, (batch, seq), 0, eng_vocab_size, dtype=jnp.int32)

    prep = prepare_encoder_params(params, num_layers, hidden_size, embedding_dim)

    output, (h_n, c_n) = encoder_lstm_forward(token_ids, prep, hidden_size=hidden_size)
    jax.block_until_ready((output, h_n, c_n))

    assert output.shape == (batch, seq, hidden_size)
    assert h_n.shape == (num_layers, batch, hidden_size)
    assert c_n.shape == (num_layers, batch, hidden_size)

    # Validate the bf16-operand kernel against the pure f32 reference.
    ref_out, (ref_h, ref_c) = encoder_lstm_reference(token_ids, params, num_layers)
    err = max(float(jnp.max(jnp.abs(output - ref_out))),
              float(jnp.max(jnp.abs(h_n - ref_h))),
              float(jnp.max(jnp.abs(c_n - ref_c))))
    assert err < 5e-2, f"mismatch vs reference: {err}"

    print("KERNEL_OK")
</pallas_src>

<mosaic_0001>
module attributes {stable_mosaic.version = 11 : i64} {
  func.func @_lstm_layer_kernel(%arg0: i32, %arg1: i32, %arg2: memref<8x8x16xbf16, #tpu.memory_space<vmem>>, %arg3: memref<16x512xbf16, #tpu.memory_space<any>>, %arg4: memref<128x512xbf16, #tpu.memory_space<any>>, %arg5: memref<1x512xf32, #tpu.memory_space<vmem>>, %arg6: memref<8x8x128xbf16, #tpu.memory_space<vmem>>, %arg7: memref<8x128xf32, #tpu.memory_space<vmem>>, %arg8: memref<8x128xf32, #tpu.memory_space<vmem>>, %arg9: memref<16x512xbf16, #tpu.memory_space<vmem>>, %arg10: memref<128x512xbf16, #tpu.memory_space<vmem>>, %arg11: memref<8x8x512xf32, #tpu.memory_space<vmem>>, %arg12: memref<8x128xf32, #tpu.memory_space<vmem>>, %arg13: memref<8x128xf32, #tpu.memory_space<vmem>>, %arg14: memref<2x!tpu.dma_semaphore, #tpu.memory_space<semaphore_mem>>) attributes {dimension_semantics = [#tpu.dimension_semantics<parallel>, #tpu.dimension_semantics<arbitrary>], iteration_bounds = array<i64: 1, 1>, scalar_prefetch = 0 : i64, scratch_operands = 6 : i64, tpu.core_type = #tpu.core_type<tc>, window_params = [{transform_indices = @transform_0, window_bounds = array<i64: 8, 8, 16>}, {}, {}, {pipeline_mode = #tpu.pipeline_mode<synchronous>, transform_indices = @transform_3, window_bounds = array<i64: 1, 512>}, {transform_indices = @transform_4, window_bounds = array<i64: 8, 8, 128>}, {transform_indices = @transform_5, window_bounds = array<i64: 8, 128>}, {transform_indices = @transform_6, window_bounds = array<i64: 8, 128>}]} {
    %c0_i32 = arith.constant 0 : i32
    %0 = arith.cmpi eq, %arg1, %c0_i32 : i32
    %1 = arith.extui %0 : i1 to i32
    %c0_i32_0 = arith.constant 0 : i32
    %2 = arith.cmpi ne, %1, %c0_i32_0 : i32
    scf.if %2 {
      %c0_i32_143 = arith.constant 0 : i32
      %336 = tpu.memref_slice %arg14[%c0_i32_143] : memref<2x!tpu.dma_semaphore, #tpu.memory_space<semaphore_mem>> -> memref<1x!tpu.dma_semaphore, #tpu.memory_space<semaphore_mem>>
      %337 = tpu.memref_squeeze %336 : memref<1x!tpu.dma_semaphore, #tpu.memory_space<semaphore_mem>> -> memref<!tpu.dma_semaphore, #tpu.memory_space<semaphore_mem>>
      tpu.enqueue_dma source(%arg3 : memref<16x512xbf16, #tpu.memory_space<any>>) target(%arg9 : memref<16x512xbf16, #tpu.memory_space<vmem>>) target_semaphore(%337 : memref<!tpu.dma_semaphore, #tpu.memory_space<semaphore_mem>>)
      %c1_i32_144 = arith.constant 1 : i32
      %338 = tpu.memref_slice %arg14[%c1_i32_144] : memref<2x!tpu.dma_semaphore, #tpu.memory_space<semaphore_mem>> -> memref<1x!tpu.dma_semaphore, #tpu.memory_space<semaphore_mem>>
      %339 = tpu.memref_squeeze %338 : memref<1x!tpu.dma_semaphore, #tpu.memory_space<semaphore_mem>> -> memref<!tpu.dma_semaphore, #tpu.memory_space<semaphore_mem>>
      tpu.enqueue_dma source(%arg4 : memref<128x512xbf16, #tpu.memory_space<any>>) target(%arg10 : memref<128x512xbf16, #tpu.memory_space<vmem>>) target_semaphore(%339 : memref<!tpu.dma_semaphore, #tpu.memory_space<semaphore_mem>>)
      %c0_i32_145 = arith.constant 0 : i32
      %340 = tpu.memref_slice %arg14[%c0_i32_145] : memref<2x!tpu.dma_semaphore, #tpu.memory_space<semaphore_mem>> -> memref<1x!tpu.dma_semaphore, #tpu.memory_space<semaphore_mem>>
      %341 = tpu.memref_squeeze %340 : memref<1x!tpu.dma_semaphore, #tpu.memory_space<semaphore_mem>> -> memref<!tpu.dma_semaphore, #tpu.memory_space<semaphore_mem>>
      tpu.wait_dma2 semaphore(%341 : memref<!tpu.dma_semaphore, #tpu.memory_space<semaphore_mem>>) src(%arg3 : memref<16x512xbf16, #tpu.memory_space<any>>) dst(%arg9 : memref<16x512xbf16, #tpu.memory_space<vmem>>)
      %c1_i32_146 = arith.constant 1 : i32
      %342 = tpu.memref_slice %arg14[%c1_i32_146] : memref<2x!tpu.dma_semaphore, #tpu.memory_space<semaphore_mem>> -> memref<1x!tpu.dma_semaphore, #tpu.memory_space<semaphore_mem>>
      %343 = tpu.memref_squeeze %342 : memref<1x!tpu.dma_semaphore, #tpu.memory_space<semaphore_mem>> -> memref<!tpu.dma_semaphore, #tpu.memory_space<semaphore_mem>>
      tpu.wait_dma2 semaphore(%343 : memref<!tpu.dma_semaphore, #tpu.memory_space<semaphore_mem>>) src(%arg4 : memref<128x512xbf16, #tpu.memory_space<any>>) dst(%arg10 : memref<128x512xbf16, #tpu.memory_space<vmem>>)
      %cst_147 = arith.constant 0.000000e+00 : f32
      %344 = vector.broadcast %cst_147 : f32 to vector<8x128xf32>
      %c0_148 = arith.constant 0 : index
      %c0_149 = arith.constant 0 : index
      %345 = vector.load %arg12[%c0_148, %c0_149] : memref<8x128xf32, #tpu.memory_space<vmem>>, vector<8x128xf32>
      tpu.vector_store %arg12[%c0_148, %c0_149], %344 {strides = array<i32>} : memref<8x128xf32, #tpu.memory_space<vmem>>, vector<8x128xf32>,
      %cst_150 = arith.constant 0.000000e+00 : f32
      %346 = vector.broadcast %cst_150 : f32 to vector<8x128xf32>
      %c0_151 = arith.constant 0 : index
      %c0_152 = arith.constant 0 : index
      %347 = vector.load %arg13[%c0_151, %c0_152] : memref<8x128xf32, #tpu.memory_space<vmem>>, vector<8x128xf32>
      tpu.vector_store %arg13[%c0_151, %c0_152], %346 {strides = array<i32>} : memref<8x128xf32, #tpu.memory_space<vmem>>, vector<8x128xf32>,
    } else {
    }
    %c0 = arith.constant 0 : index
    %c0_1 = arith.constant 0 : index
    %c0_2 = arith.constant 0 : index
    %3 = vector.load %arg2[%c0, %c0_1, %c0_2] : memref<8x8x16xbf16, #tpu.memory_space<vmem>>, vector<8x8x16xbf16>
    %4 = vector.shape_cast %3 : vector<8x8x16xbf16> to vector<64x16xbf16>
    %c0_3 = arith.constant 0 : index
    %c0_4 = arith.constant 0 : index
    %5 = vector.load %arg9[%c0_3, %c0_4] : memref<16x512xbf16, #tpu.memory_space<vmem>>, vector<16x512xbf16>
    %cst = arith.constant dense<0.000000e+00> : vector<64x512xf32>
    %6 = tpu.matmul %4, %5, %cst {dimension_numbers = #tpu.dot_dimension_numbers<[1], [0], [0], [1], [0, 0, 1, 1], [], []>} : vector<64x16xbf16>, vector<16x512xbf16>, vector<64x512xf32> -> vector<64x512xf32>
    %c0_5 = arith.constant 0 : index
    %c0_6 = arith.constant 0 : index
    %7 = vector.load %arg5[%c0_5, %c0_6] : memref<1x512xf32, #tpu.memory_space<vmem>>, vector<1x512xf32>
    %8 = vector.broadcast %7 : vector<1x512xf32> to vector<64x512xf32>
    %9 = arith.addf %6, %8 : vector<64x512xf32>
    %10 = vector.shape_cast %9 : vector<64x512xf32> to vector<8x8x512xf32>
    %c0_7 = arith.constant 0 : index
    %c0_8 = arith.constant 0 : index
    %c0_9 = arith.constant 0 : index
    %11 = vector.load %arg11[%c0_7, %c0_8, %c0_9] : memref<8x8x512xf32, #tpu.memory_space<vmem>>, vector<8x8x512xf32>
    tpu.vector_store %arg11[%c0_7, %c0_8, %c0_9], %10 {strides = array<i32>} : memref<8x8x512xf32, #tpu.memory_space<vmem>>, vector<8x8x512xf32>,
    %c0_10 = arith.constant 0 : index
    %c0_11 = arith.constant 0 : index
    %12 = vector.load %arg10[%c0_10, %c0_11] : memref<128x512xbf16, #tpu.memory_space<vmem>>, vector<128x512xbf16>
    %c0_i32_12 = arith.constant 0 : i32
    %c0_13 = arith.constant 0 : index
    %c0_14 = arith.constant 0 : index
    %13 = vector.load %arg12[%c0_13, %c0_14] : memref<8x128xf32, #tpu.memory_space<vmem>>, vector<8x128xf32>
    %c0_15 = arith.constant 0 : index
    %c0_16 = arith.constant 0 : index
    %14 = vector.load %arg13[%c0_15, %c0_16] : memref<8x128xf32, #tpu.memory_space<vmem>>, vector<8x128xf32>
    %15 = arith.index_cast %c0_i32_12 : i32 to index
    %c0_17 = arith.constant 0 : index
    %c0_18 = arith.constant 0 : index
    %16 = vector.load %arg11[%15, %c0_17, %c0_18] : memref<8x8x512xf32, #tpu.memory_space<vmem>>, vector<1x8x512xf32>
    %17 = vector.shape_cast %16 : vector<1x8x512xf32> to vector<8x512xf32>
    %18 = arith.truncf %13 : vector<8x128xf32> to vector<8x128xbf16>
    %cst_19 = arith.constant dense<0.000000e+00> : vector<8x512xf32>
    %19 = tpu.matmul %18, %12, %cst_19 {dimension_numbers = #tpu.dot_dimension_numbers<[1], [0], [0], [1], [0, 0, 1, 1], [], []>} : vector<8x128xbf16>, vector<128x512xbf16>, vector<8x512xf32> -> vector<8x512xf32>
    %20 = arith.addf %17, %19 : vector<8x512xf32>
    %21 = vector.extract_strided_slice %20 {offsets = [0, 0], sizes = [8, 128], strides = [1, 1]} : vector<8x512xf32> to vector<8x128xf32>
    %22 = arith.negf %21 : vector<8x128xf32>
    %23 = math.exp %22 : vector<8x128xf32>
    %cst_20 = arith.constant 1.000000e+00 : f32
    %24 = vector.broadcast %cst_20 : f32 to vector<8x128xf32>
    %25 = arith.addf %24, %23 : vector<8x128xf32>
    %26 = arith.divf %24, %25 : vector<8x128xf32>
    %27 = vector.extract_strided_slice %20 {offsets = [0, 128], sizes = [8, 128], strides = [1, 1]} : vector<8x512xf32> to vector<8x128xf32>
    %28 = arith.negf %27 : vector<8x128xf32>
    %29 = math.exp %28 : vector<8x128xf32>
    %cst_21 = arith.constant 1.000000e+00 : f32
    %30 = vector.broadcast %cst_21 : f32 to vector<8x128xf32>
    %31 = arith.addf %30, %29 : vector<8x128xf32>
    %32 = arith.divf %30, %31 : vector<8x128xf32>
    %33 = vector.extract_strided_slice %20 {offsets = [0, 256], sizes = [8, 128], strides = [1, 1]} : vector<8x512xf32> to vector<8x128xf32>
    %34 = math.tanh %33 : vector<8x128xf32>
    %35 = vector.extract_strided_slice %20 {offsets = [0, 384], sizes = [8, 128], strides = [1, 1]} : vector<8x512xf32> to vector<8x128xf32>
    %36 = arith.negf %35 : vector<8x128xf32>
    %37 = math.exp %36 : vector<8x128xf32>
    %cst_22 = arith.constant 1.000000e+00 : f32
    %38 = vector.broadcast %cst_22 : f32 to vector<8x128xf32>
    %39 = arith.addf %38, %37 : vector<8x128xf32>
    %40 = arith.divf %38, %39 : vector<8x128xf32>
    %41 = arith.mulf %32, %14 : vector<8x128xf32>
    %42 = arith.mulf %26, %34 : vector<8x128xf32>
    %43 = arith.addf %41, %42 : vector<8x128xf32>
    %44 = math.tanh %43 : vector<8x128xf32>
    %45 = arith.mulf %40, %44 : vector<8x128xf32>
    %c0_23 = arith.constant 0 : index
    %c0_24 = arith.constant 0 : index
    %46 = vector.load %arg12[%c0_23, %c0_24] : memref<8x128xf32, #tpu.memory_space<vmem>>, vector<8x128xf32>
    tpu.vector_store %arg12[%c0_23, %c0_24], %45 {strides = array<i32>} : memref<8x128xf32, #tpu.memory_space<vmem>>, vector<8x128xf32>,
    %c0_25 = arith.constant 0 : index
    %c0_26 = arith.constant 0 : index
    %47 = vector.load %arg13[%c0_25, %c0_26] : memref<8x128xf32, #tpu.memory_space<vmem>>, vector<8x128xf32>
    tpu.vector_store %arg13[%c0_25, %c0_26], %43 {strides = array<i32>} : memref<8x128xf32, #tpu.memory_space<vmem>>, vector<8x128xf32>,
    %48 = arith.truncf %45 : vector<8x128xf32> to vector<8x128xbf16>
    %49 = arith.index_cast %c0_i32_12 : i32 to index
    %c0_27 = arith.constant 0 : index
    %c0_28 = arith.constant 0 : index
    %50 = vector.load %arg6[%49, %c0_27, %c0_28] : memref<8x8x128xbf16, #tpu.memory_space<vmem>>, vector<1x8x128xbf16>
    %51 = vector.shape_cast %50 : vector<1x8x128xbf16> to vector<8x128xbf16>
    %52 = vector.shape_cast %48 : vector<8x128xbf16> to vector<1x8x128xbf16>
    tpu.vector_store %arg6[%49, %c0_27, %c0_28], %52 {strides = array<i32>} : memref<8x8x128xbf16, #tpu.memory_space<vmem>>, vector<1x8x128xbf16>,
    %c1_i32 = arith.constant 1 : i32
    %c0_29 = arith.constant 0 : index
    %c0_30 = arith.constant 0 : index
    %53 = vector.load %arg12[%c0_29, %c0_30] : memref<8x128xf32, #tpu.memory_space<vmem>>, vector<8x128xf32>
    %c0_31 = arith.constant 0 : index
    %c0_32 = arith.constant 0 : index
    %54 = vector.load %arg13[%c0_31, %c0_32] : memref<8x128xf32, #tpu.memory_space<vmem>>, vector<8x128xf32>
    %55 = arith.index_cast %c1_i32 : i32 to index
    %c0_33 = arith.constant 0 : index
    %c0_34 = arith.constant 0 : index
    %56 = vector.load %arg11[%55, %c0_33, %c0_34] : memref<8x8x512xf32, #tpu.memory_space<vmem>>, vector<1x8x512xf32>
    %57 = vector.shape_cast %56 : vector<1x8x512xf32> to vector<8x512xf32>
    %58 = arith.truncf %53 : vector<8x128xf32> to vector<8x128xbf16>
    %cst_35 = arith.constant dense<0.000000e+00> : vector<8x512xf32>
    %59 = tpu.matmul %58, %12, %cst_35 {dimension_numbers = #tpu.dot_dimension_numbers<[1], [0], [0], [1], [0, 0, 1, 1], [], []>} : vector<8x128xbf16>, vector<128x512xbf16>, vector<8x512xf32> -> vector<8x512xf32>
    %60 = arith.addf %57, %59 : vector<8x512xf32>
    %61 = vector.extract_strided_slice %60 {offsets = [0, 0], sizes = [8, 128], strides = [1, 1]} : vector<8x512xf32> to vector<8x128xf32>
    %62 = arith.negf %61 : vector<8x128xf32>
    %63 = math.exp %62 : vector<8x128xf32>
    %cst_36 = arith.constant 1.000000e+00 : f32
    %64 = vector.broadcast %cst_36 : f32 to vector<8x128xf32>
    %65 = arith.addf %64, %63 : vector<8x128xf32>
    %66 = arith.divf %64, %65 : vector<8x128xf32>
    %67 = vector.extract_strided_slice %60 {offsets = [0, 128], sizes = [8, 128], strides = [1, 1]} : vector<8x512xf32> to vector<8x128xf32>
    %68 = arith.negf %67 : vector<8x128xf32>
    %69 = math.exp %68 : vector<8x128xf32>
    %cst_37 = arith.constant 1.000000e+00 : f32
    %70 = vector.broadcast %cst_37 : f32 to vector<8x128xf32>
    %71 = arith.addf %70, %69 : vector<8x128xf32>
    %72 = arith.divf %70, %71 : vector<8x128xf32>
    %73 = vector.extract_strided_slice %60 {offsets = [0, 256], sizes = [8, 128], strides = [1, 1]} : vector<8x512xf32> to vector<8x128xf32>
    %74 = math.tanh %73 : vector<8x128xf32>
    %75 = vector.extract_strided_slice %60 {offsets = [0, 384], sizes = [8, 128], strides = [1, 1]} : vector<8x512xf32> to vector<8x128xf32>
    %76 = arith.negf %75 : vector<8x128xf32>
    %77 = math.exp %76 : vector<8x128xf32>
    %cst_38 = arith.constant 1.000000e+00 : f32
    %78 = vector.broadcast %cst_38 : f32 to vector<8x128xf32>
    %79 = arith.addf %78, %77 : vector<8x128xf32>
    %80 = arith.divf %78, %79 : vector<8x128xf32>
    %81 = arith.mulf %72, %54 : vector<8x128xf32>
    %82 = arith.mulf %66, %74 : vector<8x128xf32>
    %83 = arith.addf %81, %82 : vector<8x128xf32>
    %84 = math.tanh %83 : vector<8x128xf32>
    %85 = arith.mulf %80, %84 : vector<8x128xf32>
    %c0_39 = arith.constant 0 : index
    %c0_40 = arith.constant 0 : index
    %86 = vector.load %arg12[%c0_39, %c0_40] : memref<8x128xf32, #tpu.memory_space<vmem>>, vector<8x128xf32>
    tpu.vector_store %arg12[%c0_39, %c0_40], %85 {strides = array<i32>} : memref<8x128xf32, #tpu.memory_space<vmem>>, vector<8x128xf32>,
    %c0_41 = arith.constant 0 : index
    %c0_42 = arith.constant 0 : index
    %87 = vector.load %arg13[%c0_41, %c0_42] : memref<8x128xf32, #tpu.memory_space<vmem>>, vector<8x128xf32>
    tpu.vector_store %arg13[%c0_41, %c0_42], %83 {strides = array<i32>} : memref<8x128xf32, #tpu.memory_space<vmem>>, vector<8x128xf32>,
    %88 = arith.truncf %85 : vector<8x128xf32> to vector<8x128xbf16>
    %89 = arith.index_cast %c1_i32 : i32 to index
    %c0_43 = arith.constant 0 : index
    %c0_44 = arith.constant 0 : index
    %90 = vector.load %arg6[%89, %c0_43, %c0_44] : memref<8x8x128xbf16, #tpu.memory_space<vmem>>, vector<1x8x128xbf16>
    %91 = vector.shape_cast %90 : vector<1x8x128xbf16> to vector<8x128xbf16>
    %92 = vector.shape_cast %88 : vector<8x128xbf16> to vector<1x8x128xbf16>
    tpu.vector_store %arg6[%89, %c0_43, %c0_44], %92 {strides = array<i32>} : memref<8x8x128xbf16, #tpu.memory_space<vmem>>, vector<1x8x128xbf16>,
    %c2_i32 = arith.constant 2 : i32
    %c0_45 = arith.constant 0 : index
    %c0_46 = arith.constant 0 : index
    %93 = vector.load %arg12[%c0_45, %c0_46] : memref<8x128xf32, #tpu.memory_space<vmem>>, vector<8x128xf32>
    %c0_47 = arith.constant 0 : index
    %c0_48 = arith.constant 0 : index
    %94 = vector.load %arg13[%c0_47, %c0_48] : memref<8x128xf32, #tpu.memory_space<vmem>>, vector<8x128xf32>
    %95 = arith.index_cast %c2_i32 : i32 to index
    %c0_49 = arith.constant 0 : index
    %c0_50 = arith.constant 0 : index
    %96 = vector.load %arg11[%95, %c0_49, %c0_50] : memref<8x8x512xf32, #tpu.memory_space<vmem>>, vector<1x8x512xf32>
    %97 = vector.shape_cast %96 : vector<1x8x512xf32> to vector<8x512xf32>
    %98 = arith.truncf %93 : vector<8x128xf32> to vector<8x128xbf16>
    %cst_51 = arith.constant dense<0.000000e+00> : vector<8x512xf32>
    %99 = tpu.matmul %98, %12, %cst_51 {dimension_numbers = #tpu.dot_dimension_numbers<[1], [0], [0], [1], [0, 0, 1, 1], [], []>} : vector<8x128xbf16>, vector<128x512xbf16>, vector<8x512xf32> -> vector<8x512xf32>
    %100 = arith.addf %97, %99 : vector<8x512xf32>
    %101 = vector.extract_strided_slice %100 {offsets = [0, 0], sizes = [8, 128], strides = [1, 1]} : vector<8x512xf32> to vector<8x128xf32>
    %102 = arith.negf %101 : vector<8x128xf32>
    %103 = math.exp %102 : vector<8x128xf32>
    %cst_52 = arith.constant 1.000000e+00 : f32
    %104 = vector.broadcast %cst_52 : f32 to vector<8x128xf32>
    %105 = arith.addf %104, %103 : vector<8x128xf32>
    %106 = arith.divf %104, %105 : vector<8x128xf32>
    %107 = vector.extract_strided_slice %100 {offsets = [0, 128], sizes = [8, 128], strides = [1, 1]} : vector<8x512xf32> to vector<8x128xf32>
    %108 = arith.negf %107 : vector<8x128xf32>
    %109 = math.exp %108 : vector<8x128xf32>
    %cst_53 = arith.constant 1.000000e+00 : f32
    %110 = vector.broadcast %cst_53 : f32 to vector<8x128xf32>
    %111 = arith.addf %110, %109 : vector<8x128xf32>
    %112 = arith.divf %110, %111 : vector<8x128xf32>
    %113 = vector.extract_strided_slice %100 {offsets = [0, 256], sizes = [8, 128], strides = [1, 1]} : vector<8x512xf32> to vector<8x128xf32>
    %114 = math.tanh %113 : vector<8x128xf32>
    %115 = vector.extract_strided_slice %100 {offsets = [0, 384], sizes = [8, 128], strides = [1, 1]} : vector<8x512xf32> to vector<8x128xf32>
    %116 = arith.negf %115 : vector<8x128xf32>
    %117 = math.exp %116 : vector<8x128xf32>
    %cst_54 = arith.constant 1.000000e+00 : f32
    %118 = vector.broadcast %cst_54 : f32 to vector<8x128xf32>
    %119 = arith.addf %118, %117 : vector<8x128xf32>
    %120 = arith.divf %118, %119 : vector<8x128xf32>
    %121 = arith.mulf %112, %94 : vector<8x128xf32>
    %122 = arith.mulf %106, %114 : vector<8x128xf32>
    %123 = arith.addf %121, %122 : vector<8x128xf32>
    %124 = math.tanh %123 : vector<8x128xf32>
    %125 = arith.mulf %120, %124 : vector<8x128xf32>
    %c0_55 = arith.constant 0 : index
    %c0_56 = arith.constant 0 : index
    %126 = vector.load %arg12[%c0_55, %c0_56] : memref<8x128xf32, #tpu.memory_space<vmem>>, vector<8x128xf32>
    tpu.vector_store %arg12[%c0_55, %c0_56], %125 {strides = array<i32>} : memref<8x128xf32, #tpu.memory_space<vmem>>, vector<8x128xf32>,
    %c0_57 = arith.constant 0 : index
    %c0_58 = arith.constant 0 : index
    %127 = vector.load %arg13[%c0_57, %c0_58] : memref<8x128xf32, #tpu.memory_space<vmem>>, vector<8x128xf32>
    tpu.vector_store %arg13[%c0_57, %c0_58], %123 {strides = array<i32>} : memref<8x128xf32, #tpu.memory_space<vmem>>, vector<8x128xf32>,
    %128 = arith.truncf %125 : vector<8x128xf32> to vector<8x128xbf16>
    %129 = arith.index_cast %c2_i32 : i32 to index
    %c0_59 = arith.constant 0 : index
    %c0_60 = arith.constant 0 : index
    %130 = vector.load %arg6[%129, %c0_59, %c0_60] : memref<8x8x128xbf16, #tpu.memory_space<vmem>>, vector<1x8x128xbf16>
    %131 = vector.shape_cast %130 : vector<1x8x128xbf16> to vector<8x128xbf16>
    %132 = vector.shape_cast %128 : vector<8x128xbf16> to vector<1x8x128xbf16>
    tpu.vector_store %arg6[%129, %c0_59, %c0_60], %132 {strides = array<i32>} : memref<8x8x128xbf16, #tpu.memory_space<vmem>>, vector<1x8x128xbf16>,
    %c3_i32 = arith.constant 3 : i32
    %c0_61 = arith.constant 0 : index
    %c0_62 = arith.constant 0 : index
    %133 = vector.load %arg12[%c0_61, %c0_62] : memref<8x128xf32, #tpu.memory_space<vmem>>, vector<8x128xf32>
    %c0_63 = arith.constant 0 : index
    %c0_64 = arith.constant 0 : index
    %134 = vector.load %arg13[%c0_63, %c0_64] : memref<8x128xf32, #tpu.memory_space<vmem>>, vector<8x128xf32>
    %135 = arith.index_cast %c3_i32 : i32 to index
    %c0_65 = arith.constant 0 : index
    %c0_66 = arith.constant 0 : index
    %136 = vector.load %arg11[%135, %c0_65, %c0_66] : memref<8x8x512xf32, #tpu.memory_space<vmem>>, vector<1x8x512xf32>
    %137 = vector.shape_cast %136 : vector<1x8x512xf32> to vector<8x512xf32>
    %138 = arith.truncf %133 : vector<8x128xf32> to vector<8x128xbf16>
    %cst_67 = arith.constant dense<0.000000e+00> : vector<8x512xf32>
    %139 = tpu.matmul %138, %12, %cst_67 {dimension_numbers = #tpu.dot_dimension_numbers<[1], [0], [0], [1], [0, 0, 1, 1], [], []>} : vector<8x128xbf16>, vector<128x512xbf16>, vector<8x512xf32> -> vector<8x512xf32>
    %140 = arith.addf %137, %139 : vector<8x512xf32>
    %141 = vector.extract_strided_slice %140 {offsets = [0, 0], sizes = [8, 128], strides = [1, 1]} : vector<8x512xf32> to vector<8x128xf32>
    %142 = arith.negf %141 : vector<8x128xf32>
    %143 = math.exp %142 : vector<8x128xf32>
    %cst_68 = arith.constant 1.000000e+00 : f32
    %144 = vector.broadcast %cst_68 : f32 to vector<8x128xf32>
    %145 = arith.addf %144, %143 : vector<8x128xf32>
    %146 = arith.divf %144, %145 : vector<8x128xf32>
    %147 = vector.extract_strided_slice %140 {offsets = [0, 128], sizes = [8, 128], strides = [1, 1]} : vector<8x512xf32> to vector<8x128xf32>
    %148 = arith.negf %147 : vector<8x128xf32>
    %149 = math.exp %148 : vector<8x128xf32>
    %cst_69 = arith.constant 1.000000e+00 : f32
    %150 = vector.broadcast %cst_69 : f32 to vector<8x128xf32>
    %151 = arith.addf %150, %149 : vector<8x128xf32>
    %152 = arith.divf %150, %151 : vector<8x128xf32>
    %153 = vector.extract_strided_slice %140 {offsets = [0, 256], sizes = [8, 128], strides = [1, 1]} : vector<8x512xf32> to vector<8x128xf32>
    %154 = math.tanh %153 : vector<8x128xf32>
    %155 = vector.extract_strided_slice %140 {offsets = [0, 384], sizes = [8, 128], strides = [1, 1]} : vector<8x512xf32> to vector<8x128xf32>
    %156 = arith.negf %155 : vector<8x128xf32>
    %157 = math.exp %156 : vector<8x128xf32>
    %cst_70 = arith.constant 1.000000e+00 : f32
    %158 = vector.broadcast %cst_70 : f32 to vector<8x128xf32>
    %159 = arith.addf %158, %157 : vector<8x128xf32>
    %160 = arith.divf %158, %159 : vector<8x128xf32>
    %161 = arith.mulf %152, %134 : vector<8x128xf32>
    %162 = arith.mulf %146, %154 : vector<8x128xf32>
    %163 = arith.addf %161, %162 : vector<8x128xf32>
    %164 = math.tanh %163 : vector<8x128xf32>
    %165 = arith.mulf %160, %164 : vector<8x128xf32>
    %c0_71 = arith.constant 0 : index
    %c0_72 = arith.constant 0 : index
    %166 = vector.load %arg12[%c0_71, %c0_72] : memref<8x128xf32, #tpu.memory_space<vmem>>, vector<8x128xf32>
    tpu.vector_store %arg12[%c0_71, %c0_72], %165 {strides = array<i32>} : memref<8x128xf32, #tpu.memory_space<vmem>>, vector<8x128xf32>,
    %c0_73 = arith.constant 0 : index
    %c0_74 = arith.constant 0 : index
    %167 = vector.load %arg13[%c0_73, %c0_74] : memref<8x128xf32, #tpu.memory_space<vmem>>, vector<8x128xf32>
    tpu.vector_store %arg13[%c0_73, %c0_74], %163 {strides = array<i32>} : memref<8x128xf32, #tpu.memory_space<vmem>>, vector<8x128xf32>,
    %168 = arith.truncf %165 : vector<8x128xf32> to vector<8x128xbf16>
    %169 = arith.index_cast %c3_i32 : i32 to index
    %c0_75 = arith.constant 0 : index
    %c0_76 = arith.constant 0 : index
    %170 = vector.load %arg6[%169, %c0_75, %c0_76] : memref<8x8x128xbf16, #tpu.memory_space<vmem>>, vector<1x8x128xbf16>
    %171 = vector.shape_cast %170 : vector<1x8x128xbf16> to vector<8x128xbf16>
    %172 = vector.shape_cast %168 : vector<8x128xbf16> to vector<1x8x128xbf16>
    tpu.vector_store %arg6[%169, %c0_75, %c0_76], %172 {strides = array<i32>} : memref<8x8x128xbf16, #tpu.memory_space<vmem>>, vector<1x8x128xbf16>,
    %c4_i32 = arith.constant 4 : i32
    %c0_77 = arith.constant 0 : index
    %c0_78 = arith.constant 0 : index
    %173 = vector.load %arg12[%c0_77, %c0_78] : memref<8x128xf32, #tpu.memory_space<vmem>>, vector<8x128xf32>
    %c0_79 = arith.constant 0 : index
    %c0_80 = arith.constant 0 : index
    %174 = vector.load %arg13[%c0_79, %c0_80] : memref<8x128xf32, #tpu.memory_space<vmem>>, vector<8x128xf32>
    %175 = arith.index_cast %c4_i32 : i32 to index
    %c0_81 = arith.constant 0 : index
    %c0_82 = arith.constant 0 : index
    %176 = vector.load %arg11[%175, %c0_81, %c0_82] : memref<8x8x512xf32, #tpu.memory_space<vmem>>, vector<1x8x512xf32>
    %177 = vector.shape_cast %176 : vector<1x8x512xf32> to vector<8x512xf32>
    %178 = arith.truncf %173 : vector<8x128xf32> to vector<8x128xbf16>
    %cst_83 = arith.constant dense<0.000000e+00> : vector<8x512xf32>
    %179 = tpu.matmul %178, %12, %cst_83 {dimension_numbers = #tpu.dot_dimension_numbers<[1], [0], [0], [1], [0, 0, 1, 1], [], []>} : vector<8x128xbf16>, vector<128x512xbf16>, vector<8x512xf32> -> vector<8x512xf32>
    %180 = arith.addf %177, %179 : vector<8x512xf32>
    %181 = vector.extract_strided_slice %180 {offsets = [0, 0], sizes = [8, 128], strides = [1, 1]} : vector<8x512xf32> to vector<8x128xf32>
    %182 = arith.negf %181 : vector<8x128xf32>
    %183 = math.exp %182 : vector<8x128xf32>
    %cst_84 = arith.constant 1.000000e+00 : f32
    %184 = vector.broadcast %cst_84 : f32 to vector<8x128xf32>
    %185 = arith.addf %184, %183 : vector<8x128xf32>
    %186 = arith.divf %184, %185 : vector<8x128xf32>
    %187 = vector.extract_strided_slice %180 {offsets = [0, 128], sizes = [8, 128], strides = [1, 1]} : vector<8x512xf32> to vector<8x128xf32>
    %188 = arith.negf %187 : vector<8x128xf32>
    %189 = math.exp %188 : vector<8x128xf32>
    %cst_85 = arith.constant 1.000000e+00 : f32
    %190 = vector.broadcast %cst_85 : f32 to vector<8x128xf32>
    %191 = arith.addf %190, %189 : vector<8x128xf32>
    %192 = arith.divf %190, %191 : vector<8x128xf32>
    %193 = vector.extract_strided_slice %180 {offsets = [0, 256], sizes = [8, 128], strides = [1, 1]} : vector<8x512xf32> to vector<8x128xf32>
    %194 = math.tanh %193 : vector<8x128xf32>
    %195 = vector.extract_strided_slice %180 {offsets = [0, 384], sizes = [8, 128], strides = [1, 1]} : vector<8x512xf32> to vector<8x128xf32>
    %196 = arith.negf %195 : vector<8x128xf32>
    %197 = math.exp %196 : vector<8x128xf32>
    %cst_86 = arith.constant 1.000000e+00 : f32
    %198 = vector.broadcast %cst_86 : f32 to vector<8x128xf32>
    %199 = arith.addf %198, %197 : vector<8x128xf32>
    %200 = arith.divf %198, %199 : vector<8x128xf32>
    %201 = arith.mulf %192, %174 : vector<8x128xf32>
    %202 = arith.mulf %186, %194 : vector<8x128xf32>
    %203 = arith.addf %201, %202 : vector<8x128xf32>
    %204 = math.tanh %203 : vector<8x128xf32>
    %205 = arith.mulf %200, %204 : vector<8x128xf32>
    %c0_87 = arith.constant 0 : index
    %c0_88 = arith.constant 0 : index
    %206 = vector.load %arg12[%c0_87, %c0_88] : memref<8x128xf32, #tpu.memory_space<vmem>>, vector<8x128xf32>
    tpu.vector_store %arg12[%c0_87, %c0_88], %205 {strides = array<i32>} : memref<8x128xf32, #tpu.memory_space<vmem>>, vector<8x128xf32>,
    %c0_89 = arith.constant 0 : index
    %c0_90 = arith.constant 0 : index
    %207 = vector.load %arg13[%c0_89, %c0_90] : memref<8x128xf32, #tpu.memory_space<vmem>>, vector<8x128xf32>
    tpu.vector_store %arg13[%c0_89, %c0_90], %203 {strides = array<i32>} : memref<8x128xf32, #tpu.memory_space<vmem>>, vector<8x128xf32>,
    %208 = arith.truncf %205 : vector<8x128xf32> to vector<8x128xbf16>
    %209 = arith.index_cast %c4_i32 : i32 to index
    %c0_91 = arith.constant 0 : index
    %c0_92 = arith.constant 0 : index
    %210 = vector.load %arg6[%209, %c0_91, %c0_92] : memref<8x8x128xbf16, #tpu.memory_space<vmem>>, vector<1x8x128xbf16>
    %211 = vector.shape_cast %210 : vector<1x8x128xbf16> to vector<8x128xbf16>
    %212 = vector.shape_cast %208 : vector<8x128xbf16> to vector<1x8x128xbf16>
    tpu.vector_store %arg6[%209, %c0_91, %c0_92], %212 {strides = array<i32>} : memref<8x8x128xbf16, #tpu.memory_space<vmem>>, vector<1x8x128xbf16>,
    %c5_i32 = arith.constant 5 : i32
    %c0_93 = arith.constant 0 : index
    %c0_94 = arith.constant 0 : index
    %213 = vector.load %arg12[%c0_93, %c0_94] : memref<8x128xf32, #tpu.memory_space<vmem>>, vector<8x128xf32>
    %c0_95 = arith.constant 0 : index
    %c0_96 = arith.constant 0 : index
    %214 = vector.load %arg13[%c0_95, %c0_96] : memref<8x128xf32, #tpu.memory_space<vmem>>, vector<8x128xf32>
    %215 = arith.index_cast %c5_i32 : i32 to index
    %c0_97 = arith.constant 0 : index
    %c0_98 = arith.constant 0 : index
    %216 = vector.load %arg11[%215, %c0_97, %c0_98] : memref<8x8x512xf32, #tpu.memory_space<vmem>>, vector<1x8x512xf32>
    %217 = vector.shape_cast %216 : vector<1x8x512xf32> to vector<8x512xf32>
    %218 = arith.truncf %213 : vector<8x128xf32> to vector<8x128xbf16>
    %cst_99 = arith.constant dense<0.000000e+00> : vector<8x512xf32>
    %219 = tpu.matmul %218, %12, %cst_99 {dimension_numbers = #tpu.dot_dimension_numbers<[1], [0], [0], [1], [0, 0, 1, 1], [], []>} : vector<8x128xbf16>, vector<128x512xbf16>, vector<8x512xf32> -> vector<8x512xf32>
    %220 = arith.addf %217, %219 : vector<8x512xf32>
    %221 = vector.extract_strided_slice %220 {offsets = [0, 0], sizes = [8, 128], strides = [1, 1]} : vector<8x512xf32> to vector<8x128xf32>
    %222 = arith.negf %221 : vector<8x128xf32>
    %223 = math.exp %222 : vector<8x128xf32>
    %cst_100 = arith.constant 1.000000e+00 : f32
    %224 = vector.broadcast %cst_100 : f32 to vector<8x128xf32>
    %225 = arith.addf %224, %223 : vector<8x128xf32>
    %226 = arith.divf %224, %225 : vector<8x128xf32>
    %227 = vector.extract_strided_slice %220 {offsets = [0, 128], sizes = [8, 128], strides = [1, 1]} : vector<8x512xf32> to vector<8x128xf32>
    %228 = arith.negf %227 : vector<8x128xf32>
    %229 = math.exp %228 : vector<8x128xf32>
    %cst_101 = arith.constant 1.000000e+00 : f32
    %230 = vector.broadcast %cst_101 : f32 to vector<8x128xf32>
    %231 = arith.addf %230, %229 : vector<8x128xf32>
    %232 = arith.divf %230, %231 : vector<8x128xf32>
    %233 = vector.extract_strided_slice %220 {offsets = [0, 256], sizes = [8, 128], strides = [1, 1]} : vector<8x512xf32> to vector<8x128xf32>
    %234 = math.tanh %233 : vector<8x128xf32>
    %235 = vector.extract_strided_slice %220 {offsets = [0, 384], sizes = [8, 128], strides = [1, 1]} : vector<8x512xf32> to vector<8x128xf32>
    %236 = arith.negf %235 : vector<8x128xf32>
    %237 = math.exp %236 : vector<8x128xf32>
    %cst_102 = arith.constant 1.000000e+00 : f32
    %238 = vector.broadcast %cst_102 : f32 to vector<8x128xf32>
    %239 = arith.addf %238, %237 : vector<8x128xf32>
    %240 = arith.divf %238, %239 : vector<8x128xf32>
    %241 = arith.mulf %232, %214 : vector<8x128xf32>
    %242 = arith.mulf %226, %234 : vector<8x128xf32>
    %243 = arith.addf %241, %242 : vector<8x128xf32>
    %244 = math.tanh %243 : vector<8x128xf32>
    %245 = arith.mulf %240, %244 : vector<8x128xf32>
    %c0_103 = arith.constant 0 : index
    %c0_104 = arith.constant 0 : index
    %246 = vector.load %arg12[%c0_103, %c0_104] : memref<8x128xf32, #tpu.memory_space<vmem>>, vector<8x128xf32>
    tpu.vector_store %arg12[%c0_103, %c0_104], %245 {strides = array<i32>} : memref<8x128xf32, #tpu.memory_space<vmem>>, vector<8x128xf32>,
    %c0_105 = arith.constant 0 : index
    %c0_106 = arith.constant 0 : index
    %247 = vector.load %arg13[%c0_105, %c0_106] : memref<8x128xf32, #tpu.memory_space<vmem>>, vector<8x128xf32>
    tpu.vector_store %arg13[%c0_105, %c0_106], %243 {strides = array<i32>} : memref<8x128xf32, #tpu.memory_space<vmem>>, vector<8x128xf32>,
    %248 = arith.truncf %245 : vector<8x128xf32> to vector<8x128xbf16>
    %249 = arith.index_cast %c5_i32 : i32 to index
    %c0_107 = arith.constant 0 : index
    %c0_108 = arith.constant 0 : index
    %250 = vector.load %arg6[%249, %c0_107, %c0_108] : memref<8x8x128xbf16, #tpu.memory_space<vmem>>, vector<1x8x128xbf16>
    %251 = vector.shape_cast %250 : vector<1x8x128xbf16> to vector<8x128xbf16>
    %252 = vector.shape_cast %248 : vector<8x128xbf16> to vector<1x8x128xbf16>
    tpu.vector_store %arg6[%249, %c0_107, %c0_108], %252 {strides = array<i32>} : memref<8x8x128xbf16, #tpu.memory_space<vmem>>, vector<1x8x128xbf16>,
    %c6_i32 = arith.constant 6 : i32
    %c0_109 = arith.constant 0 : index
    %c0_110 = arith.constant 0 : index
    %253 = vector.load %arg12[%c0_109, %c0_110] : memref<8x128xf32, #tpu.memory_space<vmem>>, vector<8x128xf32>
    %c0_111 = arith.constant 0 : index
    %c0_112 = arith.constant 0 : index
    %254 = vector.load %arg13[%c0_111, %c0_112] : memref<8x128xf32, #tpu.memory_space<vmem>>, vector<8x128xf32>
    %255 = arith.index_cast %c6_i32 : i32 to index
    %c0_113 = arith.constant 0 : index
    %c0_114 = arith.constant 0 : index
    %256 = vector.load %arg11[%255, %c0_113, %c0_114] : memref<8x8x512xf32, #tpu.memory_space<vmem>>, vector<1x8x512xf32>
    %257 = vector.shape_cast %256 : vector<1x8x512xf32> to vector<8x512xf32>
    %258 = arith.truncf %253 : vector<8x128xf32> to vector<8x128xbf16>
    %cst_115 = arith.constant dense<0.000000e+00> : vector<8x512xf32>
    %259 = tpu.matmul %258, %12, %cst_115 {dimension_numbers = #tpu.dot_dimension_numbers<[1], [0], [0], [1], [0, 0, 1, 1], [], []>} : vector<8x128xbf16>, vector<128x512xbf16>, vector<8x512xf32> -> vector<8x512xf32>
    %260 = arith.addf %257, %259 : vector<8x512xf32>
    %261 = vector.extract_strided_slice %260 {offsets = [0, 0], sizes = [8, 128], strides = [1, 1]} : vector<8x512xf32> to vector<8x128xf32>
    %262 = arith.negf %261 : vector<8x128xf32>
    %263 = math.exp %262 : vector<8x128xf32>
    %cst_116 = arith.constant 1.000000e+00 : f32
    %264 = vector.broadcast %cst_116 : f32 to vector<8x128xf32>
    %265 = arith.addf %264, %263 : vector<8x128xf32>
    %266 = arith.divf %264, %265 : vector<8x128xf32>
    %267 = vector.extract_strided_slice %260 {offsets = [0, 128], sizes = [8, 128], strides = [1, 1]} : vector<8x512xf32> to vector<8x128xf32>
    %268 = arith.negf %267 : vector<8x128xf32>
    %269 = math.exp %268 : vector<8x128xf32>
    %cst_117 = arith.constant 1.000000e+00 : f32
    %270 = vector.broadcast %cst_117 : f32 to vector<8x128xf32>
    %271 = arith.addf %270, %269 : vector<8x128xf32>
    %272 = arith.divf %270, %271 : vector<8x128xf32>
    %273 = vector.extract_strided_slice %260 {offsets = [0, 256], sizes = [8, 128], strides = [1, 1]} : vector<8x512xf32> to vector<8x128xf32>
    %274 = math.tanh %273 : vector<8x128xf32>
    %275 = vector.extract_strided_slice %260 {offsets = [0, 384], sizes = [8, 128], strides = [1, 1]} : vector<8x512xf32> to vector<8x128xf32>
    %276 = arith.negf %275 : vector<8x128xf32>
    %277 = math.exp %276 : vector<8x128xf32>
    %cst_118 = arith.constant 1.000000e+00 : f32
    %278 = vector.broadcast %cst_118 : f32 to vector<8x128xf32>
    %279 = arith.addf %278, %277 : vector<8x128xf32>
    %280 = arith.divf %278, %279 : vector<8x128xf32>
    %281 = arith.mulf %272, %254 : vector<8x128xf32>
    %282 = arith.mulf %266, %274 : vector<8x128xf32>
    %283 = arith.addf %281, %282 : vector<8x128xf32>
    %284 = math.tanh %283 : vector<8x128xf32>
    %285 = arith.mulf %280, %284 : vector<8x128xf32>
    %c0_119 = arith.constant 0 : index
    %c0_120 = arith.constant 0 : index
    %286 = vector.load %arg12[%c0_119, %c0_120] : memref<8x128xf32, #tpu.memory_space<vmem>>, vector<8x128xf32>
    tpu.vector_store %arg12[%c0_119, %c0_120], %285 {strides = array<i32>} : memref<8x128xf32, #tpu.memory_space<vmem>>, vector<8x128xf32>,
    %c0_121 = arith.constant 0 : index
    %c0_122 = arith.constant 0 : index
    %287 = vector.load %arg13[%c0_121, %c0_122] : memref<8x128xf32, #tpu.memory_space<vmem>>, vector<8x128xf32>
    tpu.vector_store %arg13[%c0_121, %c0_122], %283 {strides = array<i32>} : memref<8x128xf32, #tpu.memory_space<vmem>>, vector<8x128xf32>,
    %288 = arith.truncf %285 : vector<8x128xf32> to vector<8x128xbf16>
    %289 = arith.index_cast %c6_i32 : i32 to index
    %c0_123 = arith.constant 0 : index
    %c0_124 = arith.constant 0 : index
    %290 = vector.load %arg6[%289, %c0_123, %c0_124] : memref<8x8x128xbf16, #tpu.memory_space<vmem>>, vector<1x8x128xbf16>
    %291 = vector.shape_cast %290 : vector<1x8x128xbf16> to vector<8x128xbf16>
    %292 = vector.shape_cast %288 : vector<8x128xbf16> to vector<1x8x128xbf16>
    tpu.vector_store %arg6[%289, %c0_123, %c0_124], %292 {strides = array<i32>} : memref<8x8x128xbf16, #tpu.memory_space<vmem>>, vector<1x8x128xbf16>,
    %c7_i32 = arith.constant 7 : i32
    %c0_125 = arith.constant 0 : index
    %c0_126 = arith.constant 0 : index
    %293 = vector.load %arg12[%c0_125, %c0_126] : memref<8x128xf32, #tpu.memory_space<vmem>>, vector<8x128xf32>
    %c0_127 = arith.constant 0 : index
    %c0_128 = arith.constant 0 : index
    %294 = vector.load %arg13[%c0_127, %c0_128] : memref<8x128xf32, #tpu.memory_space<vmem>>, vector<8x128xf32>
    %295 = arith.index_cast %c7_i32 : i32 to index
    %c0_129 = arith.constant 0 : index
    %c0_130 = arith.constant 0 : index
    %296 = vector.load %arg11[%295, %c0_129, %c0_130] : memref<8x8x512xf32, #tpu.memory_space<vmem>>, vector<1x8x512xf32>
    %297 = vector.shape_cast %296 : vector<1x8x512xf32> to vector<8x512xf32>
    %298 = arith.truncf %293 : vector<8x128xf32> to vector<8x128xbf16>
    %cst_131 = arith.constant dense<0.000000e+00> : vector<8x512xf32>
    %299 = tpu.matmul %298, %12, %cst_131 {dimension_numbers = #tpu.dot_dimension_numbers<[1], [0], [0], [1], [0, 0, 1, 1], [], []>} : vector<8x128xbf16>, vector<128x512xbf16>, vector<8x512xf32> -> vector<8x512xf32>
    %300 = arith.addf %297, %299 : vector<8x512xf32>
    %301 = vector.extract_strided_slice %300 {offsets = [0, 0], sizes = [8, 128], strides = [1, 1]} : vector<8x512xf32> to vector<8x128xf32>
    %302 = arith.negf %301 : vector<8x128xf32>
    %303 = math.exp %302 : vector<8x128xf32>
    %cst_132 = arith.constant 1.000000e+00 : f32
    %304 = vector.broadcast %cst_132 : f32 to vector<8x128xf32>
    %305 = arith.addf %304, %303 : vector<8x128xf32>
    %306 = arith.divf %304, %305 : vector<8x128xf32>
    %307 = vector.extract_strided_slice %300 {offsets = [0, 128], sizes = [8, 128], strides = [1, 1]} : vector<8x512xf32> to vector<8x128xf32>
    %308 = arith.negf %307 : vector<8x128xf32>
    %309 = math.exp %308 : vector<8x128xf32>
    %cst_133 = arith.constant 1.000000e+00 : f32
    %310 = vector.broadcast %cst_133 : f32 to vector<8x128xf32>
    %311 = arith.addf %310, %309 : vector<8x128xf32>
    %312 = arith.divf %310, %311 : vector<8x128xf32>
    %313 = vector.extract_strided_slice %300 {offsets = [0, 256], sizes = [8, 128], strides = [1, 1]} : vector<8x512xf32> to vector<8x128xf32>
    %314 = math.tanh %313 : vector<8x128xf32>
    %315 = vector.extract_strided_slice %300 {offsets = [0, 384], sizes = [8, 128], strides = [1, 1]} : vector<8x512xf32> to vector<8x128xf32>
    %316 = arith.negf %315 : vector<8x128xf32>
    %317 = math.exp %316 : vector<8x128xf32>
    %cst_134 = arith.constant 1.000000e+00 : f32
    %318 = vector.broadcast %cst_134 : f32 to vector<8x128xf32>
    %319 = arith.addf %318, %317 : vector<8x128xf32>
    %320 = arith.divf %318, %319 : vector<8x128xf32>
    %321 = arith.mulf %312, %294 : vector<8x128xf32>
    %322 = arith.mulf %306, %314 : vector<8x128xf32>
    %323 = arith.addf %321, %322 : vector<8x128xf32>
    %324 = math.tanh %323 : vector<8x128xf32>
    %325 = arith.mulf %320, %324 : vector<8x128xf32>
    %c0_135 = arith.constant 0 : index
    %c0_136 = arith.constant 0 : index
    %326 = vector.load %arg12[%c0_135, %c0_136] : memref<8x128xf32, #tpu.memory_space<vmem>>, vector<8x128xf32>
    tpu.vector_store %arg12[%c0_135, %c0_136], %325 {strides = array<i32>} : memref<8x128xf32, #tpu.memory_space<vmem>>, vector<8x128xf32>,
    %c0_137 = arith.constant 0 : index
    %c0_138 = arith.constant 0 : index
    %327 = vector.load %arg13[%c0_137, %c0_138] : memref<8x128xf32, #tpu.memory_space<vmem>>, vector<8x128xf32>
    tpu.vector_store %arg13[%c0_137, %c0_138], %323 {strides = array<i32>} : memref<8x128xf32, #tpu.memory_space<vmem>>, vector<8x128xf32>,
    %328 = arith.truncf %325 : vector<8x128xf32> to vector<8x128xbf16>
    %329 = arith.index_cast %c7_i32 : i32 to index
    %c0_139 = arith.constant 0 : index
    %c0_140 = arith.constant 0 : index
    %330 = vector.load %arg6[%329, %c0_139, %c0_140] : memref<8x8x128xbf16, #tpu.memory_space<vmem>>, vector<1x8x128xbf16>
    %331 = vector.shape_cast %330 : vector<1x8x128xbf16> to vector<8x128xbf16>
    %332 = vector.shape_cast %328 : vector<8x128xbf16> to vector<1x8x128xbf16>
    tpu.vector_store %arg6[%329, %c0_139, %c0_140], %332 {strides = array<i32>} : memref<8x8x128xbf16, #tpu.memory_space<vmem>>, vector<1x8x128xbf16>,
    %c8_i32 = arith.constant 8 : i32
    %c0_i32_141 = arith.constant 0 : i32
    %333 = arith.cmpi eq, %arg1, %c0_i32_141 : i32
    %334 = arith.extui %333 : i1 to i32
    %c0_i32_142 = arith.constant 0 : i32
    %335 = arith.cmpi ne, %334, %c0_i32_142 : i32
    scf.if %335 {
      %c0_143 = arith.constant 0 : index
      %c0_144 = arith.constant 0 : index
      %336 = vector.load %arg12[%c0_143, %c0_144] : memref<8x128xf32, #tpu.memory_space<vmem>>, vector<8x128xf32>
      %c0_145 = arith.constant 0 : index
      %c0_146 = arith.constant 0 : index
      %337 = vector.load %arg7[%c0_145, %c0_146] : memref<8x128xf32, #tpu.memory_space<vmem>>, vector<8x128xf32>
      tpu.vector_store %arg7[%c0_145, %c0_146], %336 {strides = array<i32>} : memref<8x128xf32, #tpu.memory_space<vmem>>, vector<8x128xf32>,
      %c0_147 = arith.constant 0 : index
      %c0_148 = arith.constant 0 : index
      %338 = vector.load %arg13[%c0_147, %c0_148] : memref<8x128xf32, #tpu.memory_space<vmem>>, vector<8x128xf32>
      %c0_149 = arith.constant 0 : index
      %c0_150 = arith.constant 0 : index
      %339 = vector.load %arg8[%c0_149, %c0_150] : memref<8x128xf32, #tpu.memory_space<vmem>>, vector<8x128xf32>
      tpu.vector_store %arg8[%c0_149, %c0_150], %338 {strides = array<i32>} : memref<8x128xf32, #tpu.memory_space<vmem>>, vector<8x128xf32>,
    } else {
    }
    return
  }
  func.func @transform_0(%arg0: i32, %arg1: i32) -> (i32, i32, i32) {
    %c0_i32 = arith.constant 0 : i32
    %c0_i32_0 = arith.constant 0 : i32
    return %arg1, %arg0, %c0_i32 : i32, i32, i32
  }
  func.func @transform_3(%arg0: i32, %arg1: i32) -> (i32, i32) {
    %c0_i32 = arith.constant 0 : i32
    %c0_i32_0 = arith.constant 0 : i32
    %c0_i32_1 = arith.constant 0 : i32
    return %c0_i32, %c0_i32_0 : i32, i32
  }
  func.func @transform_4(%arg0: i32, %arg1: i32) -> (i32, i32, i32) {
    %c0_i32 = arith.constant 0 : i32
    %c0_i32_0 = arith.constant 0 : i32
    return %arg1, %arg0, %c0_i32 : i32, i32, i32
  }
  func.func @transform_5(%arg0: i32, %arg1: i32) -> (i32, i32) {
    %c0_i32 = arith.constant 0 : i32
    %c0_i32_0 = arith.constant 0 : i32
    return %arg0, %c0_i32 : i32, i32
  }
  func.func @transform_6(%arg0: i32, %arg1: i32) -> (i32, i32) {
    %c0_i32 = arith.constant 0 : i32
    %c0_i32_0 = arith.constant 0 : i32
    return %arg0, %c0_i32 : i32, i32
  }
}

module attributes {stable_mosaic.version = 11 : i64} {
  func.func @_lstm_layer_kernel(%arg0: i32, %arg1: i32, %arg2: memref<8x8x128xbf16, #tpu.memory_space<vmem>>, %arg3: memref<128x512xbf16, #tpu.memory_space<any>>, %arg4: memref<128x512xbf16, #tpu.memory_space<any>>, %arg5: memref<1x512xf32, #tpu.memory_space<vmem>>, %arg6: memref<8x8x128xf32, #tpu.memory_space<vmem>>, %arg7: memref<8x128xf32, #tpu.memory_space<vmem>>, %arg8: memref<8x128xf32, #tpu.memory_space<vmem>>, %arg9: memref<128x512xbf16, #tpu.memory_space<vmem>>, %arg10: memref<128x512xbf16, #tpu.memory_space<vmem>>, %arg11: memref<8x8x512xf32, #tpu.memory_space<vmem>>, %arg12: memref<8x128xf32, #tpu.memory_space<vmem>>, %arg13: memref<8x128xf32, #tpu.memory_space<vmem>>, %arg14: memref<2x!tpu.dma_semaphore, #tpu.memory_space<semaphore_mem>>) attributes {dimension_semantics = [#tpu.dimension_semantics<parallel>, #tpu.dimension_semantics<arbitrary>], iteration_bounds = array<i64: 1, 1>, scalar_prefetch = 0 : i64, scratch_operands = 6 : i64, tpu.core_type = #tpu.core_type<tc>, window_params = [{transform_indices = @transform_0, window_bounds = array<i64: 8, 8, 128>}, {}, {}, {pipeline_mode = #tpu.pipeline_mode<synchronous>, transform_indices = @transform_3, window_bounds = array<i64: 1, 512>}, {transform_indices = @transform_4, window_bounds = array<i64: 8, 8, 128>}, {transform_indices = @transform_5, window_bounds = array<i64: 8, 128>}, {transform_indices = @transform_6, window_bounds = array<i64: 8, 128>}]} {
    %c0_i32 = arith.constant 0 : i32
    %0 = arith.cmpi eq, %arg1, %c0_i32 : i32
    %1 = arith.extui %0 : i1 to i32
    %c0_i32_0 = arith.constant 0 : i32
    %2 = arith.cmpi ne, %1, %c0_i32_0 : i32
    scf.if %2 {
      %c0_i32_143 = arith.constant 0 : i32
      %328 = tpu.memref_slice %arg14[%c0_i32_143] : memref<2x!tpu.dma_semaphore, #tpu.memory_space<semaphore_mem>> -> memref<1x!tpu.dma_semaphore, #tpu.memory_space<semaphore_mem>>
      %329 = tpu.memref_squeeze %328 : memref<1x!tpu.dma_semaphore, #tpu.memory_space<semaphore_mem>> -> memref<!tpu.dma_semaphore, #tpu.memory_space<semaphore_mem>>
      tpu.enqueue_dma source(%arg3 : memref<128x512xbf16, #tpu.memory_space<any>>) target(%arg9 : memref<128x512xbf16, #tpu.memory_space<vmem>>) target_semaphore(%329 : memref<!tpu.dma_semaphore, #tpu.memory_space<semaphore_mem>>)
      %c1_i32_144 = arith.constant 1 : i32
      %330 = tpu.memref_slice %arg14[%c1_i32_144] : memref<2x!tpu.dma_semaphore, #tpu.memory_space<semaphore_mem>> -> memref<1x!tpu.dma_semaphore, #tpu.memory_space<semaphore_mem>>
      %331 = tpu.memref_squeeze %330 : memref<1x!tpu.dma_semaphore, #tpu.memory_space<semaphore_mem>> -> memref<!tpu.dma_semaphore, #tpu.memory_space<semaphore_mem>>
      tpu.enqueue_dma source(%arg4 : memref<128x512xbf16, #tpu.memory_space<any>>) target(%arg10 : memref<128x512xbf16, #tpu.memory_space<vmem>>) target_semaphore(%331 : memref<!tpu.dma_semaphore, #tpu.memory_space<semaphore_mem>>)
      %c0_i32_145 = arith.constant 0 : i32
      %332 = tpu.memref_slice %arg14[%c0_i32_145] : memref<2x!tpu.dma_semaphore, #tpu.memory_space<semaphore_mem>> -> memref<1x!tpu.dma_semaphore, #tpu.memory_space<semaphore_mem>>
      %333 = tpu.memref_squeeze %332 : memref<1x!tpu.dma_semaphore, #tpu.memory_space<semaphore_mem>> -> memref<!tpu.dma_semaphore, #tpu.memory_space<semaphore_mem>>
      tpu.wait_dma2 semaphore(%333 : memref<!tpu.dma_semaphore, #tpu.memory_space<semaphore_mem>>) src(%arg3 : memref<128x512xbf16, #tpu.memory_space<any>>) dst(%arg9 : memref<128x512xbf16, #tpu.memory_space<vmem>>)
      %c1_i32_146 = arith.constant 1 : i32
      %334 = tpu.memref_slice %arg14[%c1_i32_146] : memref<2x!tpu.dma_semaphore, #tpu.memory_space<semaphore_mem>> -> memref<1x!tpu.dma_semaphore, #tpu.memory_space<semaphore_mem>>
      %335 = tpu.memref_squeeze %334 : memref<1x!tpu.dma_semaphore, #tpu.memory_space<semaphore_mem>> -> memref<!tpu.dma_semaphore, #tpu.memory_space<semaphore_mem>>
      tpu.wait_dma2 semaphore(%335 : memref<!tpu.dma_semaphore, #tpu.memory_space<semaphore_mem>>) src(%arg4 : memref<128x512xbf16, #tpu.memory_space<any>>) dst(%arg10 : memref<128x512xbf16, #tpu.memory_space<vmem>>)
      %cst_147 = arith.constant 0.000000e+00 : f32
      %336 = vector.broadcast %cst_147 : f32 to vector<8x128xf32>
      %c0_148 = arith.constant 0 : index
      %c0_149 = arith.constant 0 : index
      %337 = vector.load %arg12[%c0_148, %c0_149] : memref<8x128xf32, #tpu.memory_space<vmem>>, vector<8x128xf32>
      tpu.vector_store %arg12[%c0_148, %c0_149], %336 {strides = array<i32>} : memref<8x128xf32, #tpu.memory_space<vmem>>, vector<8x128xf32>,
      %cst_150 = arith.constant 0.000000e+00 : f32
      %338 = vector.broadcast %cst_150 : f32 to vector<8x128xf32>
      %c0_151 = arith.constant 0 : index
      %c0_152 = arith.constant 0 : index
      %339 = vector.load %arg13[%c0_151, %c0_152] : memref<8x128xf32, #tpu.memory_space<vmem>>, vector<8x128xf32>
      tpu.vector_store %arg13[%c0_151, %c0_152], %338 {strides = array<i32>} : memref<8x128xf32, #tpu.memory_space<vmem>>, vector<8x128xf32>,
    } else {
    }
    %c0 = arith.constant 0 : index
    %c0_1 = arith.constant 0 : index
    %c0_2 = arith.constant 0 : index
    %3 = vector.load %arg2[%c0, %c0_1, %c0_2] : memref<8x8x128xbf16, #tpu.memory_space<vmem>>, vector<8x8x128xbf16>
    %4 = vector.shape_cast %3 : vector<8x8x128xbf16> to vector<64x128xbf16>
    %c0_3 = arith.constant 0 : index
    %c0_4 = arith.constant 0 : index
    %5 = vector.load %arg9[%c0_3, %c0_4] : memref<128x512xbf16, #tpu.memory_space<vmem>>, vector<128x512xbf16>
    %cst = arith.constant dense<0.000000e+00> : vector<64x512xf32>
    %6 = tpu.matmul %4, %5, %cst {dimension_numbers = #tpu.dot_dimension_numbers<[1], [0], [0], [1], [0, 0, 1, 1], [], []>} : vector<64x128xbf16>, vector<128x512xbf16>, vector<64x512xf32> -> vector<64x512xf32>
    %c0_5 = arith.constant 0 : index
    %c0_6 = arith.constant 0 : index
    %7 = vector.load %arg5[%c0_5, %c0_6] : memref<1x512xf32, #tpu.memory_space<vmem>>, vector<1x512xf32>
    %8 = vector.broadcast %7 : vector<1x512xf32> to vector<64x512xf32>
    %9 = arith.addf %6, %8 : vector<64x512xf32>
    %10 = vector.shape_cast %9 : vector<64x512xf32> to vector<8x8x512xf32>
    %c0_7 = arith.constant 0 : index
    %c0_8 = arith.constant 0 : index
    %c0_9 = arith.constant 0 : index
    %11 = vector.load %arg11[%c0_7, %c0_8, %c0_9] : memref<8x8x512xf32, #tpu.memory_space<vmem>>, vector<8x8x512xf32>
    tpu.vector_store %arg11[%c0_7, %c0_8, %c0_9], %10 {strides = array<i32>} : memref<8x8x512xf32, #tpu.memory_space<vmem>>, vector<8x8x512xf32>,
    %c0_10 = arith.constant 0 : index
    %c0_11 = arith.constant 0 : index
    %12 = vector.load %arg10[%c0_10, %c0_11] : memref<128x512xbf16, #tpu.memory_space<vmem>>, vector<128x512xbf16>
    %c0_i32_12 = arith.constant 0 : i32
    %c0_13 = arith.constant 0 : index
    %c0_14 = arith.constant 0 : index
    %13 = vector.load %arg12[%c0_13, %c0_14] : memref<8x128xf32, #tpu.memory_space<vmem>>, vector<8x128xf32>
    %c0_15 = arith.constant 0 : index
    %c0_16 = arith.constant 0 : index
    %14 = vector.load %arg13[%c0_15, %c0_16] : memref<8x128xf32, #tpu.memory_space<vmem>>, vector<8x128xf32>
    %15 = arith.index_cast %c0_i32_12 : i32 to index
    %c0_17 = arith.constant 0 : index
    %c0_18 = arith.constant 0 : index
    %16 = vector.load %arg11[%15, %c0_17, %c0_18] : memref<8x8x512xf32, #tpu.memory_space<vmem>>, vector<1x8x512xf32>
    %17 = vector.shape_cast %16 : vector<1x8x512xf32> to vector<8x512xf32>
    %18 = arith.truncf %13 : vector<8x128xf32> to vector<8x128xbf16>
    %cst_19 = arith.constant dense<0.000000e+00> : vector<8x512xf32>
    %19 = tpu.matmul %18, %12, %cst_19 {dimension_numbers = #tpu.dot_dimension_numbers<[1], [0], [0], [1], [0, 0, 1, 1], [], []>} : vector<8x128xbf16>, vector<128x512xbf16>, vector<8x512xf32> -> vector<8x512xf32>
    %20 = arith.addf %17, %19 : vector<8x512xf32>
    %21 = vector.extract_strided_slice %20 {offsets = [0, 0], sizes = [8, 128], strides = [1, 1]} : vector<8x512xf32> to vector<8x128xf32>
    %22 = arith.negf %21 : vector<8x128xf32>
    %23 = math.exp %22 : vector<8x128xf32>
    %cst_20 = arith.constant 1.000000e+00 : f32
    %24 = vector.broadcast %cst_20 : f32 to vector<8x128xf32>
    %25 = arith.addf %24, %23 : vector<8x128xf32>
    %26 = arith.divf %24, %25 : vector<8x128xf32>
    %27 = vector.extract_strided_slice %20 {offsets = [0, 128], sizes = [8, 128], strides = [1, 1]} : vector<8x512xf32> to vector<8x128xf32>
    %28 = arith.negf %27 : vector<8x128xf32>
    %29 = math.exp %28 : vector<8x128xf32>
    %cst_21 = arith.constant 1.000000e+00 : f32
    %30 = vector.broadcast %cst_21 : f32 to vector<8x128xf32>
    %31 = arith.addf %30, %29 : vector<8x128xf32>
    %32 = arith.divf %30, %31 : vector<8x128xf32>
    %33 = vector.extract_strided_slice %20 {offsets = [0, 256], sizes = [8, 128], strides = [1, 1]} : vector<8x512xf32> to vector<8x128xf32>
    %34 = math.tanh %33 : vector<8x128xf32>
    %35 = vector.extract_strided_slice %20 {offsets = [0, 384], sizes = [8, 128], strides = [1, 1]} : vector<8x512xf32> to vector<8x128xf32>
    %36 = arith.negf %35 : vector<8x128xf32>
    %37 = math.exp %36 : vector<8x128xf32>
    %cst_22 = arith.constant 1.000000e+00 : f32
    %38 = vector.broadcast %cst_22 : f32 to vector<8x128xf32>
    %39 = arith.addf %38, %37 : vector<8x128xf32>
    %40 = arith.divf %38, %39 : vector<8x128xf32>
    %41 = arith.mulf %32, %14 : vector<8x128xf32>
    %42 = arith.mulf %26, %34 : vector<8x128xf32>
    %43 = arith.addf %41, %42 : vector<8x128xf32>
    %44 = math.tanh %43 : vector<8x128xf32>
    %45 = arith.mulf %40, %44 : vector<8x128xf32>
    %c0_23 = arith.constant 0 : index
    %c0_24 = arith.constant 0 : index
    %46 = vector.load %arg12[%c0_23, %c0_24] : memref<8x128xf32, #tpu.memory_space<vmem>>, vector<8x128xf32>
    tpu.vector_store %arg12[%c0_23, %c0_24], %45 {strides = array<i32>} : memref<8x128xf32, #tpu.memory_space<vmem>>, vector<8x128xf32>,
    %c0_25 = arith.constant 0 : index
    %c0_26 = arith.constant 0 : index
    %47 = vector.load %arg13[%c0_25, %c0_26] : memref<8x128xf32, #tpu.memory_space<vmem>>, vector<8x128xf32>
    tpu.vector_store %arg13[%c0_25, %c0_26], %43 {strides = array<i32>} : memref<8x128xf32, #tpu.memory_space<vmem>>, vector<8x128xf32>,
    %48 = arith.index_cast %c0_i32_12 : i32 to index
    %c0_27 = arith.constant 0 : index
    %c0_28 = arith.constant 0 : index
    %49 = vector.load %arg6[%48, %c0_27, %c0_28] : memref<8x8x128xf32, #tpu.memory_space<vmem>>, vector<1x8x128xf32>
    %50 = vector.shape_cast %49 : vector<1x8x128xf32> to vector<8x128xf32>
    %51 = vector.shape_cast %45 : vector<8x128xf32> to vector<1x8x128xf32>
    tpu.vector_store %arg6[%48, %c0_27, %c0_28], %51 {strides = array<i32>} : memref<8x8x128xf32, #tpu.memory_space<vmem>>, vector<1x8x128xf32>,
    %c1_i32 = arith.constant 1 : i32
    %c0_29 = arith.constant 0 : index
    %c0_30 = arith.constant 0 : index
    %52 = vector.load %arg12[%c0_29, %c0_30] : memref<8x128xf32, #tpu.memory_space<vmem>>, vector<8x128xf32>
    %c0_31 = arith.constant 0 : index
    %c0_32 = arith.constant 0 : index
    %53 = vector.load %arg13[%c0_31, %c0_32] : memref<8x128xf32, #tpu.memory_space<vmem>>, vector<8x128xf32>
    %54 = arith.index_cast %c1_i32 : i32 to index
    %c0_33 = arith.constant 0 : index
    %c0_34 = arith.constant 0 : index
    %55 = vector.load %arg11[%54, %c0_33, %c0_34] : memref<8x8x512xf32, #tpu.memory_space<vmem>>, vector<1x8x512xf32>
    %56 = vector.shape_cast %55 : vector<1x8x512xf32> to vector<8x512xf32>
    %57 = arith.truncf %52 : vector<8x128xf32> to vector<8x128xbf16>
    %cst_35 = arith.constant dense<0.000000e+00> : vector<8x512xf32>
    %58 = tpu.matmul %57, %12, %cst_35 {dimension_numbers = #tpu.dot_dimension_numbers<[1], [0], [0], [1], [0, 0, 1, 1], [], []>} : vector<8x128xbf16>, vector<128x512xbf16>, vector<8x512xf32> -> vector<8x512xf32>
    %59 = arith.addf %56, %58 : vector<8x512xf32>
    %60 = vector.extract_strided_slice %59 {offsets = [0, 0], sizes = [8, 128], strides = [1, 1]} : vector<8x512xf32> to vector<8x128xf32>
    %61 = arith.negf %60 : vector<8x128xf32>
    %62 = math.exp %61 : vector<8x128xf32>
    %cst_36 = arith.constant 1.000000e+00 : f32
    %63 = vector.broadcast %cst_36 : f32 to vector<8x128xf32>
    %64 = arith.addf %63, %62 : vector<8x128xf32>
    %65 = arith.divf %63, %64 : vector<8x128xf32>
    %66 = vector.extract_strided_slice %59 {offsets = [0, 128], sizes = [8, 128], strides = [1, 1]} : vector<8x512xf32> to vector<8x128xf32>
    %67 = arith.negf %66 : vector<8x128xf32>
    %68 = math.exp %67 : vector<8x128xf32>
    %cst_37 = arith.constant 1.000000e+00 : f32
    %69 = vector.broadcast %cst_37 : f32 to vector<8x128xf32>
    %70 = arith.addf %69, %68 : vector<8x128xf32>
    %71 = arith.divf %69, %70 : vector<8x128xf32>
    %72 = vector.extract_strided_slice %59 {offsets = [0, 256], sizes = [8, 128], strides = [1, 1]} : vector<8x512xf32> to vector<8x128xf32>
    %73 = math.tanh %72 : vector<8x128xf32>
    %74 = vector.extract_strided_slice %59 {offsets = [0, 384], sizes = [8, 128], strides = [1, 1]} : vector<8x512xf32> to vector<8x128xf32>
    %75 = arith.negf %74 : vector<8x128xf32>
    %76 = math.exp %75 : vector<8x128xf32>
    %cst_38 = arith.constant 1.000000e+00 : f32
    %77 = vector.broadcast %cst_38 : f32 to vector<8x128xf32>
    %78 = arith.addf %77, %76 : vector<8x128xf32>
    %79 = arith.divf %77, %78 : vector<8x128xf32>
    %80 = arith.mulf %71, %53 : vector<8x128xf32>
    %81 = arith.mulf %65, %73 : vector<8x128xf32>
    %82 = arith.addf %80, %81 : vector<8x128xf32>
    %83 = math.tanh %82 : vector<8x128xf32>
    %84 = arith.mulf %79, %83 : vector<8x128xf32>
    %c0_39 = arith.constant 0 : index
    %c0_40 = arith.constant 0 : index
    %85 = vector.load %arg12[%c0_39, %c0_40] : memref<8x128xf32, #tpu.memory_space<vmem>>, vector<8x128xf32>
    tpu.vector_store %arg12[%c0_39, %c0_40], %84 {strides = array<i32>} : memref<8x128xf32, #tpu.memory_space<vmem>>, vector<8x128xf32>,
    %c0_41 = arith.constant 0 : index
    %c0_42 = arith.constant 0 : index
    %86 = vector.load %arg13[%c0_41, %c0_42] : memref<8x128xf32, #tpu.memory_space<vmem>>, vector<8x128xf32>
    tpu.vector_store %arg13[%c0_41, %c0_42], %82 {strides = array<i32>} : memref<8x128xf32, #tpu.memory_space<vmem>>, vector<8x128xf32>,
    %87 = arith.index_cast %c1_i32 : i32 to index
    %c0_43 = arith.constant 0 : index
    %c0_44 = arith.constant 0 : index
    %88 = vector.load %arg6[%87, %c0_43, %c0_44] : memref<8x8x128xf32, #tpu.memory_space<vmem>>, vector<1x8x128xf32>
    %89 = vector.shape_cast %88 : vector<1x8x128xf32> to vector<8x128xf32>
    %90 = vector.shape_cast %84 : vector<8x128xf32> to vector<1x8x128xf32>
    tpu.vector_store %arg6[%87, %c0_43, %c0_44], %90 {strides = array<i32>} : memref<8x8x128xf32, #tpu.memory_space<vmem>>, vector<1x8x128xf32>,
    %c2_i32 = arith.constant 2 : i32
    %c0_45 = arith.constant 0 : index
    %c0_46 = arith.constant 0 : index
    %91 = vector.load %arg12[%c0_45, %c0_46] : memref<8x128xf32, #tpu.memory_space<vmem>>, vector<8x128xf32>
    %c0_47 = arith.constant 0 : index
    %c0_48 = arith.constant 0 : index
    %92 = vector.load %arg13[%c0_47, %c0_48] : memref<8x128xf32, #tpu.memory_space<vmem>>, vector<8x128xf32>
    %93 = arith.index_cast %c2_i32 : i32 to index
    %c0_49 = arith.constant 0 : index
    %c0_50 = arith.constant 0 : index
    %94 = vector.load %arg11[%93, %c0_49, %c0_50] : memref<8x8x512xf32, #tpu.memory_space<vmem>>, vector<1x8x512xf32>
    %95 = vector.shape_cast %94 : vector<1x8x512xf32> to vector<8x512xf32>
    %96 = arith.truncf %91 : vector<8x128xf32> to vector<8x128xbf16>
    %cst_51 = arith.constant dense<0.000000e+00> : vector<8x512xf32>
    %97 = tpu.matmul %96, %12, %cst_51 {dimension_numbers = #tpu.dot_dimension_numbers<[1], [0], [0], [1], [0, 0, 1, 1], [], []>} : vector<8x128xbf16>, vector<128x512xbf16>, vector<8x512xf32> -> vector<8x512xf32>
    %98 = arith.addf %95, %97 : vector<8x512xf32>
    %99 = vector.extract_strided_slice %98 {offsets = [0, 0], sizes = [8, 128], strides = [1, 1]} : vector<8x512xf32> to vector<8x128xf32>
    %100 = arith.negf %99 : vector<8x128xf32>
    %101 = math.exp %100 : vector<8x128xf32>
    %cst_52 = arith.constant 1.000000e+00 : f32
    %102 = vector.broadcast %cst_52 : f32 to vector<8x128xf32>
    %103 = arith.addf %102, %101 : vector<8x128xf32>
    %104 = arith.divf %102, %103 : vector<8x128xf32>
    %105 = vector.extract_strided_slice %98 {offsets = [0, 128], sizes = [8, 128], strides = [1, 1]} : vector<8x512xf32> to vector<8x128xf32>
    %106 = arith.negf %105 : vector<8x128xf32>
    %107 = math.exp %106 : vector<8x128xf32>
    %cst_53 = arith.constant 1.000000e+00 : f32
    %108 = vector.broadcast %cst_53 : f32 to vector<8x128xf32>
    %109 = arith.addf %108, %107 : vector<8x128xf32>
    %110 = arith.divf %108, %109 : vector<8x128xf32>
    %111 = vector.extract_strided_slice %98 {offsets = [0, 256], sizes = [8, 128], strides = [1, 1]} : vector<8x512xf32> to vector<8x128xf32>
    %112 = math.tanh %111 : vector<8x128xf32>
    %113 = vector.extract_strided_slice %98 {offsets = [0, 384], sizes = [8, 128], strides = [1, 1]} : vector<8x512xf32> to vector<8x128xf32>
    %114 = arith.negf %113 : vector<8x128xf32>
    %115 = math.exp %114 : vector<8x128xf32>
    %cst_54 = arith.constant 1.000000e+00 : f32
    %116 = vector.broadcast %cst_54 : f32 to vector<8x128xf32>
    %117 = arith.addf %116, %115 : vector<8x128xf32>
    %118 = arith.divf %116, %117 : vector<8x128xf32>
    %119 = arith.mulf %110, %92 : vector<8x128xf32>
    %120 = arith.mulf %104, %112 : vector<8x128xf32>
    %121 = arith.addf %119, %120 : vector<8x128xf32>
    %122 = math.tanh %121 : vector<8x128xf32>
    %123 = arith.mulf %118, %122 : vector<8x128xf32>
    %c0_55 = arith.constant 0 : index
    %c0_56 = arith.constant 0 : index
    %124 = vector.load %arg12[%c0_55, %c0_56] : memref<8x128xf32, #tpu.memory_space<vmem>>, vector<8x128xf32>
    tpu.vector_store %arg12[%c0_55, %c0_56], %123 {strides = array<i32>} : memref<8x128xf32, #tpu.memory_space<vmem>>, vector<8x128xf32>,
    %c0_57 = arith.constant 0 : index
    %c0_58 = arith.constant 0 : index
    %125 = vector.load %arg13[%c0_57, %c0_58] : memref<8x128xf32, #tpu.memory_space<vmem>>, vector<8x128xf32>
    tpu.vector_store %arg13[%c0_57, %c0_58], %121 {strides = array<i32>} : memref<8x128xf32, #tpu.memory_space<vmem>>, vector<8x128xf32>,
    %126 = arith.index_cast %c2_i32 : i32 to index
    %c0_59 = arith.constant 0 : index
    %c0_60 = arith.constant 0 : index
    %127 = vector.load %arg6[%126, %c0_59, %c0_60] : memref<8x8x128xf32, #tpu.memory_space<vmem>>, vector<1x8x128xf32>
    %128 = vector.shape_cast %127 : vector<1x8x128xf32> to vector<8x128xf32>
    %129 = vector.shape_cast %123 : vector<8x128xf32> to vector<1x8x128xf32>
    tpu.vector_store %arg6[%126, %c0_59, %c0_60], %129 {strides = array<i32>} : memref<8x8x128xf32, #tpu.memory_space<vmem>>, vector<1x8x128xf32>,
    %c3_i32 = arith.constant 3 : i32
    %c0_61 = arith.constant 0 : index
    %c0_62 = arith.constant 0 : index
    %130 = vector.load %arg12[%c0_61, %c0_62] : memref<8x128xf32, #tpu.memory_space<vmem>>, vector<8x128xf32>
    %c0_63 = arith.constant 0 : index
    %c0_64 = arith.constant 0 : index
    %131 = vector.load %arg13[%c0_63, %c0_64] : memref<8x128xf32, #tpu.memory_space<vmem>>, vector<8x128xf32>
    %132 = arith.index_cast %c3_i32 : i32 to index
    %c0_65 = arith.constant 0 : index
    %c0_66 = arith.constant 0 : index
    %133 = vector.load %arg11[%132, %c0_65, %c0_66] : memref<8x8x512xf32, #tpu.memory_space<vmem>>, vector<1x8x512xf32>
    %134 = vector.shape_cast %133 : vector<1x8x512xf32> to vector<8x512xf32>
    %135 = arith.truncf %130 : vector<8x128xf32> to vector<8x128xbf16>
    %cst_67 = arith.constant dense<0.000000e+00> : vector<8x512xf32>
    %136 = tpu.matmul %135, %12, %cst_67 {dimension_numbers = #tpu.dot_dimension_numbers<[1], [0], [0], [1], [0, 0, 1, 1], [], []>} : vector<8x128xbf16>, vector<128x512xbf16>, vector<8x512xf32> -> vector<8x512xf32>
    %137 = arith.addf %134, %136 : vector<8x512xf32>
    %138 = vector.extract_strided_slice %137 {offsets = [0, 0], sizes = [8, 128], strides = [1, 1]} : vector<8x512xf32> to vector<8x128xf32>
    %139 = arith.negf %138 : vector<8x128xf32>
    %140 = math.exp %139 : vector<8x128xf32>
    %cst_68 = arith.constant 1.000000e+00 : f32
    %141 = vector.broadcast %cst_68 : f32 to vector<8x128xf32>
    %142 = arith.addf %141, %140 : vector<8x128xf32>
    %143 = arith.divf %141, %142 : vector<8x128xf32>
    %144 = vector.extract_strided_slice %137 {offsets = [0, 128], sizes = [8, 128], strides = [1, 1]} : vector<8x512xf32> to vector<8x128xf32>
    %145 = arith.negf %144 : vector<8x128xf32>
    %146 = math.exp %145 : vector<8x128xf32>
    %cst_69 = arith.constant 1.000000e+00 : f32
    %147 = vector.broadcast %cst_69 : f32 to vector<8x128xf32>
    %148 = arith.addf %147, %146 : vector<8x128xf32>
    %149 = arith.divf %147, %148 : vector<8x128xf32>
    %150 = vector.extract_strided_slice %137 {offsets = [0, 256], sizes = [8, 128], strides = [1, 1]} : vector<8x512xf32> to vector<8x128xf32>
    %151 = math.tanh %150 : vector<8x128xf32>
    %152 = vector.extract_strided_slice %137 {offsets = [0, 384], sizes = [8, 128], strides = [1, 1]} : vector<8x512xf32> to vector<8x128xf32>
    %153 = arith.negf %152 : vector<8x128xf32>
    %154 = math.exp %153 : vector<8x128xf32>
    %cst_70 = arith.constant 1.000000e+00 : f32
    %155 = vector.broadcast %cst_70 : f32 to vector<8x128xf32>
    %156 = arith.addf %155, %154 : vector<8x128xf32>
    %157 = arith.divf %155, %156 : vector<8x128xf32>
    %158 = arith.mulf %149, %131 : vector<8x128xf32>
    %159 = arith.mulf %143, %151 : vector<8x128xf32>
    %160 = arith.addf %158, %159 : vector<8x128xf32>
    %161 = math.tanh %160 : vector<8x128xf32>
    %162 = arith.mulf %157, %161 : vector<8x128xf32>
    %c0_71 = arith.constant 0 : index
    %c0_72 = arith.constant 0 : index
    %163 = vector.load %arg12[%c0_71, %c0_72] : memref<8x128xf32, #tpu.memory_space<vmem>>, vector<8x128xf32>
    tpu.vector_store %arg12[%c0_71, %c0_72], %162 {strides = array<i32>} : memref<8x128xf32, #tpu.memory_space<vmem>>, vector<8x128xf32>,
    %c0_73 = arith.constant 0 : index
    %c0_74 = arith.constant 0 : index
    %164 = vector.load %arg13[%c0_73, %c0_74] : memref<8x128xf32, #tpu.memory_space<vmem>>, vector<8x128xf32>
    tpu.vector_store %arg13[%c0_73, %c0_74], %160 {strides = array<i32>} : memref<8x128xf32, #tpu.memory_space<vmem>>, vector<8x128xf32>,
    %165 = arith.index_cast %c3_i32 : i32 to index
    %c0_75 = arith.constant 0 : index
    %c0_76 = arith.constant 0 : index
    %166 = vector.load %arg6[%165, %c0_75, %c0_76] : memref<8x8x128xf32, #tpu.memory_space<vmem>>, vector<1x8x128xf32>
    %167 = vector.shape_cast %166 : vector<1x8x128xf32> to vector<8x128xf32>
    %168 = vector.shape_cast %162 : vector<8x128xf32> to vector<1x8x128xf32>
    tpu.vector_store %arg6[%165, %c0_75, %c0_76], %168 {strides = array<i32>} : memref<8x8x128xf32, #tpu.memory_space<vmem>>, vector<1x8x128xf32>,
    %c4_i32 = arith.constant 4 : i32
    %c0_77 = arith.constant 0 : index
    %c0_78 = arith.constant 0 : index
    %169 = vector.load %arg12[%c0_77, %c0_78] : memref<8x128xf32, #tpu.memory_space<vmem>>, vector<8x128xf32>
    %c0_79 = arith.constant 0 : index
    %c0_80 = arith.constant 0 : index
    %170 = vector.load %arg13[%c0_79, %c0_80] : memref<8x128xf32, #tpu.memory_space<vmem>>, vector<8x128xf32>
    %171 = arith.index_cast %c4_i32 : i32 to index
    %c0_81 = arith.constant 0 : index
    %c0_82 = arith.constant 0 : index
    %172 = vector.load %arg11[%171, %c0_81, %c0_82] : memref<8x8x512xf32, #tpu.memory_space<vmem>>, vector<1x8x512xf32>
    %173 = vector.shape_cast %172 : vector<1x8x512xf32> to vector<8x512xf32>
    %174 = arith.truncf %169 : vector<8x128xf32> to vector<8x128xbf16>
    %cst_83 = arith.constant dense<0.000000e+00> : vector<8x512xf32>
    %175 = tpu.matmul %174, %12, %cst_83 {dimension_numbers = #tpu.dot_dimension_numbers<[1], [0], [0], [1], [0, 0, 1, 1], [], []>} : vector<8x128xbf16>, vector<128x512xbf16>, vector<8x512xf32> -> vector<8x512xf32>
    %176 = arith.addf %173, %175 : vector<8x512xf32>
    %177 = vector.extract_strided_slice %176 {offsets = [0, 0], sizes = [8, 128], strides = [1, 1]} : vector<8x512xf32> to vector<8x128xf32>
    %178 = arith.negf %177 : vector<8x128xf32>
    %179 = math.exp %178 : vector<8x128xf32>
    %cst_84 = arith.constant 1.000000e+00 : f32
    %180 = vector.broadcast %cst_84 : f32 to vector<8x128xf32>
    %181 = arith.addf %180, %179 : vector<8x128xf32>
    %182 = arith.divf %180, %181 : vector<8x128xf32>
    %183 = vector.extract_strided_slice %176 {offsets = [0, 128], sizes = [8, 128], strides = [1, 1]} : vector<8x512xf32> to vector<8x128xf32>
    %184 = arith.negf %183 : vector<8x128xf32>
    %185 = math.exp %184 : vector<8x128xf32>
    %cst_85 = arith.constant 1.000000e+00 : f32
    %186 = vector.broadcast %cst_85 : f32 to vector<8x128xf32>
    %187 = arith.addf %186, %185 : vector<8x128xf32>
    %188 = arith.divf %186, %187 : vector<8x128xf32>
    %189 = vector.extract_strided_slice %176 {offsets = [0, 256], sizes = [8, 128], strides = [1, 1]} : vector<8x512xf32> to vector<8x128xf32>
    %190 = math.tanh %189 : vector<8x128xf32>
    %191 = vector.extract_strided_slice %176 {offsets = [0, 384], sizes = [8, 128], strides = [1, 1]} : vector<8x512xf32> to vector<8x128xf32>
    %192 = arith.negf %191 : vector<8x128xf32>
    %193 = math.exp %192 : vector<8x128xf32>
    %cst_86 = arith.constant 1.000000e+00 : f32
    %194 = vector.broadcast %cst_86 : f32 to vector<8x128xf32>
    %195 = arith.addf %194, %193 : vector<8x128xf32>
    %196 = arith.divf %194, %195 : vector<8x128xf32>
    %197 = arith.mulf %188, %170 : vector<8x128xf32>
    %198 = arith.mulf %182, %190 : vector<8x128xf32>
    %199 = arith.addf %197, %198 : vector<8x128xf32>
    %200 = math.tanh %199 : vector<8x128xf32>
    %201 = arith.mulf %196, %200 : vector<8x128xf32>
    %c0_87 = arith.constant 0 : index
    %c0_88 = arith.constant 0 : index
    %202 = vector.load %arg12[%c0_87, %c0_88] : memref<8x128xf32, #tpu.memory_space<vmem>>, vector<8x128xf32>
    tpu.vector_store %arg12[%c0_87, %c0_88], %201 {strides = array<i32>} : memref<8x128xf32, #tpu.memory_space<vmem>>, vector<8x128xf32>,
    %c0_89 = arith.constant 0 : index
    %c0_90 = arith.constant 0 : index
    %203 = vector.load %arg13[%c0_89, %c0_90] : memref<8x128xf32, #tpu.memory_space<vmem>>, vector<8x128xf32>
    tpu.vector_store %arg13[%c0_89, %c0_90], %199 {strides = array<i32>} : memref<8x128xf32, #tpu.memory_space<vmem>>, vector<8x128xf32>,
    %204 = arith.index_cast %c4_i32 : i32 to index
    %c0_91 = arith.constant 0 : index
    %c0_92 = arith.constant 0 : index
    %205 = vector.load %arg6[%204, %c0_91, %c0_92] : memref<8x8x128xf32, #tpu.memory_space<vmem>>, vector<1x8x128xf32>
    %206 = vector.shape_cast %205 : vector<1x8x128xf32> to vector<8x128xf32>
    %207 = vector.shape_cast %201 : vector<8x128xf32> to vector<1x8x128xf32>
    tpu.vector_store %arg6[%204, %c0_91, %c0_92], %207 {strides = array<i32>} : memref<8x8x128xf32, #tpu.memory_space<vmem>>, vector<1x8x128xf32>,
    %c5_i32 = arith.constant 5 : i32
    %c0_93 = arith.constant 0 : index
    %c0_94 = arith.constant 0 : index
    %208 = vector.load %arg12[%c0_93, %c0_94] : memref<8x128xf32, #tpu.memory_space<vmem>>, vector<8x128xf32>
    %c0_95 = arith.constant 0 : index
    %c0_96 = arith.constant 0 : index
    %209 = vector.load %arg13[%c0_95, %c0_96] : memref<8x128xf32, #tpu.memory_space<vmem>>, vector<8x128xf32>
    %210 = arith.index_cast %c5_i32 : i32 to index
    %c0_97 = arith.constant 0 : index
    %c0_98 = arith.constant 0 : index
    %211 = vector.load %arg11[%210, %c0_97, %c0_98] : memref<8x8x512xf32, #tpu.memory_space<vmem>>, vector<1x8x512xf32>
    %212 = vector.shape_cast %211 : vector<1x8x512xf32> to vector<8x512xf32>
    %213 = arith.truncf %208 : vector<8x128xf32> to vector<8x128xbf16>
    %cst_99 = arith.constant dense<0.000000e+00> : vector<8x512xf32>
    %214 = tpu.matmul %213, %12, %cst_99 {dimension_numbers = #tpu.dot_dimension_numbers<[1], [0], [0], [1], [0, 0, 1, 1], [], []>} : vector<8x128xbf16>, vector<128x512xbf16>, vector<8x512xf32> -> vector<8x512xf32>
    %215 = arith.addf %212, %214 : vector<8x512xf32>
    %216 = vector.extract_strided_slice %215 {offsets = [0, 0], sizes = [8, 128], strides = [1, 1]} : vector<8x512xf32> to vector<8x128xf32>
    %217 = arith.negf %216 : vector<8x128xf32>
    %218 = math.exp %217 : vector<8x128xf32>
    %cst_100 = arith.constant 1.000000e+00 : f32
    %219 = vector.broadcast %cst_100 : f32 to vector<8x128xf32>
    %220 = arith.addf %219, %218 : vector<8x128xf32>
    %221 = arith.divf %219, %220 : vector<8x128xf32>
    %222 = vector.extract_strided_slice %215 {offsets = [0, 128], sizes = [8, 128], strides = [1, 1]} : vector<8x512xf32> to vector<8x128xf32>
    %223 = arith.negf %222 : vector<8x128xf32>
    %224 = math.exp %223 : vector<8x128xf32>
    %cst_101 = arith.constant 1.000000e+00 : f32
    %225 = vector.broadcast %cst_101 : f32 to vector<8x128xf32>
    %226 = arith.addf %225, %224 : vector<8x128xf32>
    %227 = arith.divf %225, %226 : vector<8x128xf32>
    %228 = vector.extract_strided_slice %215 {offsets = [0, 256], sizes = [8, 128], strides = [1, 1]} : vector<8x512xf32> to vector<8x128xf32>
    %229 = math.tanh %228 : vector<8x128xf32>
    %230 = vector.extract_strided_slice %215 {offsets = [0, 384], sizes = [8, 128], strides = [1, 1]} : vector<8x512xf32> to vector<8x128xf32>
    %231 = arith.negf %230 : vector<8x128xf32>
    %232 = math.exp %231 : vector<8x128xf32>
    %cst_102 = arith.constant 1.000000e+00 : f32
    %233 = vector.broadcast %cst_102 : f32 to vector<8x128xf32>
    %234 = arith.addf %233, %232 : vector<8x128xf32>
    %235 = arith.divf %233, %234 : vector<8x128xf32>
    %236 = arith.mulf %227, %209 : vector<8x128xf32>
    %237 = arith.mulf %221, %229 : vector<8x128xf32>
    %238 = arith.addf %236, %237 : vector<8x128xf32>
    %239 = math.tanh %238 : vector<8x128xf32>
    %240 = arith.mulf %235, %239 : vector<8x128xf32>
    %c0_103 = arith.constant 0 : index
    %c0_104 = arith.constant 0 : index
    %241 = vector.load %arg12[%c0_103, %c0_104] : memref<8x128xf32, #tpu.memory_space<vmem>>, vector<8x128xf32>
    tpu.vector_store %arg12[%c0_103, %c0_104], %240 {strides = array<i32>} : memref<8x128xf32, #tpu.memory_space<vmem>>, vector<8x128xf32>,
    %c0_105 = arith.constant 0 : index
    %c0_106 = arith.constant 0 : index
    %242 = vector.load %arg13[%c0_105, %c0_106] : memref<8x128xf32, #tpu.memory_space<vmem>>, vector<8x128xf32>
    tpu.vector_store %arg13[%c0_105, %c0_106], %238 {strides = array<i32>} : memref<8x128xf32, #tpu.memory_space<vmem>>, vector<8x128xf32>,
    %243 = arith.index_cast %c5_i32 : i32 to index
    %c0_107 = arith.constant 0 : index
    %c0_108 = arith.constant 0 : index
    %244 = vector.load %arg6[%243, %c0_107, %c0_108] : memref<8x8x128xf32, #tpu.memory_space<vmem>>, vector<1x8x128xf32>
    %245 = vector.shape_cast %244 : vector<1x8x128xf32> to vector<8x128xf32>
    %246 = vector.shape_cast %240 : vector<8x128xf32> to vector<1x8x128xf32>
    tpu.vector_store %arg6[%243, %c0_107, %c0_108], %246 {strides = array<i32>} : memref<8x8x128xf32, #tpu.memory_space<vmem>>, vector<1x8x128xf32>,
    %c6_i32 = arith.constant 6 : i32
    %c0_109 = arith.constant 0 : index
    %c0_110 = arith.constant 0 : index
    %247 = vector.load %arg12[%c0_109, %c0_110] : memref<8x128xf32, #tpu.memory_space<vmem>>, vector<8x128xf32>
    %c0_111 = arith.constant 0 : index
    %c0_112 = arith.constant 0 : index
    %248 = vector.load %arg13[%c0_111, %c0_112] : memref<8x128xf32, #tpu.memory_space<vmem>>, vector<8x128xf32>
    %249 = arith.index_cast %c6_i32 : i32 to index
    %c0_113 = arith.constant 0 : index
    %c0_114 = arith.constant 0 : index
    %250 = vector.load %arg11[%249, %c0_113, %c0_114] : memref<8x8x512xf32, #tpu.memory_space<vmem>>, vector<1x8x512xf32>
    %251 = vector.shape_cast %250 : vector<1x8x512xf32> to vector<8x512xf32>
    %252 = arith.truncf %247 : vector<8x128xf32> to vector<8x128xbf16>
    %cst_115 = arith.constant dense<0.000000e+00> : vector<8x512xf32>
    %253 = tpu.matmul %252, %12, %cst_115 {dimension_numbers = #tpu.dot_dimension_numbers<[1], [0], [0], [1], [0, 0, 1, 1], [], []>} : vector<8x128xbf16>, vector<128x512xbf16>, vector<8x512xf32> -> vector<8x512xf32>
    %254 = arith.addf %251, %253 : vector<8x512xf32>
    %255 = vector.extract_strided_slice %254 {offsets = [0, 0], sizes = [8, 128], strides = [1, 1]} : vector<8x512xf32> to vector<8x128xf32>
    %256 = arith.negf %255 : vector<8x128xf32>
    %257 = math.exp %256 : vector<8x128xf32>
    %cst_116 = arith.constant 1.000000e+00 : f32
    %258 = vector.broadcast %cst_116 : f32 to vector<8x128xf32>
    %259 = arith.addf %258, %257 : vector<8x128xf32>
    %260 = arith.divf %258, %259 : vector<8x128xf32>
    %261 = vector.extract_strided_slice %254 {offsets = [0, 128], sizes = [8, 128], strides = [1, 1]} : vector<8x512xf32> to vector<8x128xf32>
    %262 = arith.negf %261 : vector<8x128xf32>
    %263 = math.exp %262 : vector<8x128xf32>
    %cst_117 = arith.constant 1.000000e+00 : f32
    %264 = vector.broadcast %cst_117 : f32 to vector<8x128xf32>
    %265 = arith.addf %264, %263 : vector<8x128xf32>
    %266 = arith.divf %264, %265 : vector<8x128xf32>
    %267 = vector.extract_strided_slice %254 {offsets = [0, 256], sizes = [8, 128], strides = [1, 1]} : vector<8x512xf32> to vector<8x128xf32>
    %268 = math.tanh %267 : vector<8x128xf32>
    %269 = vector.extract_strided_slice %254 {offsets = [0, 384], sizes = [8, 128], strides = [1, 1]} : vector<8x512xf32> to vector<8x128xf32>
    %270 = arith.negf %269 : vector<8x128xf32>
    %271 = math.exp %270 : vector<8x128xf32>
    %cst_118 = arith.constant 1.000000e+00 : f32
    %272 = vector.broadcast %cst_118 : f32 to vector<8x128xf32>
    %273 = arith.addf %272, %271 : vector<8x128xf32>
    %274 = arith.divf %272, %273 : vector<8x128xf32>
    %275 = arith.mulf %266, %248 : vector<8x128xf32>
    %276 = arith.mulf %260, %268 : vector<8x128xf32>
    %277 = arith.addf %275, %276 : vector<8x128xf32>
    %278 = math.tanh %277 : vector<8x128xf32>
    %279 = arith.mulf %274, %278 : vector<8x128xf32>
    %c0_119 = arith.constant 0 : index
    %c0_120 = arith.constant 0 : index
    %280 = vector.load %arg12[%c0_119, %c0_120] : memref<8x128xf32, #tpu.memory_space<vmem>>, vector<8x128xf32>
    tpu.vector_store %arg12[%c0_119, %c0_120], %279 {strides = array<i32>} : memref<8x128xf32, #tpu.memory_space<vmem>>, vector<8x128xf32>,
    %c0_121 = arith.constant 0 : index
    %c0_122 = arith.constant 0 : index
    %281 = vector.load %arg13[%c0_121, %c0_122] : memref<8x128xf32, #tpu.memory_space<vmem>>, vector<8x128xf32>
    tpu.vector_store %arg13[%c0_121, %c0_122], %277 {strides = array<i32>} : memref<8x128xf32, #tpu.memory_space<vmem>>, vector<8x128xf32>,
    %282 = arith.index_cast %c6_i32 : i32 to index
    %c0_123 = arith.constant 0 : index
    %c0_124 = arith.constant 0 : index
    %283 = vector.load %arg6[%282, %c0_123, %c0_124] : memref<8x8x128xf32, #tpu.memory_space<vmem>>, vector<1x8x128xf32>
    %284 = vector.shape_cast %283 : vector<1x8x128xf32> to vector<8x128xf32>
    %285 = vector.shape_cast %279 : vector<8x128xf32> to vector<1x8x128xf32>
    tpu.vector_store %arg6[%282, %c0_123, %c0_124], %285 {strides = array<i32>} : memref<8x8x128xf32, #tpu.memory_space<vmem>>, vector<1x8x128xf32>,
    %c7_i32 = arith.constant 7 : i32
    %c0_125 = arith.constant 0 : index
    %c0_126 = arith.constant 0 : index
    %286 = vector.load %arg12[%c0_125, %c0_126] : memref<8x128xf32, #tpu.memory_space<vmem>>, vector<8x128xf32>
    %c0_127 = arith.constant 0 : index
    %c0_128 = arith.constant 0 : index
    %287 = vector.load %arg13[%c0_127, %c0_128] : memref<8x128xf32, #tpu.memory_space<vmem>>, vector<8x128xf32>
    %288 = arith.index_cast %c7_i32 : i32 to index
    %c0_129 = arith.constant 0 : index
    %c0_130 = arith.constant 0 : index
    %289 = vector.load %arg11[%288, %c0_129, %c0_130] : memref<8x8x512xf32, #tpu.memory_space<vmem>>, vector<1x8x512xf32>
    %290 = vector.shape_cast %289 : vector<1x8x512xf32> to vector<8x512xf32>
    %291 = arith.truncf %286 : vector<8x128xf32> to vector<8x128xbf16>
    %cst_131 = arith.constant dense<0.000000e+00> : vector<8x512xf32>
    %292 = tpu.matmul %291, %12, %cst_131 {dimension_numbers = #tpu.dot_dimension_numbers<[1], [0], [0], [1], [0, 0, 1, 1], [], []>} : vector<8x128xbf16>, vector<128x512xbf16>, vector<8x512xf32> -> vector<8x512xf32>
    %293 = arith.addf %290, %292 : vector<8x512xf32>
    %294 = vector.extract_strided_slice %293 {offsets = [0, 0], sizes = [8, 128], strides = [1, 1]} : vector<8x512xf32> to vector<8x128xf32>
    %295 = arith.negf %294 : vector<8x128xf32>
    %296 = math.exp %295 : vector<8x128xf32>
    %cst_132 = arith.constant 1.000000e+00 : f32
    %297 = vector.broadcast %cst_132 : f32 to vector<8x128xf32>
    %298 = arith.addf %297, %296 : vector<8x128xf32>
    %299 = arith.divf %297, %298 : vector<8x128xf32>
    %300 = vector.extract_strided_slice %293 {offsets = [0, 128], sizes = [8, 128], strides = [1, 1]} : vector<8x512xf32> to vector<8x128xf32>
    %301 = arith.negf %300 : vector<8x128xf32>
    %302 = math.exp %301 : vector<8x128xf32>
    %cst_133 = arith.constant 1.000000e+00 : f32
    %303 = vector.broadcast %cst_133 : f32 to vector<8x128xf32>
    %304 = arith.addf %303, %302 : vector<8x128xf32>
    %305 = arith.divf %303, %304 : vector<8x128xf32>
    %306 = vector.extract_strided_slice %293 {offsets = [0, 256], sizes = [8, 128], strides = [1, 1]} : vector<8x512xf32> to vector<8x128xf32>
    %307 = math.tanh %306 : vector<8x128xf32>
    %308 = vector.extract_strided_slice %293 {offsets = [0, 384], sizes = [8, 128], strides = [1, 1]} : vector<8x512xf32> to vector<8x128xf32>
    %309 = arith.negf %308 : vector<8x128xf32>
    %310 = math.exp %309 : vector<8x128xf32>
    %cst_134 = arith.constant 1.000000e+00 : f32
    %311 = vector.broadcast %cst_134 : f32 to vector<8x128xf32>
    %312 = arith.addf %311, %310 : vector<8x128xf32>
    %313 = arith.divf %311, %312 : vector<8x128xf32>
    %314 = arith.mulf %305, %287 : vector<8x128xf32>
    %315 = arith.mulf %299, %307 : vector<8x128xf32>
    %316 = arith.addf %314, %315 : vector<8x128xf32>
    %317 = math.tanh %316 : vector<8x128xf32>
    %318 = arith.mulf %313, %317 : vector<8x128xf32>
    %c0_135 = arith.constant 0 : index
    %c0_136 = arith.constant 0 : index
    %319 = vector.load %arg12[%c0_135, %c0_136] : memref<8x128xf32, #tpu.memory_space<vmem>>, vector<8x128xf32>
    tpu.vector_store %arg12[%c0_135, %c0_136], %318 {strides = array<i32>} : memref<8x128xf32, #tpu.memory_space<vmem>>, vector<8x128xf32>,
    %c0_137 = arith.constant 0 : index
    %c0_138 = arith.constant 0 : index
    %320 = vector.load %arg13[%c0_137, %c0_138] : memref<8x128xf32, #tpu.memory_space<vmem>>, vector<8x128xf32>
    tpu.vector_store %arg13[%c0_137, %c0_138], %316 {strides = array<i32>} : memref<8x128xf32, #tpu.memory_space<vmem>>, vector<8x128xf32>,
    %321 = arith.index_cast %c7_i32 : i32 to index
    %c0_139 = arith.constant 0 : index
    %c0_140 = arith.constant 0 : index
    %322 = vector.load %arg6[%321, %c0_139, %c0_140] : memref<8x8x128xf32, #tpu.memory_space<vmem>>, vector<1x8x128xf32>
    %323 = vector.shape_cast %322 : vector<1x8x128xf32> to vector<8x128xf32>
    %324 = vector.shape_cast %318 : vector<8x128xf32> to vector<1x8x128xf32>
    tpu.vector_store %arg6[%321, %c0_139, %c0_140], %324 {strides = array<i32>} : memref<8x8x128xf32, #tpu.memory_space<vmem>>, vector<1x8x128xf32>,
    %c8_i32 = arith.constant 8 : i32
    %c0_i32_141 = arith.constant 0 : i32
    %325 = arith.cmpi eq, %arg1, %c0_i32_141 : i32
    %326 = arith.extui %325 : i1 to i32
    %c0_i32_142 = arith.constant 0 : i32
    %327 = arith.cmpi ne, %326, %c0_i32_142 : i32
    scf.if %327 {
      %c0_143 = arith.constant 0 : index
      %c0_144 = arith.constant 0 : index
      %328 = vector.load %arg12[%c0_143, %c0_144] : memref<8x128xf32, #tpu.memory_space<vmem>>, vector<8x128xf32>
      %c0_145 = arith.constant 0 : index
      %c0_146 = arith.constant 0 : index
      %329 = vector.load %arg7[%c0_145, %c0_146] : memref<8x128xf32, #tpu.memory_space<vmem>>, vector<8x128xf32>
      tpu.vector_store %arg7[%c0_145, %c0_146], %328 {strides = array<i32>} : memref<8x128xf32, #tpu.memory_space<vmem>>, vector<8x128xf32>,
      %c0_147 = arith.constant 0 : index
      %c0_148 = arith.constant 0 : index
      %330 = vector.load %arg13[%c0_147, %c0_148] : memref<8x128xf32, #tpu.memory_space<vmem>>, vector<8x128xf32>
      %c0_149 = arith.constant 0 : index
      %c0_150 = arith.constant 0 : index
      %331 = vector.load %arg8[%c0_149, %c0_150] : memref<8x128xf32, #tpu.memory_space<vmem>>, vector<8x128xf32>
      tpu.vector_store %arg8[%c0_149, %c0_150], %330 {strides = array<i32>} : memref<8x128xf32, #tpu.memory_space<vmem>>, vector<8x128xf32>,
    } else {
    }
    return
  }
  func.func @transform_0(%arg0: i32, %arg1: i32) -> (i32, i32, i32) {
    %c0_i32 = arith.constant 0 : i32
    %c0_i32_0 = arith.constant 0 : i32
    return %arg1, %arg0, %c0_i32 : i32, i32, i32
  }
  func.func @transform_3(%arg0: i32, %arg1: i32) -> (i32, i32) {
    %c0_i32 = arith.constant 0 : i32
    %c0_i32_0 = arith.constant 0 : i32
    %c0_i32_1 = arith.constant 0 : i32
    return %c0_i32, %c0_i32_0 : i32, i32
  }
  func.func @transform_4(%arg0: i32, %arg1: i32) -> (i32, i32, i32) {
    %c0_i32 = arith.constant 0 : i32
    %c0_i32_0 = arith.constant 0 : i32
    return %arg1, %arg0, %c0_i32 : i32, i32, i32
  }
  func.func @transform_5(%arg0: i32, %arg1: i32) -> (i32, i32) {
    %c0_i32 = arith.constant 0 : i32
    %c0_i32_0 = arith.constant 0 : i32
    return %arg0, %c0_i32 : i32, i32
  }
  func.func @transform_6(%arg0: i32, %arg1: i32) -> (i32, i32) {
    %c0_i32 = arith.constant 0 : i32
    %c0_i32_0 = arith.constant 0 : i32
    return %arg0, %c0_i32 : i32, i32
  }
}

</mosaic_0001>

<llo_original>
// kernel: encoder_lstm_forward.2
$region0: #{encoder_lstm_forward.2}
  #allocation0 [shape = 'u32[]', space=smem, size = 0x4, offset = 0x4, fixed_abs, tag = 'smem constant byte address 0x4 - core index']
  #allocation1 [shape = 'u32[72,128]{1,0:T(1,128)}', space=vmem, size = 0x9000, scoped, tag = 'internal scratch']
  #allocation2 [shape = 'bf16[16,512]{1,0:T(8,128)(2,1)}', space=vmem, size = 0x4000, scoped, tag = 'scratch operand']
  #allocation3 [shape = 'bf16[128,512]{1,0:T(8,128)(2,1)}', space=vmem, size = 0x20000, scoped, tag = 'scratch operand']
  #allocation4 [shape = 'f32[8,8,512]{2,1,0:T(8,128)}', space=vmem, size = 0x20000, scoped, tag = 'scratch operand']
  #allocation5 [shape = 'f32[8,128]{1,0:T(8,128)}', space=vmem, size = 0x1000, scoped, tag = 'scratch operand']
  #allocation6 [shape = 'f32[8,128]{1,0:T(8,128)}', space=vmem, size = 0x1000, scoped, tag = 'scratch operand']
  #allocation7 [shape = 's32[2]{0}', space=sflag, size = 0x8, scoped, tag = 'scratch operand']
  #allocation8 [shape = 's32[]', space=sflag, size = 0x4, offset = 0, fixed_abs, tag = 'sflag constant byte address 0x0 - dummy sync flag']
  #allocation9 [shape = 's32[]', space=sflag, size = 0x4, offset = 0, fixed_abs, tag = 'sflag constant byte address 0x0 - dummy sync flag']
  #allocation10 [shape = 's32[]', space=sflag, size = 0x4, offset = 0, fixed_abs, tag = 'sflag constant byte address 0x0 - dummy sync flag']
  #allocation11 [shape = 'u32[]', space=smem, size = 0x4, offset = 0x44, fixed_abs, tag = 'smem constant byte address 0x44 - assertion arg 0']
  #allocation12 [shape = 'u32[]', space=smem, size = 0x4, offset = 0x48, fixed_abs, tag = 'smem constant byte address 0x48 - assertion arg 1']
  %s0 = inlined_call_operand.vmem [shape: bf16[8,8,16], index: 0, kind: input, shape index: {}]
  %s1 = inlined_call_operand.vmem [shape: bf16[16,512], index: 1, kind: input, shape index: {}]
  %s2 = inlined_call_operand.hbm [shape: bf16[128,512], index: 2, kind: input, shape index: {}]
  %s3 = inlined_call_operand.vmem [shape: f32[1,512], index: 3, kind: input, shape index: {}]
  %s4 = inlined_call_operand.vmem [shape: bf16[8,8,128], index: 4, kind: output, shape index: {0}]
  %s5 = inlined_call_operand.vmem [shape: f32[8,128], index: 5, kind: output, shape index: {1}]
  %s6 = inlined_call_operand.vmem [shape: f32[8,128], index: 6, kind: output, shape index: {2}]
  %7 = xla_tuple %s4, %s5, %s6
  %s8 = sld [smem:[#allocation0]]
  $region65: #{encoder_lstm_forward.2} parent=0
    _
  %s10 = ssub.s32 1, %s8
  %s11 = scalar_select 0, %s10, %s8
  // Predicated region
  $region2: #{encoder_lstm_forward.2} parent=0 // pred_check
    _
  $region3: #{encoder_lstm_forward.2} parent=0 // pred_check_branch
    %13 = sbr.rel (0) target = $region5
  $region4: #{encoder_lstm_forward.2} parent=0 // pred_region
    _
  $region5: #{encoder_lstm_forward.2} parent=0 // pred_fallthru
    _
  // Predicated region
  $region6: #{encoder_lstm_forward.2} parent=0 // pred_check
    _
  $region7: #{encoder_lstm_forward.2} parent=0 // pred_check_branch
    %15 = sbr.rel (0) target = $region9
  $region8: #{encoder_lstm_forward.2} parent=0 // pred_region
    _
  $region9: #{encoder_lstm_forward.2} parent=0 // pred_fallthru
    _
  %p17 = scmp.eq.s32.totalorder 0, 0
  // Predicated region
  $region10: #{encoder_lstm_forward.2} parent=0 // pred_check
    %p18 = pneg %p17
  $region11: #{encoder_lstm_forward.2} parent=0 // pred_check_branch
    %20 = sbr.rel (%p18) target = $region13
  $region12: #{encoder_lstm_forward.2} parent=0 // pred_region
    // Predicated region
    $region14: #{encoder_lstm_forward.2} parent=12 // pred_check
      _
    $region15: #{encoder_lstm_forward.2} parent=12 // pred_check_branch
      %22 = sbr.rel (0) target = $region17
    $region16: #{encoder_lstm_forward.2} parent=12 // pred_region
      loop: start=0, step=1, limit=1
      $region18: #{encoder_lstm_forward.2} parent=16 // loop_pre_header
        _
      $region19: #{encoder_lstm_forward.2} parent=16 // loop_header
        %s24 = sphi 0, %s28
        %p25 = scmp.ge.s32.totalorder %s24, 1
        %s29 = sphi %s1, %s1
        %s30 = sphi [#allocation2], [#allocation2]
      $region20: #{encoder_lstm_forward.2} parent=16 // loop_header_branch
        %27 = sbr.rel (%p25) target = $region24
      $region21: #{encoder_lstm_forward.2} parent=16 // loop_body
        %v31 = vld [vmem:[%s29] sm:$0xff]
        %32 = vst [vmem:[%s30] sm:$0xff] %v31
        %v33 = vld [vmem:[%s29 + $0x8] sm:$0xff]
        %34 = vst [vmem:[%s30 + $0x8] sm:$0xff] %v33
        %v35 = vld [vmem:[%s29 + $0x10] sm:$0xff]
        %36 = vst [vmem:[%s30 + $0x10] sm:$0xff] %v35
        %v37 = vld [vmem:[%s29 + $0x18] sm:$0xff]
        %38 = vst [vmem:[%s30 + $0x18] sm:$0xff] %v37
      $region22: #{encoder_lstm_forward.2} parent=16 // loop_footer
        %s28 = sadd.s32 1, %s24
      $region23: #{encoder_lstm_forward.2} parent=16 // loop_footer_branch
        %23 = sbr.rel target = $region19
      $region24: #{encoder_lstm_forward.2} parent=16 // loop_exit
        _
    $region17: #{encoder_lstm_forward.2} parent=12 // pred_fallthru
      _
    // Predicated region
    $region25: #{encoder_lstm_forward.2} parent=12 // pred_check
      _
    $region26: #{encoder_lstm_forward.2} parent=12 // pred_check_branch
      %40 = sbr.rel target = $region28
    $region27: #{encoder_lstm_forward.2} parent=12 // pred_region
      _
    $region28: #{encoder_lstm_forward.2} parent=12 // pred_fallthru
      _
    // Predicated region
    $region29: #{encoder_lstm_forward.2} parent=12 // pred_check
      _
    $region30: #{encoder_lstm_forward.2} parent=12 // pred_check_branch
      %43 = sbr.rel (0) target = $region32
    $region31: #{encoder_lstm_forward.2} parent=12 // pred_region
      %44 = vsyncadd [#allocation7], 512
    $region32: #{encoder_lstm_forward.2} parent=12 // pred_fallthru
      _
    %s45 = scalar_lea.sflag [#allocation7], 1
    // Predicated region
    $region33: #{encoder_lstm_forward.2} parent=12 // pred_check
      _
    $region34: #{encoder_lstm_forward.2} parent=12 // pred_check_branch
      %47 = sbr.rel target = $region36
    $region35: #{encoder_lstm_forward.2} parent=12 // pred_region
      %48 = sst [smem:[#allocation11]] [#allocation10]
      %49 = sst [smem:[#allocation12]] [#allocation9]
    $region36: #{encoder_lstm_forward.2} parent=12 // pred_fallthru
      _
    %51 = shalt.err (0)
    %s53 = sshll.u32 %s2, 4
    %s54 = int_to_ptr.hbm [resolvable:$true] %s53
    %s55 = sshll.u32 [#allocation3], 4
    %s56 = int_to_ptr.vmem [resolvable:$true] %s55
    %58 = dma.hbm_to_vmem [thread:$0]  %s54, 4096, %s56, %s45
    %s59 = smul.u32 4, 2
    %s60 = smul.u32 %s59, 4
    %s61 = sshll.u32 %s60, 4
    %62 = dma.done [#allocation7], %s61
    %s63 = smul.u32 4, 16
    %s64 = smul.u32 %s63, 4
    %s65 = sshll.u32 %s64, 4
    %66 = dma.done %s45, %s65
    %67 = vst [vmem:[#allocation5] sm:$0xff] 0.0
    %68 = vst [vmem:[#allocation6] sm:$0xff] 0.0
  $region13: #{encoder_lstm_forward.2} parent=0 // pred_fallthru
    _
  %v69 = vld [vmem:[%s0] sm:$0xf]
  %v70 = vld [vmem:[%s0 + $0x4] sm:$0xf]
  %v71 = vld [vmem:[%s0 + $0x8] sm:$0xf]
  %v72 = vld [vmem:[%s0 + $0xc] sm:$0xf]
  %v73 = vld [vmem:[%s0 + $0x10] sm:$0xf]
  %v74 = vld [vmem:[%s0 + $0x14] sm:$0xf]
  %v75 = vld [vmem:[%s0 + $0x18] sm:$0xf]
  %v76 = vld [vmem:[%s0 + $0x1c] sm:$0xf]
  %v77 = vld [vmem:[#allocation2] sm:$0xff]
  %v78 = vld [vmem:[#allocation2 + $0x8] sm:$0xff]
  %v79 = vld [vmem:[#allocation2 + $0x10] sm:$0xff]
  %v80 = vld [vmem:[#allocation2 + $0x18] sm:$0xff]
  %v81 = vld [vmem:[%s3] sm:$0xf]
  %v83 = vperm.slane %v81, 0
  %v84 = vperm.slane %v81, 1
  %v85 = vperm.slane %v81, 2
  %v86 = vperm.slane %v81, 3
  %v99 = vunpack.c.l.b16 %v69
  %v100 = vunpack.c.l.b16 %v70
  %v101 = vunpack.c.l.b16 %v71
  %v102 = vunpack.c.l.b16 %v72
  %v103 = vunpack.c.l.b16 %v73
  %v104 = vunpack.c.l.b16 %v74
  %v105 = vunpack.c.l.b16 %v75
  %v106 = vunpack.c.l.b16 %v76
  %v107 = vpack.c.b16 %v100, %v99
  %v108 = vpack.c.b16 %v102, %v101
  %v109 = vpack.c.b16 %v104, %v103
  %v110 = vpack.c.b16 %v106, %v105
  %v115 = vunpack.c.l.b16 %v77
  %v116 = vunpack.c.h.b16 %v77
  %v117 = vunpack.c.l.b16 %v78
  %v118 = vunpack.c.h.b16 %v78
  %v119 = vunpack.c.l.b16 %v79
  %v120 = vunpack.c.h.b16 %v79
  %v121 = vunpack.c.l.b16 %v80
  %v122 = vunpack.c.h.b16 %v80
  %v123 = vpack.c.b16 %v119, %v115
  %v124 = vpack.c.b16 %v120, %v116
  %v125 = vpack.c.b16 %v121, %v117
  %v126 = vpack.c.b16 %v122, %v118
  %vm131 = vcmask 130048
  %v133 = vsel %vm131, %v107, 0
  %v136 = vsel %vm131, %v108, 0
  %v139 = vsel %vm131, %v109, 0
  %v142 = vsel %vm131, %v110, 0
  %144 = vmatpush.bf16.msra.mxu0 0
  %145 = vmatpush.bf16.msra.mxu0 0
  %146 = vmatpush.bf16.msra.mxu0 0
  %147 = vmatpush.bf16.msra.mxu0 0
  %148 = vmatpush.bf16.msra.mxu0 0
  %149 = vmatpush.bf16.msra.mxu0 0
  %150 = vmatpush.bf16.msra.mxu0 0
  %151 = vmatpush.bf16.msra.mxu0 %v123
  %152 = vmatmul.bf16.gmra.mxu0 %v133
  %v153 = vpop.f32.mrf.mxu0
  %v154 = vadd.f32 %v83, %v153
  %v155 = vpop.f32.mrf.mxu0
  %v156 = vadd.f32 %v83, %v155
  %157 = vmatmul.bf16.gmra.mxu0 %v136
  %v158 = vpop.f32.mrf.mxu0
  %v159 = vadd.f32 %v83, %v158
  %v160 = vpop.f32.mrf.mxu0
  %v161 = vadd.f32 %v83, %v160
  %162 = vmatmul.bf16.gmra.mxu0 %v139
  %v163 = vpop.f32.mrf.mxu0
  %v164 = vadd.f32 %v83, %v163
  %v165 = vpop.f32.mrf.mxu0
  %v166 = vadd.f32 %v83, %v165
  %167 = vmatmul.bf16.gmra.mxu0 %v142
  %v168 = vpop.f32.mrf.mxu0
  %v169 = vadd.f32 %v83, %v168
  %v170 = vpop.f32.mrf.mxu0
  %v171 = vadd.f32 %v83, %v170
  %172 = vdwg.mxu0
  %173 = vmatpush.bf16.msra.mxu0 0
  %174 = vmatpush.bf16.msra.mxu0 0
  %175 = vmatpush.bf16.msra.mxu0 0
  %176 = vmatpush.bf16.msra.mxu0 0
  %177 = vmatpush.bf16.msra.mxu0 0
  %178 = vmatpush.bf16.msra.mxu0 0
  %179 = vmatpush.bf16.msra.mxu0 0
  %180 = vmatpush.bf16.msra.mxu0 %v124
  %181 = vmatmul.bf16.gmra.mxu0 %v133
  %v182 = vpop.f32.mrf.mxu0
  %v183 = vadd.f32 %v84, %v182
  %v184 = vpop.f32.mrf.mxu0
  %v185 = vadd.f32 %v84, %v184
  %186 = vmatmul.bf16.gmra.mxu0 %v136
  %v187 = vpop.f32.mrf.mxu0
  %v188 = vadd.f32 %v84, %v187
  %v189 = vpop.f32.mrf.mxu0
  %v190 = vadd.f32 %v84, %v189
  %191 = vmatmul.bf16.gmra.mxu0 %v139
  %v192 = vpop.f32.mrf.mxu0
  %v193 = vadd.f32 %v84, %v192
  %v194 = vpop.f32.mrf.mxu0
  %v195 = vadd.f32 %v84, %v194
  %196 = vmatmul.bf16.gmra.mxu0 %v142
  %v197 = vpop.f32.mrf.mxu0
  %v198 = vadd.f32 %v84, %v197
  %v199 = vpop.f32.mrf.mxu0
  %v200 = vadd.f32 %v84, %v199
  %201 = vdwg.mxu0
  %202 = vmatpush.bf16.msra.mxu0 0
  %203 = vmatpush.bf16.msra.mxu0 0
  %204 = vmatpush.bf16.msra.mxu0 0
  %205 = vmatpush.bf16.msra.mxu0 0
  %206 = vmatpush.bf16.msra.mxu0 0
  %207 = vmatpush.bf16.msra.mxu0 0
  %208 = vmatpush.bf16.msra.mxu0 0
  %209 = vmatpush.bf16.msra.mxu0 %v125
  %210 = vmatmul.bf16.gmra.mxu0 %v133
  %v211 = vpop.f32.mrf.mxu0
  %v212 = vadd.f32 %v85, %v211
  %v213 = vpop.f32.mrf.mxu0
  %v214 = vadd.f32 %v85, %v213
  %215 = vmatmul.bf16.gmra.mxu0 %v136
  %v216 = vpop.f32.mrf.mxu0
  %v217 = vadd.f32 %v85, %v216
  %v218 = vpop.f32.mrf.mxu0
  %v219 = vadd.f32 %v85, %v218
  %220 = vmatmul.bf16.gmra.mxu0 %v139
  %v221 = vpop.f32.mrf.mxu0
  %v222 = vadd.f32 %v85, %v221
  %v223 = vpop.f32.mrf.mxu0
  %v224 = vadd.f32 %v85, %v223
  %225 = vmatmul.bf16.gmra.mxu0 %v142
  %v226 = vpop.f32.mrf.mxu0
  %v227 = vadd.f32 %v85, %v226
  %v228 = vpop.f32.mrf.mxu0
  %v229 = vadd.f32 %v85, %v228
  %230 = vdwg.mxu0
  %231 = vmatpush.bf16.msra.mxu0 0
  %232 = vmatpush.bf16.msra.mxu0 0
  %233 = vmatpush.bf16.msra.mxu0 0
  %234 = vmatpush.bf16.msra.mxu0 0
  %235 = vmatpush.bf16.msra.mxu0 0
  %236 = vmatpush.bf16.msra.mxu0 0
  %237 = vmatpush.bf16.msra.mxu0 0
  %238 = vmatpush.bf16.msra.mxu0 %v126
  %239 = vmatmul.bf16.gmra.mxu0 %v133
  %v240 = vpop.f32.mrf.mxu0
  %v241 = vadd.f32 %v86, %v240
  %v242 = vpop.f32.mrf.mxu0
  %v243 = vadd.f32 %v86, %v242
  %244 = vmatmul.bf16.gmra.mxu0 %v136
  %v245 = vpop.f32.mrf.mxu0
  %v246 = vadd.f32 %v86, %v245
  %v247 = vpop.f32.mrf.mxu0
  %v248 = vadd.f32 %v86, %v247
  %249 = vmatmul.bf16.gmra.mxu0 %v139
  %v250 = vpop.f32.mrf.mxu0
  %v251 = vadd.f32 %v86, %v250
  %v252 = vpop.f32.mrf.mxu0
  %v253 = vadd.f32 %v86, %v252
  %254 = vmatmul.bf16.gmra.mxu0 %v142
  %v255 = vpop.f32.mrf.mxu0
  %v256 = vadd.f32 %v86, %v255
  %v257 = vpop.f32.mrf.mxu0
  %v258 = vadd.f32 %v86, %v257
  %259 = vdwg.mxu0
  %260 = vst [vmem:[#allocation4] sm:$0xff] %v154
  %261 = vst [vmem:[#allocation4 + $0x8] sm:$0xff] %v183
  %262 = vst [vmem:[#allocation4 + $0x10] sm:$0xff] %v212
  %263 = vst [vmem:[#allocation4 + $0x18] sm:$0xff] %v241
  %264 = vst [vmem:[#allocation4 + $0x20] sm:$0xff] %v156
  %265 = vst [vmem:[#allocation4 + $0x28] sm:$0xff] %v185
  %266 = vst [vmem:[#allocation4 + $0x30] sm:$0xff] %v214
  %267 = vst [vmem:[#allocation4 + $0x38] sm:$0xff] %v243
  %268 = vst [vmem:[#allocation4 + $0x40] sm:$0xff] %v159
  %269 = vst [vmem:[#allocation4 + $0x48] sm:$0xff] %v188
  %270 = vst [vmem:[#allocation4 + $0x50] sm:$0xff] %v217
  %271 = vst [vmem:[#allocation4 + $0x58] sm:$0xff] %v246
  %272 = vst [vmem:[#allocation4 + $0x60] sm:$0xff] %v161
  %273 = vst [vmem:[#allocation4 + $0x68] sm:$0xff] %v190
  %274 = vst [vmem:[#allocation4 + $0x70] sm:$0xff] %v219
  %275 = vst [vmem:[#allocation4 + $0x78] sm:$0xff] %v248
  %276 = vst [vmem:[#allocation4 + $0x80] sm:$0xff] %v164
  %277 = vst [vmem:[#allocation4 + $0x88] sm:$0xff] %v193
  %278 = vst [vmem:[#allocation4 + $0x90] sm:$0xff] %v222
  %279 = vst [vmem:[#allocation4 + $0x98] sm:$0xff] %v251
  %280 = vst [vmem:[#allocation4 + $0xa0] sm:$0xff] %v166
  %281 = vst [vmem:[#allocation4 + $0xa8] sm:$0xff] %v195
  %282 = vst [vmem:[#allocation4 + $0xb0] sm:$0xff] %v224
  %283 = vst [vmem:[#allocation4 + $0xb8] sm:$0xff] %v253
  %284 = vst [vmem:[#allocation4 + $0xc0] sm:$0xff] %v169
  %285 = vst [vmem:[#allocation4 + $0xc8] sm:$0xff] %v198
  %286 = vst [vmem:[#allocation4 + $0xd0] sm:$0xff] %v227
  %287 = vst [vmem:[#allocation4 + $0xd8] sm:$0xff] %v256
  %288 = vst [vmem:[#allocation4 + $0xe0] sm:$0xff] %v171
  %289 = vst [vmem:[#allocation4 + $0xe8] sm:$0xff] %v200
  %290 = vst [vmem:[#allocation4 + $0xf0] sm:$0xff] %v229
  %291 = vst [vmem:[#allocation4 + $0xf8] sm:$0xff] %v258
  %v292 = vld [vmem:[#allocation3] sm:$0xff]
  %v293 = vld [vmem:[#allocation3 + $0x8] sm:$0xff]
  %v294 = vld [vmem:[#allocation3 + $0x10] sm:$0xff]
  %v295 = vld [vmem:[#allocation3 + $0x18] sm:$0xff]
  %v296 = vld [vmem:[#allocation3 + $0x20] sm:$0xff]
  %v297 = vld [vmem:[#allocation3 + $0x28] sm:$0xff]
  %v298 = vld [vmem:[#allocation3 + $0x30] sm:$0xff]
  %v299 = vld [vmem:[#allocation3 + $0x38] sm:$0xff]
  %v300 = vld [vmem:[#allocation3 + $0x40] sm:$0xff]
  %v301 = vld [vmem:[#allocation3 + $0x48] sm:$0xff]
  %v302 = vld [vmem:[#allocation3 + $0x50] sm:$0xff]
  %v303 = vld [vmem:[#allocation3 + $0x58] sm:$0xff]
  %v304 = vld [vmem:[#allocation3 + $0x60] sm:$0xff]
  %v305 = vld [vmem:[#allocation3 + $0x68] sm:$0xff]
  %v306 = vld [vmem:[#allocation3 + $0x70] sm:$0xff]
  %v307 = vld [vmem:[#allocation3 + $0x78] sm:$0xff]
  %v308 = vld [vmem:[#allocation3 + $0x80] sm:$0xff]
  %v309 = vld [vmem:[#allocation3 + $0x88] sm:$0xff]
  %v310 = vld [vmem:[#allocation3 + $0x90] sm:$0xff]
  %v311 = vld [vmem:[#allocation3 + $0x98] sm:$0xff]
  %v312 = vld [vmem:[#allocation3 + $0xa0] sm:$0xff]
  %v313 = vld [vmem:[#allocation3 + $0xa8] sm:$0xff]
  %v314 = vld [vmem:[#allocation3 + $0xb0] sm:$0xff]
  %v315 = vld [vmem:[#allocation3 + $0xb8] sm:$0xff]
  %v316 = vld [vmem:[#allocation3 + $0xc0] sm:$0xff]
  %v317 = vld [vmem:[#allocation3 + $0xc8] sm:$0xff]
  %v318 = vld [vmem:[#allocation3 + $0xd0] sm:$0xff]
  %v319 = vld [vmem:[#allocation3 + $0xd8] sm:$0xff]
  %v320 = vld [vmem:[#allocation3 + $0xe0] sm:$0xff]
  %v321 = vld [vmem:[#allocation3 + $0xe8] sm:$0xff]
  %v322 = vld [vmem:[#allocation3 + $0xf0] sm:$0xff]
  %v323 = vld [vmem:[#allocation3 + $0xf8] sm:$0xff]
  %v324 = vld [vmem:[#allocation5] sm:$0xff]
  %v325 = vld [vmem:[#allocation6] sm:$0xff]
  %v326 = vld [vmem:[#allocation4] sm:$0xff]
  %v327 = vld [vmem:[#allocation4 + $0x8] sm:$0xff]
  %v328 = vld [vmem:[#allocation4 + $0x10] sm:$0xff]
  %v329 = vld [vmem:[#allocation4 + $0x18] sm:$0xff]
  %v330 = vpack.c.bf16 %v324, %v324
  %v363 = vunpack.c.l.b16 %v292
  %v364 = vunpack.c.h.b16 %v292
  %v365 = vunpack.c.l.b16 %v293
  %v366 = vunpack.c.h.b16 %v293
  %v367 = vunpack.c.l.b16 %v294
  %v368 = vunpack.c.h.b16 %v294
  %v369 = vunpack.c.l.b16 %v295
  %v370 = vunpack.c.h.b16 %v295
  %v371 = vunpack.c.l.b16 %v296
  %v372 = vunpack.c.h.b16 %v296
  %v373 = vunpack.c.l.b16 %v297
  %v374 = vunpack.c.h.b16 %v297
  %v375 = vunpack.c.l.b16 %v298
  %v376 = vunpack.c.h.b16 %v298
  %v377 = vunpack.c.l.b16 %v299
  %v378 = vunpack.c.h.b16 %v299
  %v379 = vunpack.c.l.b16 %v300
  %v380 = vunpack.c.h.b16 %v300
  %v381 = vunpack.c.l.b16 %v301
  %v382 = vunpack.c.h.b16 %v301
  %v383 = vunpack.c.l.b16 %v302
  %v384 = vunpack.c.h.b16 %v302
  %v385 = vunpack.c.l.b16 %v303
  %v386 = vunpack.c.h.b16 %v303
  %v387 = vunpack.c.l.b16 %v304
  %v388 = vunpack.c.h.b16 %v304
  %v389 = vunpack.c.l.b16 %v305
  %v390 = vunpack.c.h.b16 %v305
  %v391 = vunpack.c.l.b16 %v306
  %v392 = vunpack.c.h.b16 %v306
  %v393 = vunpack.c.l.b16 %v307
  %v394 = vunpack.c.h.b16 %v307
  %v395 = vunpack.c.l.b16 %v308
  %v396 = vunpack.c.h.b16 %v308
  %v397 = vunpack.c.l.b16 %v309
  %v398 = vunpack.c.h.b16 %v309
  %v399 = vunpack.c.l.b16 %v310
  %v400 = vunpack.c.h.b16 %v310
  %v401 = vunpack.c.l.b16 %v311
  %v402 = vunpack.c.h.b16 %v311
  %v403 = vunpack.c.l.b16 %v312
  %v404 = vunpack.c.h.b16 %v312
  %v405 = vunpack.c.l.b16 %v313
  %v406 = vunpack.c.h.b16 %v313
  %v407 = vunpack.c.l.b16 %v314
  %v408 = vunpack.c.h.b16 %v314
  %v409 = vunpack.c.l.b16 %v315
  %v410 = vunpack.c.h.b16 %v315
  %v411 = vunpack.c.l.b16 %v316
  %v412 = vunpack.c.h.b16 %v316
  %v413 = vunpack.c.l.b16 %v317
  %v414 = vunpack.c.h.b16 %v317
  %v415 = vunpack.c.l.b16 %v318
  %v416 = vunpack.c.h.b16 %v318
  %v417 = vunpack.c.l.b16 %v319
  %v418 = vunpack.c.h.b16 %v319
  %v419 = vunpack.c.l.b16 %v320
  %v420 = vunpack.c.h.b16 %v320
  %v421 = vunpack.c.l.b16 %v321
  %v422 = vunpack.c.h.b16 %v321
  %v423 = vunpack.c.l.b16 %v322
  %v424 = vunpack.c.h.b16 %v322
  %v425 = vunpack.c.l.b16 %v323
  %v426 = vunpack.c.h.b16 %v323
  %v427 = vpack.c.b16 %v367, %v363
  %v428 = vpack.c.b16 %v368, %v364
  %v429 = vpack.c.b16 %v369, %v365
  %v430 = vpack.c.b16 %v370, %v366
  %v431 = vpack.c.b16 %v375, %v371
  %v432 = vpack.c.b16 %v376, %v372
  %v433 = vpack.c.b16 %v377, %v373
  %v434 = vpack.c.b16 %v378, %v374
  %v435 = vpack.c.b16 %v383, %v379
  %v436 = vpack.c.b16 %v384, %v380
  %v437 = vpack.c.b16 %v385, %v381
  %v438 = vpack.c.b16 %v386, %v382
  %v439 = vpack.c.b16 %v391, %v387
  %v440 = vpack.c.b16 %v392, %v388
  %v441 = vpack.c.b16 %v393, %v389
  %v442 = vpack.c.b16 %v394, %v390
  %v443 = vpack.c.b16 %v399, %v395
  %v444 = vpack.c.b16 %v400, %v396
  %v445 = vpack.c.b16 %v401, %v397
  %v446 = vpack.c.b16 %v402, %v398
  %v447 = vpack.c.b16 %v407, %v403
  %v448 = vpack.c.b16 %v408, %v404
  %v449 = vpack.c.b16 %v409, %v405
  %v450 = vpack.c.b16 %v410, %v406
  %v451 = vpack.c.b16 %v415, %v411
  %v452 = vpack.c.b16 %v416, %v412
  %v453 = vpack.c.b16 %v417, %v413
  %v454 = vpack.c.b16 %v418, %v414
  %v455 = vpack.c.b16 %v423, %v419
  %v456 = vpack.c.b16 %v424, %v420
  %v457 = vpack.c.b16 %v425, %v421
  %v458 = vpack.c.b16 %v426, %v422
  %491 = vmatpush.bf16.msra.mxu0 %v455
  %492 = vmatpush.bf16.msra.mxu0 %v451
  %493 = vmatpush.bf16.msra.mxu0 %v447
  %494 = vmatpush.bf16.msra.mxu0 %v443
  %495 = vmatpush.bf16.msra.mxu0 %v439
  %496 = vmatpush.bf16.msra.mxu0 %v435
  %497 = vmatpush.bf16.msra.mxu0 %v431
  %498 = vmatpush.bf16.msra.mxu0 %v427
  %499 = vmatmul.bf16.gmra.mxu0 %v330
  %v500 = vpop.f32.mrf.mxu0
  %v501 = vadd.f32 0.0, %v500
  %v502 = vpop.f32.mrf.mxu0
  %503 = vdwg.mxu0
  %504 = vmatpush.bf16.msra.mxu0 %v456
  %505 = vmatpush.bf16.msra.mxu0 %v452
  %506 = vmatpush.bf16.msra.mxu0 %v448
  %507 = vmatpush.bf16.msra.mxu0 %v444
  %508 = vmatpush.bf16.msra.mxu0 %v440
  %509 = vmatpush.bf16.msra.mxu0 %v436
  %510 = vmatpush.bf16.msra.mxu0 %v432
  %511 = vmatpush.bf16.msra.mxu0 %v428
  %512 = vmatmul.bf16.gmra.mxu0 %v330
  %v513 = vpop.f32.mrf.mxu0
  %v514 = vadd.f32 0.0, %v513
  %v515 = vpop.f32.mrf.mxu0
  %516 = vdwg.mxu0
  %517 = vmatpush.bf16.msra.mxu0 %v457
  %518 = vmatpush.bf16.msra.mxu0 %v453
  %519 = vmatpush.bf16.msra.mxu0 %v449
  %520 = vmatpush.bf16.msra.mxu0 %v445
  %521 = vmatpush.bf16.msra.mxu0 %v441
  %522 = vmatpush.bf16.msra.mxu0 %v437
  %523 = vmatpush.bf16.msra.mxu0 %v433
  %524 = vmatpush.bf16.msra.mxu0 %v429
  %525 = vmatmul.bf16.gmra.mxu0 %v330
  %v526 = vpop.f32.mrf.mxu0
  %v527 = vadd.f32 0.0, %v526
  %v528 = vpop.f32.mrf.mxu0
  %529 = vdwg.mxu0
  %530 = vmatpush.bf16.msra.mxu0 %v458
  %531 = vmatpush.bf16.msra.mxu0 %v454
  %532 = vmatpush.bf16.msra.mxu0 %v450
  %533 = vmatpush.bf16.msra.mxu0 %v446
  %534 = vmatpush.bf16.msra.mxu0 %v442
  %535 = vmatpush.bf16.msra.mxu0 %v438
  %536 = vmatpush.bf16.msra.mxu0 %v434
  %537 = vmatpush.bf16.msra.mxu0 %v430
  %538 = vmatmul.bf16.gmra.mxu0 %v330
  %v539 = vpop.f32.mrf.mxu0
  %v540 = vadd.f32 0.0, %v539
  %v541 = vpop.f32.mrf.mxu0
  %542 = vdwg.mxu0
  %v543 = vadd.f32 %v326, %v501
  %v544 = vadd.f32 %v327, %v514
  %v545 = vadd.f32 %v328, %v527
  %v546 = vadd.f32 %v329, %v540
  %v547 = vxor.u32 %v543, 2147483648
  %v548 = vmul.f32 %v547, 1.442695
  %v549 = vpow.pop %v548
  %v550 = vadd.f32 %v549, 1.0
  %v551 = vrcp.pop %v550
  %v552 = vmul.f32 %v550, %v551
  %v553 = vsub.f32 1.0, %v552
  %v554 = vmul.f32 %v551, %v553
  %v555 = vadd.f32 %v551, %v554
  %vm556 = vweird.f32 %v550
  %vm557 = vweird.f32 %v551
  %vm558 = vmor %vm556, %vm557
  %v559 = vsel %vm558, %v551, %v555
  %v560 = vand.u32 2147483647, %v550
  %vm561 = vcmp.eq.f32.partialorder %v560, 8.507059e+37
  %v562 = vand.u32 %v550, 2147483648
  %v563 = vor.u32 1.1754944e-38, %v562
  %v564 = vsel %vm561, %v563, %v559
  %v565 = vmul.f32 1.0, %v564
  %v566 = vxor.u32 %v544, 2147483648
  %v567 = vmul.f32 %v566, 1.442695
  %v568 = vpow.pop %v567
  %v569 = vadd.f32 %v568, 1.0
  %v570 = vrcp.pop %v569
  %v571 = vmul.f32 %v569, %v570
  %v572 = vsub.f32 1.0, %v571
  %v573 = vmul.f32 %v570, %v572
  %v574 = vadd.f32 %v570, %v573
  %vm575 = vweird.f32 %v569
  %vm576 = vweird.f32 %v570
  %vm577 = vmor %vm575, %vm576
  %v578 = vsel %vm577, %v570, %v574
  %v579 = vand.u32 2147483647, %v569
  %vm580 = vcmp.eq.f32.partialorder %v579, 8.507059e+37
  %v581 = vand.u32 %v569, 2147483648
  %v582 = vor.u32 1.1754944e-38, %v581
  %v583 = vsel %vm580, %v582, %v578
  %v584 = vmul.f32 1.0, %v583
  %v585 = vtanh.pop %v545
  %v586 = vxor.u32 %v546, 2147483648
  %v587 = vmul.f32 %v586, 1.442695
  %v588 = vpow.pop %v587
  %v589 = vadd.f32 %v588, 1.0
  %v590 = vrcp.pop %v589
  %v591 = vmul.f32 %v589, %v590
  %v592 = vsub.f32 1.0, %v591
  %v593 = vmul.f32 %v590, %v592
  %v594 = vadd.f32 %v590, %v593
  %vm595 = vweird.f32 %v589
  %vm596 = vweird.f32 %v590
  %vm597 = vmor %vm595, %vm596
  %v598 = vsel %vm597, %v590, %v594
  %v599 = vand.u32 2147483647, %v589
  %vm600 = vcmp.eq.f32.partialorder %v599, 8.507059e+37
  %v601 = vand.u32 %v589, 2147483648
  %v602 = vor.u32 1.1754944e-38, %v601
  %v603 = vsel %vm600, %v602, %v598
  %v604 = vmul.f32 1.0, %v603
  %v605 = vmul.f32 %v584, %v325
  %v606 = vmul.f32 %v565, %v585
  %v607 = vadd.f32 %v605, %v606
  %v608 = vtanh.pop %v607
  %v609 = vmul.f32 %v604, %v608
  %610 = vst [vmem:[#allocation5] sm:$0xff] %v609
  %611 = vst [vmem:[#allocation6] sm:$0xff] %v607
  %v612 = vpack.c.bf16 %v609, %v609
  %613 = vst [vmem:[%s4] sm:$0xf] %v612
  %v614 = vld [vmem:[#allocation5] sm:$0xff]
  %v615 = vld [vmem:[#allocation6] sm:$0xff]
  %s616 = scalar_lea.vmem [#allocation4], 32
  %v617 = vld [vmem:[%s616] sm:$0xff]
  %v618 = vld [vmem:[%s616 + $0x8] sm:$0xff]
  %v619 = vld [vmem:[%s616 + $0x10] sm:$0xff]
  %v620 = vld [vmem:[%s616 + $0x18] sm:$0xff]
  %v621 = vpack.c.bf16 %v614, %v614
  %622 = vmatpush.bf16.msra.mxu0 %v455
  %623 = vmatpush.bf16.msra.mxu0 %v451
  %624 = vmatpush.bf16.msra.mxu0 %v447
  %625 = vmatpush.bf16.msra.mxu0 %v443
  %626 = vmatpush.bf16.msra.mxu0 %v439
  %627 = vmatpush.bf16.msra.mxu0 %v435
  %628 = vmatpush.bf16.msra.mxu0 %v431
  %629 = vmatpush.bf16.msra.mxu0 %v427
  %630 = vmatmul.bf16.gmra.mxu0 %v621
  %v631 = vpop.f32.mrf.mxu0
  %v632 = vadd.f32 0.0, %v631
  %v633 = vpop.f32.mrf.mxu0
  %634 = vdwg.mxu0
  %635 = vmatpush.bf16.msra.mxu0 %v456
  %636 = vmatpush.bf16.msra.mxu0 %v452
  %637 = vmatpush.bf16.msra.mxu0 %v448
  %638 = vmatpush.bf16.msra.mxu0 %v444
  %639 = vmatpush.bf16.msra.mxu0 %v440
  %640 = vmatpush.bf16.msra.mxu0 %v436
  %641 = vmatpush.bf16.msra.mxu0 %v432
  %642 = vmatpush.bf16.msra.mxu0 %v428
  %643 = vmatmul.bf16.gmra.mxu0 %v621
  %v644 = vpop.f32.mrf.mxu0
  %v645 = vadd.f32 0.0, %v644
  %v646 = vpop.f32.mrf.mxu0
  %647 = vdwg.mxu0
  %648 = vmatpush.bf16.msra.mxu0 %v457
  %649 = vmatpush.bf16.msra.mxu0 %v453
  %650 = vmatpush.bf16.msra.mxu0 %v449
  %651 = vmatpush.bf16.msra.mxu0 %v445
  %652 = vmatpush.bf16.msra.mxu0 %v441
  %653 = vmatpush.bf16.msra.mxu0 %v437
  %654 = vmatpush.bf16.msra.mxu0 %v433
  %655 = vmatpush.bf16.msra.mxu0 %v429
  %656 = vmatmul.bf16.gmra.mxu0 %v621
  %v657 = vpop.f32.mrf.mxu0
  %v658 = vadd.f32 0.0, %v657
  %v659 = vpop.f32.mrf.mxu0
  %660 = vdwg.mxu0
  %661 = vmatpush.bf16.msra.mxu0 %v458
  %662 = vmatpush.bf16.msra.mxu0 %v454
  %663 = vmatpush.bf16.msra.mxu0 %v450
  %664 = vmatpush.bf16.msra.mxu0 %v446
  %665 = vmatpush.bf16.msra.mxu0 %v442
  %666 = vmatpush.bf16.msra.mxu0 %v438
  %667 = vmatpush.bf16.msra.mxu0 %v434
  %668 = vmatpush.bf16.msra.mxu0 %v430
  %669 = vmatmul.bf16.gmra.mxu0 %v621
  %v670 = vpop.f32.mrf.mxu0
  %v671 = vadd.f32 0.0, %v670
  %v672 = vpop.f32.mrf.mxu0
  %673 = vdwg.mxu0
  %v674 = vadd.f32 %v617, %v632
  %v675 = vadd.f32 %v618, %v645
  %v676 = vadd.f32 %v619, %v658
  %v677 = vadd.f32 %v620, %v671
  %v678 = vxor.u32 %v674, 2147483648
  %v679 = vmul.f32 %v678, 1.442695
  %v680 = vpow.pop %v679
  %v681 = vadd.f32 %v680, 1.0
  %v682 = vrcp.pop %v681
  %v683 = vmul.f32 %v681, %v682
  %v684 = vsub.f32 1.0, %v683
  %v685 = vmul.f32 %v682, %v684
  %v686 = vadd.f32 %v682, %v685
  %vm687 = vweird.f32 %v681
  %vm688 = vweird.f32 %v682
  %vm689 = vmor %vm687, %vm688
  %v690 = vsel %vm689, %v682, %v686
  %v691 = vand.u32 2147483647, %v681
  %vm692 = vcmp.eq.f32.partialorder %v691, 8.507059e+37
  %v693 = vand.u32 %v681, 2147483648
  %v694 = vor.u32 1.1754944e-38, %v693
  %v695 = vsel %vm692, %v694, %v690
  %v696 = vmul.f32 1.0, %v695
  %v697 = vxor.u32 %v675, 2147483648
  %v698 = vmul.f32 %v697, 1.442695
  %v699 = vpow.pop %v698
  %v700 = vadd.f32 %v699, 1.0
  %v701 = vrcp.pop %v700
  %v702 = vmul.f32 %v700, %v701
  %v703 = vsub.f32 1.0, %v702
  %v704 = vmul.f32 %v701, %v703
  %v705 = vadd.f32 %v701, %v704
  %vm706 = vweird.f32 %v700
  %vm707 = vweird.f32 %v701
  %vm708 = vmor %vm706, %vm707
  %v709 = vsel %vm708, %v701, %v705
  %v710 = vand.u32 2147483647, %v700
  %vm711 = vcmp.eq.f32.partialorder %v710, 8.507059e+37
  %v712 = vand.u32 %v700, 2147483648
  %v713 = vor.u32 1.1754944e-38, %v712
  %v714 = vsel %vm711, %v713, %v709
  %v715 = vmul.f32 1.0, %v714
  %v716 = vtanh.pop %v676
  %v717 = vxor.u32 %v677, 2147483648
  %v718 = vmul.f32 %v717, 1.442695
  %v719 = vpow.pop %v718
  %v720 = vadd.f32 %v719, 1.0
  %v721 = vrcp.pop %v720
  %v722 = vmul.f32 %v720, %v721
  %v723 = vsub.f32 1.0, %v722
  %v724 = vmul.f32 %v721, %v723
  %v725 = vadd.f32 %v721, %v724
  %vm726 = vweird.f32 %v720
  %vm727 = vweird.f32 %v721
  %vm728 = vmor %vm726, %vm727
  %v729 = vsel %vm728, %v721, %v725
  %v730 = vand.u32 2147483647, %v720
  %vm731 = vcmp.eq.f32.partialorder %v730, 8.507059e+37
  %v732 = vand.u32 %v720, 2147483648
  %v733 = vor.u32 1.1754944e-38, %v732
  %v734 = vsel %vm731, %v733, %v729
  %v735 = vmul.f32 1.0, %v734
  %v736 = vmul.f32 %v715, %v615
  %v737 = vmul.f32 %v696, %v716
  %v738 = vadd.f32 %v736, %v737
  %v739 = vtanh.pop %v738
  %v740 = vmul.f32 %v735, %v739
  %741 = vst [vmem:[#allocation5] sm:$0xff] %v740
  %742 = vst [vmem:[#allocation6] sm:$0xff] %v738
  %v743 = vpack.c.bf16 %v740, %v740
  %s744 = scalar_lea.vmem %s4, 4
  %745 = vst [vmem:[%s744] sm:$0xf] %v743
  %v746 = vld [vmem:[#allocation5] sm:$0xff]
  %v747 = vld [vmem:[#allocation6] sm:$0xff]
  %s748 = scalar_lea.vmem [#allocation4], 64
  %v749 = vld [vmem:[%s748] sm:$0xff]
  %v750 = vld [vmem:[%s748 + $0x8] sm:$0xff]
  %v751 = vld [vmem:[%s748 + $0x10] sm:$0xff]
  %v752 = vld [vmem:[%s748 + $0x18] sm:$0xff]
  %v753 = vpack.c.bf16 %v746, %v746
  %754 = vmatpush.bf16.msra.mxu0 %v455
  %755 = vmatpush.bf16.msra.mxu0 %v451
  %756 = vmatpush.bf16.msra.mxu0 %v447
  %757 = vmatpush.bf16.msra.mxu0 %v443
  %758 = vmatpush.bf16.msra.mxu0 %v439
  %759 = vmatpush.bf16.msra.mxu0 %v435
  %760 = vmatpush.bf16.msra.mxu0 %v431
  %761 = vmatpush.bf16.msra.mxu0 %v427
  %762 = vmatmul.bf16.gmra.mxu0 %v753
  %v763 = vpop.f32.mrf.mxu0
  %v764 = vadd.f32 0.0, %v763
  %v765 = vpop.f32.mrf.mxu0
  %766 = vdwg.mxu0
  %767 = vmatpush.bf16.msra.mxu0 %v456
  %768 = vmatpush.bf16.msra.mxu0 %v452
  %769 = vmatpush.bf16.msra.mxu0 %v448
  %770 = vmatpush.bf16.msra.mxu0 %v444
  %771 = vmatpush.bf16.msra.mxu0 %v440
  %772 = vmatpush.bf16.msra.mxu0 %v436
  %773 = vmatpush.bf16.msra.mxu0 %v432
  %774 = vmatpush.bf16.msra.mxu0 %v428
  %775 = vmatmul.bf16.gmra.mxu0 %v753
  %v776 = vpop.f32.mrf.mxu0
  %v777 = vadd.f32 0.0, %v776
  %v778 = vpop.f32.mrf.mxu0
  %779 = vdwg.mxu0
  %780 = vmatpush.bf16.msra.mxu0 %v457
  %781 = vmatpush.bf16.msra.mxu0 %v453
  %782 = vmatpush.bf16.msra.mxu0 %v449
  %783 = vmatpush.bf16.msra.mxu0 %v445
  %784 = vmatpush.bf16.msra.mxu0 %v441
  %785 = vmatpush.bf16.msra.mxu0 %v437
  %786 = vmatpush.bf16.msra.mxu0 %v433
  %787 = vmatpush.bf16.msra.mxu0 %v429
  %788 = vmatmul.bf16.gmra.mxu0 %v753
  %v789 = vpop.f32.mrf.mxu0
  %v790 = vadd.f32 0.0, %v789
  %v791 = vpop.f32.mrf.mxu0
  %792 = vdwg.mxu0
  %793 = vmatpush.bf16.msra.mxu0 %v458
  %794 = vmatpush.bf16.msra.mxu0 %v454
  %795 = vmatpush.bf16.msra.mxu0 %v450
  %796 = vmatpush.bf16.msra.mxu0 %v446
  %797 = vmatpush.bf16.msra.mxu0 %v442
  %798 = vmatpush.bf16.msra.mxu0 %v438
  %799 = vmatpush.bf16.msra.mxu0 %v434
  %800 = vmatpush.bf16.msra.mxu0 %v430
  %801 = vmatmul.bf16.gmra.mxu0 %v753
  %v802 = vpop.f32.mrf.mxu0
  %v803 = vadd.f32 0.0, %v802
  %v804 = vpop.f32.mrf.mxu0
  %805 = vdwg.mxu0
  %v806 = vadd.f32 %v749, %v764
  %v807 = vadd.f32 %v750, %v777
  %v808 = vadd.f32 %v751, %v790
  %v809 = vadd.f32 %v752, %v803
  %v810 = vxor.u32 %v806, 2147483648
  %v811 = vmul.f32 %v810, 1.442695
  %v812 = vpow.pop %v811
  %v813 = vadd.f32 %v812, 1.0
  %v814 = vrcp.pop %v813
  %v815 = vmul.f32 %v813, %v814
  %v816 = vsub.f32 1.0, %v815
  %v817 = vmul.f32 %v814, %v816
  %v818 = vadd.f32 %v814, %v817
  %vm819 = vweird.f32 %v813
  %vm820 = vweird.f32 %v814
  %vm821 = vmor %vm819, %vm820
  %v822 = vsel %vm821, %v814, %v818
  %v823 = vand.u32 2147483647, %v813
  %vm824 = vcmp.eq.f32.partialorder %v823, 8.507059e+37
  %v825 = vand.u32 %v813, 2147483648
  %v826 = vor.u32 1.1754944e-38, %v825
  %v827 = vsel %vm824, %v826, %v822
  %v828 = vmul.f32 1.0, %v827
  %v829 = vxor.u32 %v807, 2147483648
  %v830 = vmul.f32 %v829, 1.442695
  %v831 = vpow.pop %v830
  %v832 = vadd.f32 %v831, 1.0
  %v833 = vrcp.pop %v832
  %v834 = vmul.f32 %v832, %v833
  %v835 = vsub.f32 1.0, %v834
  %v836 = vmul.f32 %v833, %v835
  %v837 = vadd.f32 %v833, %v836
  %vm838 = vweird.f32 %v832
  %vm839 = vweird.f32 %v833
  %vm840 = vmor %vm838, %vm839
  %v841 = vsel %vm840, %v833, %v837
  %v842 = vand.u32 2147483647, %v832
  %vm843 = vcmp.eq.f32.partialorder %v842, 8.507059e+37
  %v844 = vand.u32 %v832, 2147483648
  %v845 = vor.u32 1.1754944e-38, %v844
  %v846 = vsel %vm843, %v845, %v841
  %v847 = vmul.f32 1.0, %v846
  %v848 = vtanh.pop %v808
  %v849 = vxor.u32 %v809, 2147483648
  %v850 = vmul.f32 %v849, 1.442695
  %v851 = vpow.pop %v850
  %v852 = vadd.f32 %v851, 1.0
  %v853 = vrcp.pop %v852
  %v854 = vmul.f32 %v852, %v853
  %v855 = vsub.f32 1.0, %v854
  %v856 = vmul.f32 %v853, %v855
  %v857 = vadd.f32 %v853, %v856
  %vm858 = vweird.f32 %v852
  %vm859 = vweird.f32 %v853
  %vm860 = vmor %vm858, %vm859
  %v861 = vsel %vm860, %v853, %v857
  %v862 = vand.u32 2147483647, %v852
  %vm863 = vcmp.eq.f32.partialorder %v862, 8.507059e+37
  %v864 = vand.u32 %v852, 2147483648
  %v865 = vor.u32 1.1754944e-38, %v864
  %v866 = vsel %vm863, %v865, %v861
  %v867 = vmul.f32 1.0, %v866
  %v868 = vmul.f32 %v847, %v747
  %v869 = vmul.f32 %v828, %v848
  %v870 = vadd.f32 %v868, %v869
  %v871 = vtanh.pop %v870
  %v872 = vmul.f32 %v867, %v871
  %873 = vst [vmem:[#allocation5] sm:$0xff] %v872
  %874 = vst [vmem:[#allocation6] sm:$0xff] %v870
  %v875 = vpack.c.bf16 %v872, %v872
  %s876 = scalar_lea.vmem %s4, 8
  %877 = vst [vmem:[%s876] sm:$0xf] %v875
  %v878 = vld [vmem:[#allocation5] sm:$0xff]
  %v879 = vld [vmem:[#allocation6] sm:$0xff]
  %s880 = scalar_lea.vmem [#allocation4], 96
  %v881 = vld [vmem:[%s880] sm:$0xff]
  %v882 = vld [vmem:[%s880 + $0x8] sm:$0xff]
  %v883 = vld [vmem:[%s880 + $0x10] sm:$0xff]
  %v884 = vld [vmem:[%s880 + $0x18] sm:$0xff]
  %v885 = vpack.c.bf16 %v878, %v878
  %886 = vmatpush.bf16.msra.mxu0 %v455
  %887 = vmatpush.bf16.msra.mxu0 %v451
  %888 = vmatpush.bf16.msra.mxu0 %v447
  %889 = vmatpush.bf16.msra.mxu0 %v443
  %890 = vmatpush.bf16.msra.mxu0 %v439
  %891 = vmatpush.bf16.msra.mxu0 %v435
  %892 = vmatpush.bf16.msra.mxu0 %v431
  %893 = vmatpush.bf16.msra.mxu0 %v427
  %894 = vmatmul.bf16.gmra.mxu0 %v885
  %v895 = vpop.f32.mrf.mxu0
  %v896 = vadd.f32 0.0, %v895
  %v897 = vpop.f32.mrf.mxu0
  %898 = vdwg.mxu0
  %899 = vmatpush.bf16.msra.mxu0 %v456
  %900 = vmatpush.bf16.msra.mxu0 %v452
  %901 = vmatpush.bf16.msra.mxu0 %v448
  %902 = vmatpush.bf16.msra.mxu0 %v444
  %903 = vmatpush.bf16.msra.mxu0 %v440
  %904 = vmatpush.bf16.msra.mxu0 %v436
  %905 = vmatpush.bf16.msra.mxu0 %v432
  %906 = vmatpush.bf16.msra.mxu0 %v428
  %907 = vmatmul.bf16.gmra.mxu0 %v885
  %v908 = vpop.f32.mrf.mxu0
  %v909 = vadd.f32 0.0, %v908
  %v910 = vpop.f32.mrf.mxu0
  %911 = vdwg.mxu0
  %912 = vmatpush.bf16.msra.mxu0 %v457
  %913 = vmatpush.bf16.msra.mxu0 %v453
  %914 = vmatpush.bf16.msra.mxu0 %v449
  %915 = vmatpush.bf16.msra.mxu0 %v445
  %916 = vmatpush.bf16.msra.mxu0 %v441
  %917 = vmatpush.bf16.msra.mxu0 %v437
  %918 = vmatpush.bf16.msra.mxu0 %v433
  %919 = vmatpush.bf16.msra.mxu0 %v429
  %920 = vmatmul.bf16.gmra.mxu0 %v885
  %v921 = vpop.f32.mrf.mxu0
  %v922 = vadd.f32 0.0, %v921
  %v923 = vpop.f32.mrf.mxu0
  %924 = vdwg.mxu0
  %925 = vmatpush.bf16.msra.mxu0 %v458
  %926 = vmatpush.bf16.msra.mxu0 %v454
  %927 = vmatpush.bf16.msra.mxu0 %v450
  %928 = vmatpush.bf16.msra.mxu0 %v446
  %929 = vmatpush.bf16.msra.mxu0 %v442
  %930 = vmatpush.bf16.msra.mxu0 %v438
  %931 = vmatpush.bf16.msra.mxu0 %v434
  %932 = vmatpush.bf16.msra.mxu0 %v430
  %933 = vmatmul.bf16.gmra.mxu0 %v885
  %v934 = vpop.f32.mrf.mxu0
  %v935 = vadd.f32 0.0, %v934
  %v936 = vpop.f32.mrf.mxu0
  %937 = vdwg.mxu0
  %v938 = vadd.f32 %v881, %v896
  %v939 = vadd.f32 %v882, %v909
  %v940 = vadd.f32 %v883, %v922
  %v941 = vadd.f32 %v884, %v935
  %v942 = vxor.u32 %v938, 2147483648
  %v943 = vmul.f32 %v942, 1.442695
  %v944 = vpow.pop %v943
  %v945 = vadd.f32 %v944, 1.0
  %v946 = vrcp.pop %v945
  %v947 = vmul.f32 %v945, %v946
  %v948 = vsub.f32 1.0, %v947
  %v949 = vmul.f32 %v946, %v948
  %v950 = vadd.f32 %v946, %v949
  %vm951 = vweird.f32 %v945
  %vm952 = vweird.f32 %v946
  %vm953 = vmor %vm951, %vm952
  %v954 = vsel %vm953, %v946, %v950
  %v955 = vand.u32 2147483647, %v945
  %vm956 = vcmp.eq.f32.partialorder %v955, 8.507059e+37
  %v957 = vand.u32 %v945, 2147483648
  %v958 = vor.u32 1.1754944e-38, %v957
  %v959 = vsel %vm956, %v958, %v954
  %v960 = vmul.f32 1.0, %v959
  %v961 = vxor.u32 %v939, 2147483648
  %v962 = vmul.f32 %v961, 1.442695
  %v963 = vpow.pop %v962
  %v964 = vadd.f32 %v963, 1.0
  %v965 = vrcp.pop %v964
  %v966 = vmul.f32 %v964, %v965
  %v967 = vsub.f32 1.0, %v966
  %v968 = vmul.f32 %v965, %v967
  %v969 = vadd.f32 %v965, %v968
  %vm970 = vweird.f32 %v964
  %vm971 = vweird.f32 %v965
  %vm972 = vmor %vm970, %vm971
  %v973 = vsel %vm972, %v965, %v969
  %v974 = vand.u32 2147483647, %v964
  %vm975 = vcmp.eq.f32.partialorder %v974, 8.507059e+37
  %v976 = vand.u32 %v964, 2147483648
  %v977 = vor.u32 1.1754944e-38, %v976
  %v978 = vsel %vm975, %v977, %v973
  %v979 = vmul.f32 1.0, %v978
  %v980 = vtanh.pop %v940
  %v981 = vxor.u32 %v941, 2147483648
  %v982 = vmul.f32 %v981, 1.442695
  %v983 = vpow.pop %v982
  %v984 = vadd.f32 %v983, 1.0
  %v985 = vrcp.pop %v984
  %v986 = vmul.f32 %v984, %v985
  %v987 = vsub.f32 1.0, %v986
  %v988 = vmul.f32 %v985, %v987
  %v989 = vadd.f32 %v985, %v988
  %vm990 = vweird.f32 %v984
  %vm991 = vweird.f32 %v985
  %vm992 = vmor %vm990, %vm991
  %v993 = vsel %vm992, %v985, %v989
  %v994 = vand.u32 2147483647, %v984
  %vm995 = vcmp.eq.f32.partialorder %v994, 8.507059e+37
  %v996 = vand.u32 %v984, 2147483648
  %v997 = vor.u32 1.1754944e-38, %v996
  %v998 = vsel %vm995, %v997, %v993
  %v999 = vmul.f32 1.0, %v998
  %v1000 = vmul.f32 %v979, %v879
  %v1001 = vmul.f32 %v960, %v980
  %v1002 = vadd.f32 %v1000, %v1001
  %v1003 = vtanh.pop %v1002
  %v1004 = vmul.f32 %v999, %v1003
  %1005 = vst [vmem:[#allocation5] sm:$0xff] %v1004
  %1006 = vst [vmem:[#allocation6] sm:$0xff] %v1002
  %v1007 = vpack.c.bf16 %v1004, %v1004
  %s1008 = scalar_lea.vmem %s4, 12
  %1009 = vst [vmem:[%s1008] sm:$0xf] %v1007
  %v1010 = vld [vmem:[#allocation5] sm:$0xff]
  %v1011 = vld [vmem:[#allocation6] sm:$0xff]
  %s1012 = scalar_lea.vmem [#allocation4], 128
  %v1013 = vld [vmem:[%s1012] sm:$0xff]
  %v1014 = vld [vmem:[%s1012 + $0x8] sm:$0xff]
  %v1015 = vld [vmem:[%s1012 + $0x10] sm:$0xff]
  %v1016 = vld [vmem:[%s1012 + $0x18] sm:$0xff]
  %v1017 = vpack.c.bf16 %v1010, %v1010
  %1018 = vmatpush.bf16.msra.mxu0 %v455
  %1019 = vmatpush.bf16.msra.mxu0 %v451
  %1020 = vmatpush.bf16.msra.mxu0 %v447
  %1021 = vmatpush.bf16.msra.mxu0 %v443
  %1022 = vmatpush.bf16.msra.mxu0 %v439
  %1023 = vmatpush.bf16.msra.mxu0 %v435
  %1024 = vmatpush.bf16.msra.mxu0 %v431
  %1025 = vmatpush.bf16.msra.mxu0 %v427
  %1026 = vmatmul.bf16.gmra.mxu0 %v1017
  %v1027 = vpop.f32.mrf.mxu0
  %v1028 = vadd.f32 0.0, %v1027
  %v1029 = vpop.f32.mrf.mxu0
  %1030 = vdwg.mxu0
  %1031 = vmatpush.bf16.msra.mxu0 %v456
  %1032 = vmatpush.bf16.msra.mxu0 %v452
  %1033 = vmatpush.bf16.msra.mxu0 %v448
  %1034 = vmatpush.bf16.msra.mxu0 %v444
  %1035 = vmatpush.bf16.msra.mxu0 %v440
  %1036 = vmatpush.bf16.msra.mxu0 %v436
  %1037 = vmatpush.bf16.msra.mxu0 %v432
  %1038 = vmatpush.bf16.msra.mxu0 %v428
  %1039 = vmatmul.bf16.gmra.mxu0 %v1017
  %v1040 = vpop.f32.mrf.mxu0
  %v1041 = vadd.f32 0.0, %v1040
  %v1042 = vpop.f32.mrf.mxu0
  %1043 = vdwg.mxu0
  %1044 = vmatpush.bf16.msra.mxu0 %v457
  %1045 = vmatpush.bf16.msra.mxu0 %v453
  %1046 = vmatpush.bf16.msra.mxu0 %v449
  %1047 = vmatpush.bf16.msra.mxu0 %v445
  %1048 = vmatpush.bf16.msra.mxu0 %v441
  %1049 = vmatpush.bf16.msra.mxu0 %v437
  %1050 = vmatpush.bf16.msra.mxu0 %v433
  %1051 = vmatpush.bf16.msra.mxu0 %v429
  %1052 = vmatmul.bf16.gmra.mxu0 %v1017
  %v1053 = vpop.f32.mrf.mxu0
  %v1054 = vadd.f32 0.0, %v1053
  %v1055 = vpop.f32.mrf.mxu0
  %1056 = vdwg.mxu0
  %1057 = vmatpush.bf16.msra.mxu0 %v458
  %1058 = vmatpush.bf16.msra.mxu0 %v454
  %1059 = vmatpush.bf16.msra.mxu0 %v450
  %1060 = vmatpush.bf16.msra.mxu0 %v446
  %1061 = vmatpush.bf16.msra.mxu0 %v442
  %1062 = vmatpush.bf16.msra.mxu0 %v438
  %1063 = vmatpush.bf16.msra.mxu0 %v434
  %1064 = vmatpush.bf16.msra.mxu0 %v430
  %1065 = vmatmul.bf16.gmra.mxu0 %v1017
  %v1066 = vpop.f32.mrf.mxu0
  %v1067 = vadd.f32 0.0, %v1066
  %v1068 = vpop.f32.mrf.mxu0
  %1069 = vdwg.mxu0
  %v1070 = vadd.f32 %v1013, %v1028
  %v1071 = vadd.f32 %v1014, %v1041
  %v1072 = vadd.f32 %v1015, %v1054
  %v1073 = vadd.f32 %v1016, %v1067
  %v1074 = vxor.u32 %v1070, 2147483648
  %v1075 = vmul.f32 %v1074, 1.442695
  %v1076 = vpow.pop %v1075
  %v1077 = vadd.f32 %v1076, 1.0
  %v1078 = vrcp.pop %v1077
  %v1079 = vmul.f32 %v1077, %v1078
  %v1080 = vsub.f32 1.0, %v1079
  %v1081 = vmul.f32 %v1078, %v1080
  %v1082 = vadd.f32 %v1078, %v1081
  %vm1083 = vweird.f32 %v1077
  %vm1084 = vweird.f32 %v1078
  %vm1085 = vmor %vm1083, %vm1084
  %v1086 = vsel %vm1085, %v1078, %v1082
  %v1087 = vand.u32 2147483647, %v1077
  %vm1088 = vcmp.eq.f32.partialorder %v1087, 8.507059e+37
  %v1089 = vand.u32 %v1077, 2147483648
  %v1090 = vor.u32 1.1754944e-38, %v1089
  %v1091 = vsel %vm1088, %v1090, %v1086
  %v1092 = vmul.f32 1.0, %v1091
  %v1093 = vxor.u32 %v1071, 2147483648
  %v1094 = vmul.f32 %v1093, 1.442695
  %v1095 = vpow.pop %v1094
  %v1096 = vadd.f32 %v1095, 1.0
  %v1097 = vrcp.pop %v1096
  %v1098 = vmul.f32 %v1096, %v1097
  %v1099 = vsub.f32 1.0, %v1098
  %v1100 = vmul.f32 %v1097, %v1099
  %v1101 = vadd.f32 %v1097, %v1100
  %vm1102 = vweird.f32 %v1096
  %vm1103 = vweird.f32 %v1097
  %vm1104 = vmor %vm1102, %vm1103
  %v1105 = vsel %vm1104, %v1097, %v1101
  %v1106 = vand.u32 2147483647, %v1096
  %vm1107 = vcmp.eq.f32.partialorder %v1106, 8.507059e+37
  %v1108 = vand.u32 %v1096, 2147483648
  %v1109 = vor.u32 1.1754944e-38, %v1108
  %v1110 = vsel %vm1107, %v1109, %v1105
  %v1111 = vmul.f32 1.0, %v1110
  %v1112 = vtanh.pop %v1072
  %v1113 = vxor.u32 %v1073, 2147483648
  %v1114 = vmul.f32 %v1113, 1.442695
  %v1115 = vpow.pop %v1114
  %v1116 = vadd.f32 %v1115, 1.0
  %v1117 = vrcp.pop %v1116
  %v1118 = vmul.f32 %v1116, %v1117
  %v1119 = vsub.f32 1.0, %v1118
  %v1120 = vmul.f32 %v1117, %v1119
  %v1121 = vadd.f32 %v1117, %v1120
  %vm1122 = vweird.f32 %v1116
  %vm1123 = vweird.f32 %v1117
  %vm1124 = vmor %vm1122, %vm1123
  %v1125 = vsel %vm1124, %v1117, %v1121
  %v1126 = vand.u32 2147483647, %v1116
  %vm1127 = vcmp.eq.f32.partialorder %v1126, 8.507059e+37
  %v1128 = vand.u32 %v1116, 2147483648
  %v1129 = vor.u32 1.1754944e-38, %v1128
  %v1130 = vsel %vm1127, %v1129, %v1125
  %v1131 = vmul.f32 1.0, %v1130
  %v1132 = vmul.f32 %v1111, %v1011
  %v1133 = vmul.f32 %v1092, %v1112
  %v1134 = vadd.f32 %v1132, %v1133
  %v1135 = vtanh.pop %v1134
  %v1136 = vmul.f32 %v1131, %v1135
  %1137 = vst [vmem:[#allocation5] sm:$0xff] %v1136
  %1138 = vst [vmem:[#allocation6] sm:$0xff] %v1134
  %v1139 = vpack.c.bf16 %v1136, %v1136
  %s1140 = scalar_lea.vmem %s4, 16
  %1141 = vst [vmem:[%s1140] sm:$0xf] %v1139
  %v1142 = vld [vmem:[#allocation5] sm:$0xff]
  %v1143 = vld [vmem:[#allocation6] sm:$0xff]
  %s1144 = scalar_lea.vmem [#allocation4], 160
  %v1145 = vld [vmem:[%s1144] sm:$0xff]
  %v1146 = vld [vmem:[%s1144 + $0x8] sm:$0xff]
  %v1147 = vld [vmem:[%s1144 + $0x10] sm:$0xff]
  %v1148 = vld [vmem:[%s1144 + $0x18] sm:$0xff]
  %v1149 = vpack.c.bf16 %v1142, %v1142
  %1150 = vmatpush.bf16.msra.mxu0 %v455
  %1151 = vmatpush.bf16.msra.mxu0 %v451
  %1152 = vmatpush.bf16.msra.mxu0 %v447
  %1153 = vmatpush.bf16.msra.mxu0 %v443
  %1154 = vmatpush.bf16.msra.mxu0 %v439
  %1155 = vmatpush.bf16.msra.mxu0 %v435
  %1156 = vmatpush.bf16.msra.mxu0 %v431
  %1157 = vmatpush.bf16.msra.mxu0 %v427
  %1158 = vmatmul.bf16.gmra.mxu0 %v1149
  %v1159 = vpop.f32.mrf.mxu0
  %v1160 = vadd.f32 0.0, %v1159
  %v1161 = vpop.f32.mrf.mxu0
  %1162 = vdwg.mxu0
  %1163 = vmatpush.bf16.msra.mxu0 %v456
  %1164 = vmatpush.bf16.msra.mxu0 %v452
  %1165 = vmatpush.bf16.msra.mxu0 %v448
  %1166 = vmatpush.bf16.msra.mxu0 %v444
  %1167 = vmatpush.bf16.msra.mxu0 %v440
  %1168 = vmatpush.bf16.msra.mxu0 %v436
  %1169 = vmatpush.bf16.msra.mxu0 %v432
  %1170 = vmatpush.bf16.msra.mxu0 %v428
  %1171 = vmatmul.bf16.gmra.mxu0 %v1149
  %v1172 = vpop.f32.mrf.mxu0
  %v1173 = vadd.f32 0.0, %v1172
  %v1174 = vpop.f32.mrf.mxu0
  %1175 = vdwg.mxu0
  %1176 = vmatpush.bf16.msra.mxu0 %v457
  %1177 = vmatpush.bf16.msra.mxu0 %v453
  %1178 = vmatpush.bf16.msra.mxu0 %v449
  %1179 = vmatpush.bf16.msra.mxu0 %v445
  %1180 = vmatpush.bf16.msra.mxu0 %v441
  %1181 = vmatpush.bf16.msra.mxu0 %v437
  %1182 = vmatpush.bf16.msra.mxu0 %v433
  %1183 = vmatpush.bf16.msra.mxu0 %v429
  %1184 = vmatmul.bf16.gmra.mxu0 %v1149
  %v1185 = vpop.f32.mrf.mxu0
  %v1186 = vadd.f32 0.0, %v1185
  %v1187 = vpop.f32.mrf.mxu0
  %1188 = vdwg.mxu0
  %1189 = vmatpush.bf16.msra.mxu0 %v458
  %1190 = vmatpush.bf16.msra.mxu0 %v454
  %1191 = vmatpush.bf16.msra.mxu0 %v450
  %1192 = vmatpush.bf16.msra.mxu0 %v446
  %1193 = vmatpush.bf16.msra.mxu0 %v442
  %1194 = vmatpush.bf16.msra.mxu0 %v438
  %1195 = vmatpush.bf16.msra.mxu0 %v434
  %1196 = vmatpush.bf16.msra.mxu0 %v430
  %1197 = vmatmul.bf16.gmra.mxu0 %v1149
  %v1198 = vpop.f32.mrf.mxu0
  %v1199 = vadd.f32 0.0, %v1198
  %v1200 = vpop.f32.mrf.mxu0
  %1201 = vdwg.mxu0
  %v1202 = vadd.f32 %v1145, %v1160
  %v1203 = vadd.f32 %v1146, %v1173
  %v1204 = vadd.f32 %v1147, %v1186
  %v1205 = vadd.f32 %v1148, %v1199
  %v1206 = vxor.u32 %v1202, 2147483648
  %v1207 = vmul.f32 %v1206, 1.442695
  %v1208 = vpow.pop %v1207
  %v1209 = vadd.f32 %v1208, 1.0
  %v1210 = vrcp.pop %v1209
  %v1211 = vmul.f32 %v1209, %v1210
  %v1212 = vsub.f32 1.0, %v1211
  %v1213 = vmul.f32 %v1210, %v1212
  %v1214 = vadd.f32 %v1210, %v1213
  %vm1215 = vweird.f32 %v1209
  %vm1216 = vweird.f32 %v1210
  %vm1217 = vmor %vm1215, %vm1216
  %v1218 = vsel %vm1217, %v1210, %v1214
  %v1219 = vand.u32 2147483647, %v1209
  %vm1220 = vcmp.eq.f32.partialorder %v1219, 8.507059e+37
  %v1221 = vand.u32 %v1209, 2147483648
  %v1222 = vor.u32 1.1754944e-38, %v1221
  %v1223 = vsel %vm1220, %v1222, %v1218
  %v1224 = vmul.f32 1.0, %v1223
  %v1225 = vxor.u32 %v1203, 2147483648
  %v1226 = vmul.f32 %v1225, 1.442695
  %v1227 = vpow.pop %v1226
  %v1228 = vadd.f32 %v1227, 1.0
  %v1229 = vrcp.pop %v1228
  %v1230 = vmul.f32 %v1228, %v1229
  %v1231 = vsub.f32 1.0, %v1230
  %v1232 = vmul.f32 %v1229, %v1231
  %v1233 = vadd.f32 %v1229, %v1232
  %vm1234 = vweird.f32 %v1228
  %vm1235 = vweird.f32 %v1229
  %vm1236 = vmor %vm1234, %vm1235
  %v1237 = vsel %vm1236, %v1229, %v1233
  %v1238 = vand.u32 2147483647, %v1228
  %vm1239 = vcmp.eq.f32.partialorder %v1238, 8.507059e+37
  %v1240 = vand.u32 %v1228, 2147483648
  %v1241 = vor.u32 1.1754944e-38, %v1240
  %v1242 = vsel %vm1239, %v1241, %v1237
  %v1243 = vmul.f32 1.0, %v1242
  %v1244 = vtanh.pop %v1204
  %v1245 = vxor.u32 %v1205, 2147483648
  %v1246 = vmul.f32 %v1245, 1.442695
  %v1247 = vpow.pop %v1246
  %v1248 = vadd.f32 %v1247, 1.0
  %v1249 = vrcp.pop %v1248
  %v1250 = vmul.f32 %v1248, %v1249
  %v1251 = vsub.f32 1.0, %v1250
  %v1252 = vmul.f32 %v1249, %v1251
  %v1253 = vadd.f32 %v1249, %v1252
  %vm1254 = vweird.f32 %v1248
  %vm1255 = vweird.f32 %v1249
  %vm1256 = vmor %vm1254, %vm1255
  %v1257 = vsel %vm1256, %v1249, %v1253
  %v1258 = vand.u32 2147483647, %v1248
  %vm1259 = vcmp.eq.f32.partialorder %v1258, 8.507059e+37
  %v1260 = vand.u32 %v1248, 2147483648
  %v1261 = vor.u32 1.1754944e-38, %v1260
  %v1262 = vsel %vm1259, %v1261, %v1257
  %v1263 = vmul.f32 1.0, %v1262
  %v1264 = vmul.f32 %v1243, %v1143
  %v1265 = vmul.f32 %v1224, %v1244
  %v1266 = vadd.f32 %v1264, %v1265
  %v1267 = vtanh.pop %v1266
  %v1268 = vmul.f32 %v1263, %v1267
  %1269 = vst [vmem:[#allocation5] sm:$0xff] %v1268
  %1270 = vst [vmem:[#allocation6] sm:$0xff] %v1266
  %v1271 = vpack.c.bf16 %v1268, %v1268
  %s1272 = scalar_lea.vmem %s4, 20
  %1273 = vst [vmem:[%s1272] sm:$0xf] %v1271
  %v1274 = vld [vmem:[#allocation5] sm:$0xff]
  %v1275 = vld [vmem:[#allocation6] sm:$0xff]
  %s1276 = scalar_lea.vmem [#allocation4], 192
  %v1277 = vld [vmem:[%s1276] sm:$0xff]
  %v1278 = vld [vmem:[%s1276 + $0x8] sm:$0xff]
  %v1279 = vld [vmem:[%s1276 + $0x10] sm:$0xff]
  %v1280 = vld [vmem:[%s1276 + $0x18] sm:$0xff]
  %v1281 = vpack.c.bf16 %v1274, %v1274
  %1282 = vmatpush.bf16.msra.mxu0 %v455
  %1283 = vmatpush.bf16.msra.mxu0 %v451
  %1284 = vmatpush.bf16.msra.mxu0 %v447
  %1285 = vmatpush.bf16.msra.mxu0 %v443
  %1286 = vmatpush.bf16.msra.mxu0 %v439
  %1287 = vmatpush.bf16.msra.mxu0 %v435
  %1288 = vmatpush.bf16.msra.mxu0 %v431
  %1289 = vmatpush.bf16.msra.mxu0 %v427
  %1290 = vmatmul.bf16.gmra.mxu0 %v1281
  %v1291 = vpop.f32.mrf.mxu0
  %v1292 = vadd.f32 0.0, %v1291
  %v1293 = vpop.f32.mrf.mxu0
  %1294 = vdwg.mxu0
  %1295 = vmatpush.bf16.msra.mxu0 %v456
  %1296 = vmatpush.bf16.msra.mxu0 %v452
  %1297 = vmatpush.bf16.msra.mxu0 %v448
  %1298 = vmatpush.bf16.msra.mxu0 %v444
  %1299 = vmatpush.bf16.msra.mxu0 %v440
  %1300 = vmatpush.bf16.msra.mxu0 %v436
  %1301 = vmatpush.bf16.msra.mxu0 %v432
  %1302 = vmatpush.bf16.msra.mxu0 %v428
  %1303 = vmatmul.bf16.gmra.mxu0 %v1281
  %v1304 = vpop.f32.mrf.mxu0
  %v1305 = vadd.f32 0.0, %v1304
  %v1306 = vpop.f32.mrf.mxu0
  %1307 = vdwg.mxu0
  %1308 = vmatpush.bf16.msra.mxu0 %v457
  %1309 = vmatpush.bf16.msra.mxu0 %v453
  %1310 = vmatpush.bf16.msra.mxu0 %v449
  %1311 = vmatpush.bf16.msra.mxu0 %v445
  %1312 = vmatpush.bf16.msra.mxu0 %v441
  %1313 = vmatpush.bf16.msra.mxu0 %v437
  %1314 = vmatpush.bf16.msra.mxu0 %v433
  %1315 = vmatpush.bf16.msra.mxu0 %v429
  %1316 = vmatmul.bf16.gmra.mxu0 %v1281
  %v1317 = vpop.f32.mrf.mxu0
  %v1318 = vadd.f32 0.0, %v1317
  %v1319 = vpop.f32.mrf.mxu0
  %1320 = vdwg.mxu0
  %1321 = vmatpush.bf16.msra.mxu0 %v458
  %1322 = vmatpush.bf16.msra.mxu0 %v454
  %1323 = vmatpush.bf16.msra.mxu0 %v450
  %1324 = vmatpush.bf16.msra.mxu0 %v446
  %1325 = vmatpush.bf16.msra.mxu0 %v442
  %1326 = vmatpush.bf16.msra.mxu0 %v438
  %1327 = vmatpush.bf16.msra.mxu0 %v434
  %1328 = vmatpush.bf16.msra.mxu0 %v430
  %1329 = vmatmul.bf16.gmra.mxu0 %v1281
  %v1330 = vpop.f32.mrf.mxu0
  %v1331 = vadd.f32 0.0, %v1330
  %v1332 = vpop.f32.mrf.mxu0
  %1333 = vdwg.mxu0
  %v1334 = vadd.f32 %v1277, %v1292
  %v1335 = vadd.f32 %v1278, %v1305
  %v1336 = vadd.f32 %v1279, %v1318
  %v1337 = vadd.f32 %v1280, %v1331
  %v1338 = vxor.u32 %v1334, 2147483648
  %v1339 = vmul.f32 %v1338, 1.442695
  %v1340 = vpow.pop %v1339
  %v1341 = vadd.f32 %v1340, 1.0
  %v1342 = vrcp.pop %v1341
  %v1343 = vmul.f32 %v1341, %v1342
  %v1344 = vsub.f32 1.0, %v1343
  %v1345 = vmul.f32 %v1342, %v1344
  %v1346 = vadd.f32 %v1342, %v1345
  %vm1347 = vweird.f32 %v1341
  %vm1348 = vweird.f32 %v1342
  %vm1349 = vmor %vm1347, %vm1348
  %v1350 = vsel %vm1349, %v1342, %v1346
  %v1351 = vand.u32 2147483647, %v1341
  %vm1352 = vcmp.eq.f32.partialorder %v1351, 8.507059e+37
  %v1353 = vand.u32 %v1341, 2147483648
  %v1354 = vor.u32 1.1754944e-38, %v1353
  %v1355 = vsel %vm1352, %v1354, %v1350
  %v1356 = vmul.f32 1.0, %v1355
  %v1357 = vxor.u32 %v1335, 2147483648
  %v1358 = vmul.f32 %v1357, 1.442695
  %v1359 = vpow.pop %v1358
  %v1360 = vadd.f32 %v1359, 1.0
  %v1361 = vrcp.pop %v1360
  %v1362 = vmul.f32 %v1360, %v1361
  %v1363 = vsub.f32 1.0, %v1362
  %v1364 = vmul.f32 %v1361, %v1363
  %v1365 = vadd.f32 %v1361, %v1364
  %vm1366 = vweird.f32 %v1360
  %vm1367 = vweird.f32 %v1361
  %vm1368 = vmor %vm1366, %vm1367
  %v1369 = vsel %vm1368, %v1361, %v1365
  %v1370 = vand.u32 2147483647, %v1360
  %vm1371 = vcmp.eq.f32.partialorder %v1370, 8.507059e+37
  %v1372 = vand.u32 %v1360, 2147483648
  %v1373 = vor.u32 1.1754944e-38, %v1372
  %v1374 = vsel %vm1371, %v1373, %v1369
  %v1375 = vmul.f32 1.0, %v1374
  %v1376 = vtanh.pop %v1336
  %v1377 = vxor.u32 %v1337, 2147483648
  %v1378 = vmul.f32 %v1377, 1.442695
  %v1379 = vpow.pop %v1378
  %v1380 = vadd.f32 %v1379, 1.0
  %v1381 = vrcp.pop %v1380
  %v1382 = vmul.f32 %v1380, %v1381
  %v1383 = vsub.f32 1.0, %v1382
  %v1384 = vmul.f32 %v1381, %v1383
  %v1385 = vadd.f32 %v1381, %v1384
  %vm1386 = vweird.f32 %v1380
  %vm1387 = vweird.f32 %v1381
  %vm1388 = vmor %vm1386, %vm1387
  %v1389 = vsel %vm1388, %v1381, %v1385
  %v1390 = vand.u32 2147483647, %v1380
  %vm1391 = vcmp.eq.f32.partialorder %v1390, 8.507059e+37
  %v1392 = vand.u32 %v1380, 2147483648
  %v1393 = vor.u32 1.1754944e-38, %v1392
  %v1394 = vsel %vm1391, %v1393, %v1389
  %v1395 = vmul.f32 1.0, %v1394
  %v1396 = vmul.f32 %v1375, %v1275
  %v1397 = vmul.f32 %v1356, %v1376
  %v1398 = vadd.f32 %v1396, %v1397
  %v1399 = vtanh.pop %v1398
  %v1400 = vmul.f32 %v1395, %v1399
  %1401 = vst [vmem:[#allocation5] sm:$0xff] %v1400
  %1402 = vst [vmem:[#allocation6] sm:$0xff] %v1398
  %v1403 = vpack.c.bf16 %v1400, %v1400
  %s1404 = scalar_lea.vmem %s4, 24
  %1405 = vst [vmem:[%s1404] sm:$0xf] %v1403
  %v1406 = vld [vmem:[#allocation5] sm:$0xff]
  %v1407 = vld [vmem:[#allocation6] sm:$0xff]
  %s1408 = scalar_lea.vmem [#allocation4], 224
  %v1409 = vld [vmem:[%s1408] sm:$0xff]
  %v1410 = vld [vmem:[%s1408 + $0x8] sm:$0xff]
  %v1411 = vld [vmem:[%s1408 + $0x10] sm:$0xff]
  %v1412 = vld [vmem:[%s1408 + $0x18] sm:$0xff]
  %v1413 = vpack.c.bf16 %v1406, %v1406
  %1414 = vmatpush.bf16.msra.mxu0 %v455
  %1415 = vmatpush.bf16.msra.mxu0 %v451
  %1416 = vmatpush.bf16.msra.mxu0 %v447
  %1417 = vmatpush.bf16.msra.mxu0 %v443
  %1418 = vmatpush.bf16.msra.mxu0 %v439
  %1419 = vmatpush.bf16.msra.mxu0 %v435
  %1420 = vmatpush.bf16.msra.mxu0 %v431
  %1421 = vmatpush.bf16.msra.mxu0 %v427
  %1422 = vmatmul.bf16.gmra.mxu0 %v1413
  %v1423 = vpop.f32.mrf.mxu0
  %v1424 = vadd.f32 0.0, %v1423
  %v1425 = vpop.f32.mrf.mxu0
  %1426 = vdwg.mxu0
  %1427 = vmatpush.bf16.msra.mxu0 %v456
  %1428 = vmatpush.bf16.msra.mxu0 %v452
  %1429 = vmatpush.bf16.msra.mxu0 %v448
  %1430 = vmatpush.bf16.msra.mxu0 %v444
  %1431 = vmatpush.bf16.msra.mxu0 %v440
  %1432 = vmatpush.bf16.msra.mxu0 %v436
  %1433 = vmatpush.bf16.msra.mxu0 %v432
  %1434 = vmatpush.bf16.msra.mxu0 %v428
  %1435 = vmatmul.bf16.gmra.mxu0 %v1413
  %v1436 = vpop.f32.mrf.mxu0
  %v1437 = vadd.f32 0.0, %v1436
  %v1438 = vpop.f32.mrf.mxu0
  %1439 = vdwg.mxu0
  %1440 = vmatpush.bf16.msra.mxu0 %v457
  %1441 = vmatpush.bf16.msra.mxu0 %v453
  %1442 = vmatpush.bf16.msra.mxu0 %v449
  %1443 = vmatpush.bf16.msra.mxu0 %v445
  %1444 = vmatpush.bf16.msra.mxu0 %v441
  %1445 = vmatpush.bf16.msra.mxu0 %v437
  %1446 = vmatpush.bf16.msra.mxu0 %v433
  %1447 = vmatpush.bf16.msra.mxu0 %v429
  %1448 = vmatmul.bf16.gmra.mxu0 %v1413
  %v1449 = vpop.f32.mrf.mxu0
  %v1450 = vadd.f32 0.0, %v1449
  %v1451 = vpop.f32.mrf.mxu0
  %1452 = vdwg.mxu0
  %1453 = vmatpush.bf16.msra.mxu0 %v458
  %1454 = vmatpush.bf16.msra.mxu0 %v454
  %1455 = vmatpush.bf16.msra.mxu0 %v450
  %1456 = vmatpush.bf16.msra.mxu0 %v446
  %1457 = vmatpush.bf16.msra.mxu0 %v442
  %1458 = vmatpush.bf16.msra.mxu0 %v438
  %1459 = vmatpush.bf16.msra.mxu0 %v434
  %1460 = vmatpush.bf16.msra.mxu0 %v430
  %1461 = vmatmul.bf16.gmra.mxu0 %v1413
  %v1462 = vpop.f32.mrf.mxu0
  %v1463 = vadd.f32 0.0, %v1462
  %v1464 = vpop.f32.mrf.mxu0
  %1465 = vdwg.mxu0
  %v1466 = vadd.f32 %v1409, %v1424
  %v1467 = vadd.f32 %v1410, %v1437
  %v1468 = vadd.f32 %v1411, %v1450
  %v1469 = vadd.f32 %v1412, %v1463
  %v1470 = vxor.u32 %v1466, 2147483648
  %v1471 = vmul.f32 %v1470, 1.442695
  %v1472 = vpow.pop %v1471
  %v1473 = vadd.f32 %v1472, 1.0
  %v1474 = vrcp.pop %v1473
  %v1475 = vmul.f32 %v1473, %v1474
  %v1476 = vsub.f32 1.0, %v1475
  %v1477 = vmul.f32 %v1474, %v1476
  %v1478 = vadd.f32 %v1474, %v1477
  %vm1479 = vweird.f32 %v1473
  %vm1480 = vweird.f32 %v1474
  %vm1481 = vmor %vm1479, %vm1480
  %v1482 = vsel %vm1481, %v1474, %v1478
  %v1483 = vand.u32 2147483647, %v1473
  %vm1484 = vcmp.eq.f32.partialorder %v1483, 8.507059e+37
  %v1485 = vand.u32 %v1473, 2147483648
  %v1486 = vor.u32 1.1754944e-38, %v1485
  %v1487 = vsel %vm1484, %v1486, %v1482
  %v1488 = vmul.f32 1.0, %v1487
  %v1489 = vxor.u32 %v1467, 2147483648
  %v1490 = vmul.f32 %v1489, 1.442695
  %v1491 = vpow.pop %v1490
  %v1492 = vadd.f32 %v1491, 1.0
  %v1493 = vrcp.pop %v1492
  %v1494 = vmul.f32 %v1492, %v1493
  %v1495 = vsub.f32 1.0, %v1494
  %v1496 = vmul.f32 %v1493, %v1495
  %v1497 = vadd.f32 %v1493, %v1496
  %vm1498 = vweird.f32 %v1492
  %vm1499 = vweird.f32 %v1493
  %vm1500 = vmor %vm1498, %vm1499
  %v1501 = vsel %vm1500, %v1493, %v1497
  %v1502 = vand.u32 2147483647, %v1492
  %vm1503 = vcmp.eq.f32.partialorder %v1502, 8.507059e+37
  %v1504 = vand.u32 %v1492, 2147483648
  %v1505 = vor.u32 1.1754944e-38, %v1504
  %v1506 = vsel %vm1503, %v1505, %v1501
  %v1507 = vmul.f32 1.0, %v1506
  %v1508 = vtanh.pop %v1468
  %v1509 = vxor.u32 %v1469, 2147483648
  %v1510 = vmul.f32 %v1509, 1.442695
  %v1511 = vpow.pop %v1510
  %v1512 = vadd.f32 %v1511, 1.0
  %v1513 = vrcp.pop %v1512
  %v1514 = vmul.f32 %v1512, %v1513
  %v1515 = vsub.f32 1.0, %v1514
  %v1516 = vmul.f32 %v1513, %v1515
  %v1517 = vadd.f32 %v1513, %v1516
  %vm1518 = vweird.f32 %v1512
  %vm1519 = vweird.f32 %v1513
  %vm1520 = vmor %vm1518, %vm1519
  %v1521 = vsel %vm1520, %v1513, %v1517
  %v1522 = vand.u32 2147483647, %v1512
  %vm1523 = vcmp.eq.f32.partialorder %v1522, 8.507059e+37
  %v1524 = vand.u32 %v1512, 2147483648
  %v1525 = vor.u32 1.1754944e-38, %v1524
  %v1526 = vsel %vm1523, %v1525, %v1521
  %v1527 = vmul.f32 1.0, %v1526
  %v1528 = vmul.f32 %v1507, %v1407
  %v1529 = vmul.f32 %v1488, %v1508
  %v1530 = vadd.f32 %v1528, %v1529
  %v1531 = vtanh.pop %v1530
  %v1532 = vmul.f32 %v1527, %v1531
  %1533 = vst [vmem:[#allocation5] sm:$0xff] %v1532
  %1534 = vst [vmem:[#allocation6] sm:$0xff] %v1530
  %v1535 = vpack.c.bf16 %v1532, %v1532
  %s1536 = scalar_lea.vmem %s4, 28
  %1537 = vst [vmem:[%s1536] sm:$0xf] %v1535
  // Predicated region
  $region37: #{encoder_lstm_forward.2} parent=0 // pred_check
    %p1538 = pneg %p17
  $region38: #{encoder_lstm_forward.2} parent=0 // pred_check_branch
    %1540 = sbr.rel (%p1538) target = $region40
  $region39: #{encoder_lstm_forward.2} parent=0 // pred_region
    %v1541 = vld [vmem:[#allocation5] sm:$0xff]
    %1542 = vst [vmem:[%s5] sm:$0xff] %v1541
    %v1543 = vld [vmem:[#allocation6] sm:$0xff]
    %1544 = vst [vmem:[%s6] sm:$0xff] %v1543
  $region40: #{encoder_lstm_forward.2} parent=0 // pred_fallthru
    _
  // Predicated region
  $region41: #{encoder_lstm_forward.2} parent=0 // pred_check
    _
  $region42: #{encoder_lstm_forward.2} parent=0 // pred_check_branch
    %1546 = sbr.rel (0) target = $region44
  $region43: #{encoder_lstm_forward.2} parent=0 // pred_region
    _
  $region44: #{encoder_lstm_forward.2} parent=0 // pred_fallthru
    _
  // Predicated region
  $region45: #{encoder_lstm_forward.2} parent=0 // pred_check
    _
  $region46: #{encoder_lstm_forward.2} parent=0 // pred_check_branch
    %1548 = sbr.rel (0) target = $region48
  $region47: #{encoder_lstm_forward.2} parent=0 // pred_region
    _
  $region48: #{encoder_lstm_forward.2} parent=0 // pred_fallthru
    _
  // Predicated region
  $region49: #{encoder_lstm_forward.2} parent=0 // pred_check
    _
  $region50: #{encoder_lstm_forward.2} parent=0 // pred_check_branch
    %1550 = sbr.rel (0) target = $region52
  $region51: #{encoder_lstm_forward.2} parent=0 // pred_region
    _
  $region52: #{encoder_lstm_forward.2} parent=0 // pred_fallthru
    _
  // Predicated region
  $region53: #{encoder_lstm_forward.2} parent=0 // pred_check
    _
  $region54: #{encoder_lstm_forward.2} parent=0 // pred_check_branch
    %1552 = sbr.rel (0) target = $region56
  $region55: #{encoder_lstm_forward.2} parent=0 // pred_region
    _
  $region56: #{encoder_lstm_forward.2} parent=0 // pred_fallthru
    _
  // Predicated region
  $region57: #{encoder_lstm_forward.2} parent=0 // pred_check
    _
  $region58: #{encoder_lstm_forward.2} parent=0 // pred_check_branch
    %1554 = sbr.rel (0) target = $region60
  $region59: #{encoder_lstm_forward.2} parent=0 // pred_region
    _
  $region60: #{encoder_lstm_forward.2} parent=0 // pred_fallthru
    _
  // Predicated region
  $region61: #{encoder_lstm_forward.2} parent=0 // pred_check
    _
  $region62: #{encoder_lstm_forward.2} parent=0 // pred_check_branch
    %1556 = sbr.rel (0) target = $region64
  $region63: #{encoder_lstm_forward.2} parent=0 // pred_region
    _
  $region64: #{encoder_lstm_forward.2} parent=0 // pred_fallthru
    _
  %1557 = vsyncmov [#allocation7]
  %s1558 = vpop.sfrf %1557
  %p1559 = scmp.eq.s32.totalorder %s1558, 0
  %p1560 = pneg %p1559
  %1562 = shalt.err (%p1560)
  %s1563 = scalar_lea.sflag [#allocation7], 1
  %1564 = vsyncmov %s1563
  %s1565 = vpop.sfrf %1564
  %p1566 = scmp.eq.s32.totalorder %s1565, 0
  %p1567 = pneg %p1566
  %1569 = shalt.err (%p1567)

// kernel: encoder_lstm_forward.3
$region0: #{encoder_lstm_forward.3}
  #allocation0 [shape = 'u32[]', space=smem, size = 0x4, offset = 0x4, fixed_abs, tag = 'smem constant byte address 0x4 - core index']
  #allocation1 [shape = 'u32[72,128]{1,0:T(1,128)}', space=vmem, size = 0x9000, scoped, tag = 'internal scratch']
  #allocation2 [shape = 'bf16[128,512]{1,0:T(8,128)(2,1)}', space=vmem, size = 0x20000, scoped, tag = 'scratch operand']
  #allocation3 [shape = 'bf16[128,512]{1,0:T(8,128)(2,1)}', space=vmem, size = 0x20000, scoped, tag = 'scratch operand']
  #allocation4 [shape = 'f32[8,8,512]{2,1,0:T(8,128)}', space=vmem, size = 0x20000, scoped, tag = 'scratch operand']
  #allocation5 [shape = 'f32[8,128]{1,0:T(8,128)}', space=vmem, size = 0x1000, scoped, tag = 'scratch operand']
  #allocation6 [shape = 'f32[8,128]{1,0:T(8,128)}', space=vmem, size = 0x1000, scoped, tag = 'scratch operand']
  #allocation7 [shape = 's32[2]{0}', space=sflag, size = 0x8, scoped, tag = 'scratch operand']
  #allocation8 [shape = 's32[]', space=sflag, size = 0x4, offset = 0, fixed_abs, tag = 'sflag constant byte address 0x0 - dummy sync flag']
  #allocation9 [shape = 's32[]', space=sflag, size = 0x4, offset = 0, fixed_abs, tag = 'sflag constant byte address 0x0 - dummy sync flag']
  #allocation10 [shape = 'u32[]', space=smem, size = 0x4, offset = 0x44, fixed_abs, tag = 'smem constant byte address 0x44 - assertion arg 0']
  #allocation11 [shape = 'u32[]', space=smem, size = 0x4, offset = 0x48, fixed_abs, tag = 'smem constant byte address 0x48 - assertion arg 1']
  #allocation12 [shape = 's32[]', space=sflag, size = 0x4, offset = 0, fixed_abs, tag = 'sflag constant byte address 0x0 - dummy sync flag']
  #allocation13 [shape = 's32[]', space=sflag, size = 0x4, offset = 0, fixed_abs, tag = 'sflag constant byte address 0x0 - dummy sync flag']
  %s0 = inlined_call_operand.vmem [shape: bf16[8,8,128], index: 0, kind: input, shape index: {}]
  %s1 = inlined_call_operand.hbm [shape: bf16[128,512], index: 1, kind: input, shape index: {}]
  %s2 = inlined_call_operand.hbm [shape: bf16[128,512], index: 2, kind: input, shape index: {}]
  %s3 = inlined_call_operand.vmem [shape: f32[1,512], index: 3, kind: input, shape index: {}]
  %s4 = inlined_call_operand.vmem [shape: f32[8,8,128], index: 4, kind: output, shape index: {0}]
  %s5 = inlined_call_operand.vmem [shape: f32[8,128], index: 5, kind: output, shape index: {1}]
  %s6 = inlined_call_operand.vmem [shape: f32[8,128], index: 6, kind: output, shape index: {2}]
  %7 = xla_tuple %s4, %s5, %s6
  %s8 = sld [smem:[#allocation0]]
  $region50: #{encoder_lstm_forward.3} parent=0
    _
  %s10 = ssub.s32 1, %s8
  %s11 = scalar_select 0, %s10, %s8
  // Predicated region
  $region2: #{encoder_lstm_forward.3} parent=0 // pred_check
    _
  $region3: #{encoder_lstm_forward.3} parent=0 // pred_check_branch
    %13 = sbr.rel (0) target = $region5
  $region4: #{encoder_lstm_forward.3} parent=0 // pred_region
    _
  $region5: #{encoder_lstm_forward.3} parent=0 // pred_fallthru
    _
  // Predicated region
  $region6: #{encoder_lstm_forward.3} parent=0 // pred_check
    _
  $region7: #{encoder_lstm_forward.3} parent=0 // pred_check_branch
    %15 = sbr.rel (0) target = $region9
  $region8: #{encoder_lstm_forward.3} parent=0 // pred_region
    _
  $region9: #{encoder_lstm_forward.3} parent=0 // pred_fallthru
    _
  %p16 = scmp.eq.s32.totalorder 0, 0
  // Predicated region
  $region10: #{encoder_lstm_forward.3} parent=0 // pred_check
    %p17 = pneg %p16
  $region11: #{encoder_lstm_forward.3} parent=0 // pred_check_branch
    %19 = sbr.rel (%p17) target = $region13
  $region12: #{encoder_lstm_forward.3} parent=0 // pred_region
    // Predicated region
    $region14: #{encoder_lstm_forward.3} parent=12 // pred_check
      _
    $region15: #{encoder_lstm_forward.3} parent=12 // pred_check_branch
      %21 = sbr.rel target = $region17
    $region16: #{encoder_lstm_forward.3} parent=12 // pred_region
      %22 = sst [smem:[#allocation10]] [#allocation9]
      %23 = sst [smem:[#allocation11]] [#allocation8]
    $region17: #{encoder_lstm_forward.3} parent=12 // pred_fallthru
      _
    %25 = shalt.err (0)
    %s27 = sshll.u32 %s1, 4
    %s28 = int_to_ptr.hbm [resolvable:$true] %s27
    %s29 = sshll.u32 [#allocation2], 4
    %s30 = int_to_ptr.vmem [resolvable:$true] %s29
    %32 = dma.hbm_to_vmem [thread:$0]  %s28, 4096, %s30, [#allocation7]
    %s33 = scalar_lea.sflag [#allocation7], 1
    // Predicated region
    $region18: #{encoder_lstm_forward.3} parent=12 // pred_check
      _
    $region19: #{encoder_lstm_forward.3} parent=12 // pred_check_branch
      %35 = sbr.rel target = $region21
    $region20: #{encoder_lstm_forward.3} parent=12 // pred_region
      %36 = sst [smem:[#allocation10]] [#allocation13]
      %37 = sst [smem:[#allocation11]] [#allocation12]
    $region21: #{encoder_lstm_forward.3} parent=12 // pred_fallthru
      _
    %39 = shalt.err (0)
    %s41 = sshll.u32 %s2, 4
    %s42 = int_to_ptr.hbm [resolvable:$true] %s41
    %s43 = sshll.u32 [#allocation3], 4
    %s44 = int_to_ptr.vmem [resolvable:$true] %s43
    %46 = dma.hbm_to_vmem [thread:$0]  %s42, 4096, %s44, %s33
    %s47 = smul.u32 4, 16
    %s48 = smul.u32 %s47, 4
    %s49 = sshll.u32 %s48, 4
    %50 = dma.done [#allocation7], %s49
    %s51 = sshll.u32 %s48, 4
    %52 = dma.done %s33, %s51
    %53 = vst [vmem:[#allocation5] sm:$0xff] 0.0
    %54 = vst [vmem:[#allocation6] sm:$0xff] 0.0
  $region13: #{encoder_lstm_forward.3} parent=0 // pred_fallthru
    _
  %v55 = vld [vmem:[%s0] sm:$0xf]
  %v56 = vld [vmem:[%s0 + $0x4] sm:$0xf]
  %v57 = vld [vmem:[%s0 + $0x8] sm:$0xf]
  %v58 = vld [vmem:[%s0 + $0xc] sm:$0xf]
  %v59 = vld [vmem:[%s0 + $0x10] sm:$0xf]
  %v60 = vld [vmem:[%s0 + $0x14] sm:$0xf]
  %v61 = vld [vmem:[%s0 + $0x18] sm:$0xf]
  %v62 = vld [vmem:[%s0 + $0x1c] sm:$0xf]
  %v63 = vld [vmem:[#allocation2] sm:$0xff]
  %v64 = vld [vmem:[#allocation2 + $0x8] sm:$0xff]
  %v65 = vld [vmem:[#allocation2 + $0x10] sm:$0xff]
  %v66 = vld [vmem:[#allocation2 + $0x18] sm:$0xff]
  %v67 = vld [vmem:[#allocation2 + $0x20] sm:$0xff]
  %v68 = vld [vmem:[#allocation2 + $0x28] sm:$0xff]
  %v69 = vld [vmem:[#allocation2 + $0x30] sm:$0xff]
  %v70 = vld [vmem:[#allocation2 + $0x38] sm:$0xff]
  %v71 = vld [vmem:[#allocation2 + $0x40] sm:$0xff]
  %v72 = vld [vmem:[#allocation2 + $0x48] sm:$0xff]
  %v73 = vld [vmem:[#allocation2 + $0x50] sm:$0xff]
  %v74 = vld [vmem:[#allocation2 + $0x58] sm:$0xff]
  %v75 = vld [vmem:[#allocation2 + $0x60] sm:$0xff]
  %v76 = vld [vmem:[#allocation2 + $0x68] sm:$0xff]
  %v77 = vld [vmem:[#allocation2 + $0x70] sm:$0xff]
  %v78 = vld [vmem:[#allocation2 + $0x78] sm:$0xff]
  %v79 = vld [vmem:[#allocation2 + $0x80] sm:$0xff]
  %v80 = vld [vmem:[#allocation2 + $0x88] sm:$0xff]
  %v81 = vld [vmem:[#allocation2 + $0x90] sm:$0xff]
  %v82 = vld [vmem:[#allocation2 + $0x98] sm:$0xff]
  %v83 = vld [vmem:[#allocation2 + $0xa0] sm:$0xff]
  %v84 = vld [vmem:[#allocation2 + $0xa8] sm:$0xff]
  %v85 = vld [vmem:[#allocation2 + $0xb0] sm:$0xff]
  %v86 = vld [vmem:[#allocation2 + $0xb8] sm:$0xff]
  %v87 = vld [vmem:[#allocation2 + $0xc0] sm:$0xff]
  %v88 = vld [vmem:[#allocation2 + $0xc8] sm:$0xff]
  %v89 = vld [vmem:[#allocation2 + $0xd0] sm:$0xff]
  %v90 = vld [vmem:[#allocation2 + $0xd8] sm:$0xff]
  %v91 = vld [vmem:[#allocation2 + $0xe0] sm:$0xff]
  %v92 = vld [vmem:[#allocation2 + $0xe8] sm:$0xff]
  %v93 = vld [vmem:[#allocation2 + $0xf0] sm:$0xff]
  %v94 = vld [vmem:[#allocation2 + $0xf8] sm:$0xff]
  %v95 = vld [vmem:[%s3] sm:$0xf]
  %v97 = vperm.slane %v95, 0
  %v98 = vperm.slane %v95, 1
  %v99 = vperm.slane %v95, 2
  %v100 = vperm.slane %v95, 3
  %v113 = vunpack.c.l.b16 %v55
  %v114 = vunpack.c.l.b16 %v56
  %v115 = vunpack.c.l.b16 %v57
  %v116 = vunpack.c.l.b16 %v58
  %v117 = vunpack.c.l.b16 %v59
  %v118 = vunpack.c.l.b16 %v60
  %v119 = vunpack.c.l.b16 %v61
  %v120 = vunpack.c.l.b16 %v62
  %v121 = vpack.c.b16 %v114, %v113
  %v122 = vpack.c.b16 %v116, %v115
  %v123 = vpack.c.b16 %v118, %v117
  %v124 = vpack.c.b16 %v120, %v119
  %v161 = vunpack.c.l.b16 %v63
  %v162 = vunpack.c.h.b16 %v63
  %v163 = vunpack.c.l.b16 %v64
  %v164 = vunpack.c.h.b16 %v64
  %v165 = vunpack.c.l.b16 %v65
  %v166 = vunpack.c.h.b16 %v65
  %v167 = vunpack.c.l.b16 %v66
  %v168 = vunpack.c.h.b16 %v66
  %v169 = vunpack.c.l.b16 %v67
  %v170 = vunpack.c.h.b16 %v67
  %v171 = vunpack.c.l.b16 %v68
  %v172 = vunpack.c.h.b16 %v68
  %v173 = vunpack.c.l.b16 %v69
  %v174 = vunpack.c.h.b16 %v69
  %v175 = vunpack.c.l.b16 %v70
  %v176 = vunpack.c.h.b16 %v70
  %v177 = vunpack.c.l.b16 %v71
  %v178 = vunpack.c.h.b16 %v71
  %v179 = vunpack.c.l.b16 %v72
  %v180 = vunpack.c.h.b16 %v72
  %v181 = vunpack.c.l.b16 %v73
  %v182 = vunpack.c.h.b16 %v73
  %v183 = vunpack.c.l.b16 %v74
  %v184 = vunpack.c.h.b16 %v74
  %v185 = vunpack.c.l.b16 %v75
  %v186 = vunpack.c.h.b16 %v75
  %v187 = vunpack.c.l.b16 %v76
  %v188 = vunpack.c.h.b16 %v76
  %v189 = vunpack.c.l.b16 %v77
  %v190 = vunpack.c.h.b16 %v77
  %v191 = vunpack.c.l.b16 %v78
  %v192 = vunpack.c.h.b16 %v78
  %v193 = vunpack.c.l.b16 %v79
  %v194 = vunpack.c.h.b16 %v79
  %v195 = vunpack.c.l.b16 %v80
  %v196 = vunpack.c.h.b16 %v80
  %v197 = vunpack.c.l.b16 %v81
  %v198 = vunpack.c.h.b16 %v81
  %v199 = vunpack.c.l.b16 %v82
  %v200 = vunpack.c.h.b16 %v82
  %v201 = vunpack.c.l.b16 %v83
  %v202 = vunpack.c.h.b16 %v83
  %v203 = vunpack.c.l.b16 %v84
  %v204 = vunpack.c.h.b16 %v84
  %v205 = vunpack.c.l.b16 %v85
  %v206 = vunpack.c.h.b16 %v85
  %v207 = vunpack.c.l.b16 %v86
  %v208 = vunpack.c.h.b16 %v86
  %v209 = vunpack.c.l.b16 %v87
  %v210 = vunpack.c.h.b16 %v87
  %v211 = vunpack.c.l.b16 %v88
  %v212 = vunpack.c.h.b16 %v88
  %v213 = vunpack.c.l.b16 %v89
  %v214 = vunpack.c.h.b16 %v89
  %v215 = vunpack.c.l.b16 %v90
  %v216 = vunpack.c.h.b16 %v90
  %v217 = vunpack.c.l.b16 %v91
  %v218 = vunpack.c.h.b16 %v91
  %v219 = vunpack.c.l.b16 %v92
  %v220 = vunpack.c.h.b16 %v92
  %v221 = vunpack.c.l.b16 %v93
  %v222 = vunpack.c.h.b16 %v93
  %v223 = vunpack.c.l.b16 %v94
  %v224 = vunpack.c.h.b16 %v94
  %v225 = vpack.c.b16 %v165, %v161
  %v226 = vpack.c.b16 %v166, %v162
  %v227 = vpack.c.b16 %v167, %v163
  %v228 = vpack.c.b16 %v168, %v164
  %v229 = vpack.c.b16 %v173, %v169
  %v230 = vpack.c.b16 %v174, %v170
  %v231 = vpack.c.b16 %v175, %v171
  %v232 = vpack.c.b16 %v176, %v172
  %v233 = vpack.c.b16 %v181, %v177
  %v234 = vpack.c.b16 %v182, %v178
  %v235 = vpack.c.b16 %v183, %v179
  %v236 = vpack.c.b16 %v184, %v180
  %v237 = vpack.c.b16 %v189, %v185
  %v238 = vpack.c.b16 %v190, %v186
  %v239 = vpack.c.b16 %v191, %v187
  %v240 = vpack.c.b16 %v192, %v188
  %v241 = vpack.c.b16 %v197, %v193
  %v242 = vpack.c.b16 %v198, %v194
  %v243 = vpack.c.b16 %v199, %v195
  %v244 = vpack.c.b16 %v200, %v196
  %v245 = vpack.c.b16 %v205, %v201
  %v246 = vpack.c.b16 %v206, %v202
  %v247 = vpack.c.b16 %v207, %v203
  %v248 = vpack.c.b16 %v208, %v204
  %v249 = vpack.c.b16 %v213, %v209
  %v250 = vpack.c.b16 %v214, %v210
  %v251 = vpack.c.b16 %v215, %v211
  %v252 = vpack.c.b16 %v216, %v212
  %v253 = vpack.c.b16 %v221, %v217
  %v254 = vpack.c.b16 %v222, %v218
  %v255 = vpack.c.b16 %v223, %v219
  %v256 = vpack.c.b16 %v224, %v220
  %289 = vmatpush.bf16.msra.mxu0 %v253
  %290 = vmatpush.bf16.msra.mxu0 %v249
  %291 = vmatpush.bf16.msra.mxu0 %v245
  %292 = vmatpush.bf16.msra.mxu0 %v241
  %293 = vmatpush.bf16.msra.mxu0 %v237
  %294 = vmatpush.bf16.msra.mxu0 %v233
  %295 = vmatpush.bf16.msra.mxu0 %v229
  %296 = vmatpush.bf16.msra.mxu0 %v225
  %297 = vmatmul.bf16.gmra.mxu0 %v121
  %v298 = vpop.f32.mrf.mxu0
  %v299 = vadd.f32 %v97, %v298
  %v300 = vpop.f32.mrf.mxu0
  %v301 = vadd.f32 %v97, %v300
  %302 = vmatmul.bf16.gmra.mxu0 %v122
  %v303 = vpop.f32.mrf.mxu0
  %v304 = vadd.f32 %v97, %v303
  %v305 = vpop.f32.mrf.mxu0
  %v306 = vadd.f32 %v97, %v305
  %307 = vmatmul.bf16.gmra.mxu0 %v123
  %v308 = vpop.f32.mrf.mxu0
  %v309 = vadd.f32 %v97, %v308
  %v310 = vpop.f32.mrf.mxu0
  %v311 = vadd.f32 %v97, %v310
  %312 = vmatmul.bf16.gmra.mxu0 %v124
  %v313 = vpop.f32.mrf.mxu0
  %v314 = vadd.f32 %v97, %v313
  %v315 = vpop.f32.mrf.mxu0
  %v316 = vadd.f32 %v97, %v315
  %317 = vdwg.mxu0
  %318 = vmatpush.bf16.msra.mxu0 %v254
  %319 = vmatpush.bf16.msra.mxu0 %v250
  %320 = vmatpush.bf16.msra.mxu0 %v246
  %321 = vmatpush.bf16.msra.mxu0 %v242
  %322 = vmatpush.bf16.msra.mxu0 %v238
  %323 = vmatpush.bf16.msra.mxu0 %v234
  %324 = vmatpush.bf16.msra.mxu0 %v230
  %325 = vmatpush.bf16.msra.mxu0 %v226
  %326 = vmatmul.bf16.gmra.mxu0 %v121
  %v327 = vpop.f32.mrf.mxu0
  %v328 = vadd.f32 %v98, %v327
  %v329 = vpop.f32.mrf.mxu0
  %v330 = vadd.f32 %v98, %v329
  %331 = vmatmul.bf16.gmra.mxu0 %v122
  %v332 = vpop.f32.mrf.mxu0
  %v333 = vadd.f32 %v98, %v332
  %v334 = vpop.f32.mrf.mxu0
  %v335 = vadd.f32 %v98, %v334
  %336 = vmatmul.bf16.gmra.mxu0 %v123
  %v337 = vpop.f32.mrf.mxu0
  %v338 = vadd.f32 %v98, %v337
  %v339 = vpop.f32.mrf.mxu0
  %v340 = vadd.f32 %v98, %v339
  %341 = vmatmul.bf16.gmra.mxu0 %v124
  %v342 = vpop.f32.mrf.mxu0
  %v343 = vadd.f32 %v98, %v342
  %v344 = vpop.f32.mrf.mxu0
  %v345 = vadd.f32 %v98, %v344
  %346 = vdwg.mxu0
  %347 = vmatpush.bf16.msra.mxu0 %v255
  %348 = vmatpush.bf16.msra.mxu0 %v251
  %349 = vmatpush.bf16.msra.mxu0 %v247
  %350 = vmatpush.bf16.msra.mxu0 %v243
  %351 = vmatpush.bf16.msra.mxu0 %v239
  %352 = vmatpush.bf16.msra.mxu0 %v235
  %353 = vmatpush.bf16.msra.mxu0 %v231
  %354 = vmatpush.bf16.msra.mxu0 %v227
  %355 = vmatmul.bf16.gmra.mxu0 %v121
  %v356 = vpop.f32.mrf.mxu0
  %v357 = vadd.f32 %v99, %v356
  %v358 = vpop.f32.mrf.mxu0
  %v359 = vadd.f32 %v99, %v358
  %360 = vmatmul.bf16.gmra.mxu0 %v122
  %v361 = vpop.f32.mrf.mxu0
  %v362 = vadd.f32 %v99, %v361
  %v363 = vpop.f32.mrf.mxu0
  %v364 = vadd.f32 %v99, %v363
  %365 = vmatmul.bf16.gmra.mxu0 %v123
  %v366 = vpop.f32.mrf.mxu0
  %v367 = vadd.f32 %v99, %v366
  %v368 = vpop.f32.mrf.mxu0
  %v369 = vadd.f32 %v99, %v368
  %370 = vmatmul.bf16.gmra.mxu0 %v124
  %v371 = vpop.f32.mrf.mxu0
  %v372 = vadd.f32 %v99, %v371
  %v373 = vpop.f32.mrf.mxu0
  %v374 = vadd.f32 %v99, %v373
  %375 = vdwg.mxu0
  %376 = vmatpush.bf16.msra.mxu0 %v256
  %377 = vmatpush.bf16.msra.mxu0 %v252
  %378 = vmatpush.bf16.msra.mxu0 %v248
  %379 = vmatpush.bf16.msra.mxu0 %v244
  %380 = vmatpush.bf16.msra.mxu0 %v240
  %381 = vmatpush.bf16.msra.mxu0 %v236
  %382 = vmatpush.bf16.msra.mxu0 %v232
  %383 = vmatpush.bf16.msra.mxu0 %v228
  %384 = vmatmul.bf16.gmra.mxu0 %v121
  %v385 = vpop.f32.mrf.mxu0
  %v386 = vadd.f32 %v100, %v385
  %v387 = vpop.f32.mrf.mxu0
  %v388 = vadd.f32 %v100, %v387
  %389 = vmatmul.bf16.gmra.mxu0 %v122
  %v390 = vpop.f32.mrf.mxu0
  %v391 = vadd.f32 %v100, %v390
  %v392 = vpop.f32.mrf.mxu0
  %v393 = vadd.f32 %v100, %v392
  %394 = vmatmul.bf16.gmra.mxu0 %v123
  %v395 = vpop.f32.mrf.mxu0
  %v396 = vadd.f32 %v100, %v395
  %v397 = vpop.f32.mrf.mxu0
  %v398 = vadd.f32 %v100, %v397
  %399 = vmatmul.bf16.gmra.mxu0 %v124
  %v400 = vpop.f32.mrf.mxu0
  %v401 = vadd.f32 %v100, %v400
  %v402 = vpop.f32.mrf.mxu0
  %v403 = vadd.f32 %v100, %v402
  %404 = vdwg.mxu0
  %405 = vst [vmem:[#allocation4] sm:$0xff] %v299
  %406 = vst [vmem:[#allocation4 + $0x8] sm:$0xff] %v328
  %407 = vst [vmem:[#allocation4 + $0x10] sm:$0xff] %v357
  %408 = vst [vmem:[#allocation4 + $0x18] sm:$0xff] %v386
  %409 = vst [vmem:[#allocation4 + $0x20] sm:$0xff] %v301
  %410 = vst [vmem:[#allocation4 + $0x28] sm:$0xff] %v330
  %411 = vst [vmem:[#allocation4 + $0x30] sm:$0xff] %v359
  %412 = vst [vmem:[#allocation4 + $0x38] sm:$0xff] %v388
  %413 = vst [vmem:[#allocation4 + $0x40] sm:$0xff] %v304
  %414 = vst [vmem:[#allocation4 + $0x48] sm:$0xff] %v333
  %415 = vst [vmem:[#allocation4 + $0x50] sm:$0xff] %v362
  %416 = vst [vmem:[#allocation4 + $0x58] sm:$0xff] %v391
  %417 = vst [vmem:[#allocation4 + $0x60] sm:$0xff] %v306
  %418 = vst [vmem:[#allocation4 + $0x68] sm:$0xff] %v335
  %419 = vst [vmem:[#allocation4 + $0x70] sm:$0xff] %v364
  %420 = vst [vmem:[#allocation4 + $0x78] sm:$0xff] %v393
  %421 = vst [vmem:[#allocation4 + $0x80] sm:$0xff] %v309
  %422 = vst [vmem:[#allocation4 + $0x88] sm:$0xff] %v338
  %423 = vst [vmem:[#allocation4 + $0x90] sm:$0xff] %v367
  %424 = vst [vmem:[#allocation4 + $0x98] sm:$0xff] %v396
  %425 = vst [vmem:[#allocation4 + $0xa0] sm:$0xff] %v311
  %426 = vst [vmem:[#allocation4 + $0xa8] sm:$0xff] %v340
  %427 = vst [vmem:[#allocation4 + $0xb0] sm:$0xff] %v369
  %428 = vst [vmem:[#allocation4 + $0xb8] sm:$0xff] %v398
  %429 = vst [vmem:[#allocation4 + $0xc0] sm:$0xff] %v314
  %430 = vst [vmem:[#allocation4 + $0xc8] sm:$0xff] %v343
  %431 = vst [vmem:[#allocation4 + $0xd0] sm:$0xff] %v372
  %432 = vst [vmem:[#allocation4 + $0xd8] sm:$0xff] %v401
  %433 = vst [vmem:[#allocation4 + $0xe0] sm:$0xff] %v316
  %434 = vst [vmem:[#allocation4 + $0xe8] sm:$0xff] %v345
  %435 = vst [vmem:[#allocation4 + $0xf0] sm:$0xff] %v374
  %436 = vst [vmem:[#allocation4 + $0xf8] sm:$0xff] %v403
  %v437 = vld [vmem:[#allocation3] sm:$0xff]
  %v438 = vld [vmem:[#allocation3 + $0x8] sm:$0xff]
  %v439 = vld [vmem:[#allocation3 + $0x10] sm:$0xff]
  %v440 = vld [vmem:[#allocation3 + $0x18] sm:$0xff]
  %v441 = vld [vmem:[#allocation3 + $0x20] sm:$0xff]
  %v442 = vld [vmem:[#allocation3 + $0x28] sm:$0xff]
  %v443 = vld [vmem:[#allocation3 + $0x30] sm:$0xff]
  %v444 = vld [vmem:[#allocation3 + $0x38] sm:$0xff]
  %v445 = vld [vmem:[#allocation3 + $0x40] sm:$0xff]
  %v446 = vld [vmem:[#allocation3 + $0x48] sm:$0xff]
  %v447 = vld [vmem:[#allocation3 + $0x50] sm:$0xff]
  %v448 = vld [vmem:[#allocation3 + $0x58] sm:$0xff]
  %v449 = vld [vmem:[#allocation3 + $0x60] sm:$0xff]
  %v450 = vld [vmem:[#allocation3 + $0x68] sm:$0xff]
  %v451 = vld [vmem:[#allocation3 + $0x70] sm:$0xff]
  %v452 = vld [vmem:[#allocation3 + $0x78] sm:$0xff]
  %v453 = vld [vmem:[#allocation3 + $0x80] sm:$0xff]
  %v454 = vld [vmem:[#allocation3 + $0x88] sm:$0xff]
  %v455 = vld [vmem:[#allocation3 + $0x90] sm:$0xff]
  %v456 = vld [vmem:[#allocation3 + $0x98] sm:$0xff]
  %v457 = vld [vmem:[#allocation3 + $0xa0] sm:$0xff]
  %v458 = vld [vmem:[#allocation3 + $0xa8] sm:$0xff]
  %v459 = vld [vmem:[#allocation3 + $0xb0] sm:$0xff]
  %v460 = vld [vmem:[#allocation3 + $0xb8] sm:$0xff]
  %v461 = vld [vmem:[#allocation3 + $0xc0] sm:$0xff]
  %v462 = vld [vmem:[#allocation3 + $0xc8] sm:$0xff]
  %v463 = vld [vmem:[#allocation3 + $0xd0] sm:$0xff]
  %v464 = vld [vmem:[#allocation3 + $0xd8] sm:$0xff]
  %v465 = vld [vmem:[#allocation3 + $0xe0] sm:$0xff]
  %v466 = vld [vmem:[#allocation3 + $0xe8] sm:$0xff]
  %v467 = vld [vmem:[#allocation3 + $0xf0] sm:$0xff]
  %v468 = vld [vmem:[#allocation3 + $0xf8] sm:$0xff]
  %v469 = vld [vmem:[#allocation5] sm:$0xff]
  %v470 = vld [vmem:[#allocation6] sm:$0xff]
  %v471 = vld [vmem:[#allocation4] sm:$0xff]
  %v472 = vld [vmem:[#allocation4 + $0x8] sm:$0xff]
  %v473 = vld [vmem:[#allocation4 + $0x10] sm:$0xff]
  %v474 = vld [vmem:[#allocation4 + $0x18] sm:$0xff]
  %v475 = vpack.c.bf16 %v469, %v469
  %v508 = vunpack.c.l.b16 %v437
  %v509 = vunpack.c.h.b16 %v437
  %v510 = vunpack.c.l.b16 %v438
  %v511 = vunpack.c.h.b16 %v438
  %v512 = vunpack.c.l.b16 %v439
  %v513 = vunpack.c.h.b16 %v439
  %v514 = vunpack.c.l.b16 %v440
  %v515 = vunpack.c.h.b16 %v440
  %v516 = vunpack.c.l.b16 %v441
  %v517 = vunpack.c.h.b16 %v441
  %v518 = vunpack.c.l.b16 %v442
  %v519 = vunpack.c.h.b16 %v442
  %v520 = vunpack.c.l.b16 %v443
  %v521 = vunpack.c.h.b16 %v443
  %v522 = vunpack.c.l.b16 %v444
  %v523 = vunpack.c.h.b16 %v444
  %v524 = vunpack.c.l.b16 %v445
  %v525 = vunpack.c.h.b16 %v445
  %v526 = vunpack.c.l.b16 %v446
  %v527 = vunpack.c.h.b16 %v446
  %v528 = vunpack.c.l.b16 %v447
  %v529 = vunpack.c.h.b16 %v447
  %v530 = vunpack.c.l.b16 %v448
  %v531 = vunpack.c.h.b16 %v448
  %v532 = vunpack.c.l.b16 %v449
  %v533 = vunpack.c.h.b16 %v449
  %v534 = vunpack.c.l.b16 %v450
  %v535 = vunpack.c.h.b16 %v450
  %v536 = vunpack.c.l.b16 %v451
  %v537 = vunpack.c.h.b16 %v451
  %v538 = vunpack.c.l.b16 %v452
  %v539 = vunpack.c.h.b16 %v452
  %v540 = vunpack.c.l.b16 %v453
  %v541 = vunpack.c.h.b16 %v453
  %v542 = vunpack.c.l.b16 %v454
  %v543 = vunpack.c.h.b16 %v454
  %v544 = vunpack.c.l.b16 %v455
  %v545 = vunpack.c.h.b16 %v455
  %v546 = vunpack.c.l.b16 %v456
  %v547 = vunpack.c.h.b16 %v456
  %v548 = vunpack.c.l.b16 %v457
  %v549 = vunpack.c.h.b16 %v457
  %v550 = vunpack.c.l.b16 %v458
  %v551 = vunpack.c.h.b16 %v458
  %v552 = vunpack.c.l.b16 %v459
  %v553 = vunpack.c.h.b16 %v459
  %v554 = vunpack.c.l.b16 %v460
  %v555 = vunpack.c.h.b16 %v460
  %v556 = vunpack.c.l.b16 %v461
  %v557 = vunpack.c.h.b16 %v461
  %v558 = vunpack.c.l.b16 %v462
  %v559 = vunpack.c.h.b16 %v462
  %v560 = vunpack.c.l.b16 %v463
  %v561 = vunpack.c.h.b16 %v463
  %v562 = vunpack.c.l.b16 %v464
  %v563 = vunpack.c.h.b16 %v464
  %v564 = vunpack.c.l.b16 %v465
  %v565 = vunpack.c.h.b16 %v465
  %v566 = vunpack.c.l.b16 %v466
  %v567 = vunpack.c.h.b16 %v466
  %v568 = vunpack.c.l.b16 %v467
  %v569 = vunpack.c.h.b16 %v467
  %v570 = vunpack.c.l.b16 %v468
  %v571 = vunpack.c.h.b16 %v468
  %v572 = vpack.c.b16 %v512, %v508
  %v573 = vpack.c.b16 %v513, %v509
  %v574 = vpack.c.b16 %v514, %v510
  %v575 = vpack.c.b16 %v515, %v511
  %v576 = vpack.c.b16 %v520, %v516
  %v577 = vpack.c.b16 %v521, %v517
  %v578 = vpack.c.b16 %v522, %v518
  %v579 = vpack.c.b16 %v523, %v519
  %v580 = vpack.c.b16 %v528, %v524
  %v581 = vpack.c.b16 %v529, %v525
  %v582 = vpack.c.b16 %v530, %v526
  %v583 = vpack.c.b16 %v531, %v527
  %v584 = vpack.c.b16 %v536, %v532
  %v585 = vpack.c.b16 %v537, %v533
  %v586 = vpack.c.b16 %v538, %v534
  %v587 = vpack.c.b16 %v539, %v535
  %v588 = vpack.c.b16 %v544, %v540
  %v589 = vpack.c.b16 %v545, %v541
  %v590 = vpack.c.b16 %v546, %v542
  %v591 = vpack.c.b16 %v547, %v543
  %v592 = vpack.c.b16 %v552, %v548
  %v593 = vpack.c.b16 %v553, %v549
  %v594 = vpack.c.b16 %v554, %v550
  %v595 = vpack.c.b16 %v555, %v551
  %v596 = vpack.c.b16 %v560, %v556
  %v597 = vpack.c.b16 %v561, %v557
  %v598 = vpack.c.b16 %v562, %v558
  %v599 = vpack.c.b16 %v563, %v559
  %v600 = vpack.c.b16 %v568, %v564
  %v601 = vpack.c.b16 %v569, %v565
  %v602 = vpack.c.b16 %v570, %v566
  %v603 = vpack.c.b16 %v571, %v567
  %636 = vmatpush.bf16.msra.mxu0 %v600
  %637 = vmatpush.bf16.msra.mxu0 %v596
  %638 = vmatpush.bf16.msra.mxu0 %v592
  %639 = vmatpush.bf16.msra.mxu0 %v588
  %640 = vmatpush.bf16.msra.mxu0 %v584
  %641 = vmatpush.bf16.msra.mxu0 %v580
  %642 = vmatpush.bf16.msra.mxu0 %v576
  %643 = vmatpush.bf16.msra.mxu0 %v572
  %644 = vmatmul.bf16.gmra.mxu0 %v475
  %v645 = vpop.f32.mrf.mxu0
  %v646 = vadd.f32 0.0, %v645
  %v647 = vpop.f32.mrf.mxu0
  %648 = vdwg.mxu0
  %649 = vmatpush.bf16.msra.mxu0 %v601
  %650 = vmatpush.bf16.msra.mxu0 %v597
  %651 = vmatpush.bf16.msra.mxu0 %v593
  %652 = vmatpush.bf16.msra.mxu0 %v589
  %653 = vmatpush.bf16.msra.mxu0 %v585
  %654 = vmatpush.bf16.msra.mxu0 %v581
  %655 = vmatpush.bf16.msra.mxu0 %v577
  %656 = vmatpush.bf16.msra.mxu0 %v573
  %657 = vmatmul.bf16.gmra.mxu0 %v475
  %v658 = vpop.f32.mrf.mxu0
  %v659 = vadd.f32 0.0, %v658
  %v660 = vpop.f32.mrf.mxu0
  %661 = vdwg.mxu0
  %662 = vmatpush.bf16.msra.mxu0 %v602
  %663 = vmatpush.bf16.msra.mxu0 %v598
  %664 = vmatpush.bf16.msra.mxu0 %v594
  %665 = vmatpush.bf16.msra.mxu0 %v590
  %666 = vmatpush.bf16.msra.mxu0 %v586
  %667 = vmatpush.bf16.msra.mxu0 %v582
  %668 = vmatpush.bf16.msra.mxu0 %v578
  %669 = vmatpush.bf16.msra.mxu0 %v574
  %670 = vmatmul.bf16.gmra.mxu0 %v475
  %v671 = vpop.f32.mrf.mxu0
  %v672 = vadd.f32 0.0, %v671
  %v673 = vpop.f32.mrf.mxu0
  %674 = vdwg.mxu0
  %675 = vmatpush.bf16.msra.mxu0 %v603
  %676 = vmatpush.bf16.msra.mxu0 %v599
  %677 = vmatpush.bf16.msra.mxu0 %v595
  %678 = vmatpush.bf16.msra.mxu0 %v591
  %679 = vmatpush.bf16.msra.mxu0 %v587
  %680 = vmatpush.bf16.msra.mxu0 %v583
  %681 = vmatpush.bf16.msra.mxu0 %v579
  %682 = vmatpush.bf16.msra.mxu0 %v575
  %683 = vmatmul.bf16.gmra.mxu0 %v475
  %v684 = vpop.f32.mrf.mxu0
  %v685 = vadd.f32 0.0, %v684
  %v686 = vpop.f32.mrf.mxu0
  %687 = vdwg.mxu0
  %v688 = vadd.f32 %v471, %v646
  %v689 = vadd.f32 %v472, %v659
  %v690 = vadd.f32 %v473, %v672
  %v691 = vadd.f32 %v474, %v685
  %v692 = vxor.u32 %v688, 2147483648
  %v693 = vmul.f32 %v692, 1.442695
  %v694 = vpow.pop %v693
  %v695 = vadd.f32 %v694, 1.0
  %v696 = vrcp.pop %v695
  %v697 = vmul.f32 %v695, %v696
  %v698 = vsub.f32 1.0, %v697
  %v699 = vmul.f32 %v696, %v698
  %v700 = vadd.f32 %v696, %v699
  %vm701 = vweird.f32 %v695
  %vm702 = vweird.f32 %v696
  %vm703 = vmor %vm701, %vm702
  %v704 = vsel %vm703, %v696, %v700
  %v705 = vand.u32 2147483647, %v695
  %vm706 = vcmp.eq.f32.partialorder %v705, 8.507059e+37
  %v707 = vand.u32 %v695, 2147483648
  %v708 = vor.u32 1.1754944e-38, %v707
  %v709 = vsel %vm706, %v708, %v704
  %v710 = vmul.f32 1.0, %v709
  %v711 = vxor.u32 %v689, 2147483648
  %v712 = vmul.f32 %v711, 1.442695
  %v713 = vpow.pop %v712
  %v714 = vadd.f32 %v713, 1.0
  %v715 = vrcp.pop %v714
  %v716 = vmul.f32 %v714, %v715
  %v717 = vsub.f32 1.0, %v716
  %v718 = vmul.f32 %v715, %v717
  %v719 = vadd.f32 %v715, %v718
  %vm720 = vweird.f32 %v714
  %vm721 = vweird.f32 %v715
  %vm722 = vmor %vm720, %vm721
  %v723 = vsel %vm722, %v715, %v719
  %v724 = vand.u32 2147483647, %v714
  %vm725 = vcmp.eq.f32.partialorder %v724, 8.507059e+37
  %v726 = vand.u32 %v714, 2147483648
  %v727 = vor.u32 1.1754944e-38, %v726
  %v728 = vsel %vm725, %v727, %v723
  %v729 = vmul.f32 1.0, %v728
  %v730 = vtanh.pop %v690
  %v731 = vxor.u32 %v691, 2147483648
  %v732 = vmul.f32 %v731, 1.442695
  %v733 = vpow.pop %v732
  %v734 = vadd.f32 %v733, 1.0
  %v735 = vrcp.pop %v734
  %v736 = vmul.f32 %v734, %v735
  %v737 = vsub.f32 1.0, %v736
  %v738 = vmul.f32 %v735, %v737
  %v739 = vadd.f32 %v735, %v738
  %vm740 = vweird.f32 %v734
  %vm741 = vweird.f32 %v735
  %vm742 = vmor %vm740, %vm741
  %v743 = vsel %vm742, %v735, %v739
  %v744 = vand.u32 2147483647, %v734
  %vm745 = vcmp.eq.f32.partialorder %v744, 8.507059e+37
  %v746 = vand.u32 %v734, 2147483648
  %v747 = vor.u32 1.1754944e-38, %v746
  %v748 = vsel %vm745, %v747, %v743
  %v749 = vmul.f32 1.0, %v748
  %v750 = vmul.f32 %v729, %v470
  %v751 = vmul.f32 %v710, %v730
  %v752 = vadd.f32 %v750, %v751
  %v753 = vtanh.pop %v752
  %v754 = vmul.f32 %v749, %v753
  %755 = vst [vmem:[#allocation5] sm:$0xff] %v754
  %756 = vst [vmem:[#allocation6] sm:$0xff] %v752
  %757 = vst [vmem:[%s4] sm:$0xff] %v754
  %v758 = vld [vmem:[#allocation5] sm:$0xff]
  %v759 = vld [vmem:[#allocation6] sm:$0xff]
  %s760 = scalar_lea.vmem [#allocation4], 32
  %v761 = vld [vmem:[%s760] sm:$0xff]
  %v762 = vld [vmem:[%s760 + $0x8] sm:$0xff]
  %v763 = vld [vmem:[%s760 + $0x10] sm:$0xff]
  %v764 = vld [vmem:[%s760 + $0x18] sm:$0xff]
  %v765 = vpack.c.bf16 %v758, %v758
  %766 = vmatpush.bf16.msra.mxu0 %v600
  %767 = vmatpush.bf16.msra.mxu0 %v596
  %768 = vmatpush.bf16.msra.mxu0 %v592
  %769 = vmatpush.bf16.msra.mxu0 %v588
  %770 = vmatpush.bf16.msra.mxu0 %v584
  %771 = vmatpush.bf16.msra.mxu0 %v580
  %772 = vmatpush.bf16.msra.mxu0 %v576
  %773 = vmatpush.bf16.msra.mxu0 %v572
  %774 = vmatmul.bf16.gmra.mxu0 %v765
  %v775 = vpop.f32.mrf.mxu0
  %v776 = vadd.f32 0.0, %v775
  %v777 = vpop.f32.mrf.mxu0
  %778 = vdwg.mxu0
  %779 = vmatpush.bf16.msra.mxu0 %v601
  %780 = vmatpush.bf16.msra.mxu0 %v597
  %781 = vmatpush.bf16.msra.mxu0 %v593
  %782 = vmatpush.bf16.msra.mxu0 %v589
  %783 = vmatpush.bf16.msra.mxu0 %v585
  %784 = vmatpush.bf16.msra.mxu0 %v581
  %785 = vmatpush.bf16.msra.mxu0 %v577
  %786 = vmatpush.bf16.msra.mxu0 %v573
  %787 = vmatmul.bf16.gmra.mxu0 %v765
  %v788 = vpop.f32.mrf.mxu0
  %v789 = vadd.f32 0.0, %v788
  %v790 = vpop.f32.mrf.mxu0
  %791 = vdwg.mxu0
  %792 = vmatpush.bf16.msra.mxu0 %v602
  %793 = vmatpush.bf16.msra.mxu0 %v598
  %794 = vmatpush.bf16.msra.mxu0 %v594
  %795 = vmatpush.bf16.msra.mxu0 %v590
  %796 = vmatpush.bf16.msra.mxu0 %v586
  %797 = vmatpush.bf16.msra.mxu0 %v582
  %798 = vmatpush.bf16.msra.mxu0 %v578
  %799 = vmatpush.bf16.msra.mxu0 %v574
  %800 = vmatmul.bf16.gmra.mxu0 %v765
  %v801 = vpop.f32.mrf.mxu0
  %v802 = vadd.f32 0.0, %v801
  %v803 = vpop.f32.mrf.mxu0
  %804 = vdwg.mxu0
  %805 = vmatpush.bf16.msra.mxu0 %v603
  %806 = vmatpush.bf16.msra.mxu0 %v599
  %807 = vmatpush.bf16.msra.mxu0 %v595
  %808 = vmatpush.bf16.msra.mxu0 %v591
  %809 = vmatpush.bf16.msra.mxu0 %v587
  %810 = vmatpush.bf16.msra.mxu0 %v583
  %811 = vmatpush.bf16.msra.mxu0 %v579
  %812 = vmatpush.bf16.msra.mxu0 %v575
  %813 = vmatmul.bf16.gmra.mxu0 %v765
  %v814 = vpop.f32.mrf.mxu0
  %v815 = vadd.f32 0.0, %v814
  %v816 = vpop.f32.mrf.mxu0
  %817 = vdwg.mxu0
  %v818 = vadd.f32 %v761, %v776
  %v819 = vadd.f32 %v762, %v789
  %v820 = vadd.f32 %v763, %v802
  %v821 = vadd.f32 %v764, %v815
  %v822 = vxor.u32 %v818, 2147483648
  %v823 = vmul.f32 %v822, 1.442695
  %v824 = vpow.pop %v823
  %v825 = vadd.f32 %v824, 1.0
  %v826 = vrcp.pop %v825
  %v827 = vmul.f32 %v825, %v826
  %v828 = vsub.f32 1.0, %v827
  %v829 = vmul.f32 %v826, %v828
  %v830 = vadd.f32 %v826, %v829
  %vm831 = vweird.f32 %v825
  %vm832 = vweird.f32 %v826
  %vm833 = vmor %vm831, %vm832
  %v834 = vsel %vm833, %v826, %v830
  %v835 = vand.u32 2147483647, %v825
  %vm836 = vcmp.eq.f32.partialorder %v835, 8.507059e+37
  %v837 = vand.u32 %v825, 2147483648
  %v838 = vor.u32 1.1754944e-38, %v837
  %v839 = vsel %vm836, %v838, %v834
  %v840 = vmul.f32 1.0, %v839
  %v841 = vxor.u32 %v819, 2147483648
  %v842 = vmul.f32 %v841, 1.442695
  %v843 = vpow.pop %v842
  %v844 = vadd.f32 %v843, 1.0
  %v845 = vrcp.pop %v844
  %v846 = vmul.f32 %v844, %v845
  %v847 = vsub.f32 1.0, %v846
  %v848 = vmul.f32 %v845, %v847
  %v849 = vadd.f32 %v845, %v848
  %vm850 = vweird.f32 %v844
  %vm851 = vweird.f32 %v845
  %vm852 = vmor %vm850, %vm851
  %v853 = vsel %vm852, %v845, %v849
  %v854 = vand.u32 2147483647, %v844
  %vm855 = vcmp.eq.f32.partialorder %v854, 8.507059e+37
  %v856 = vand.u32 %v844, 2147483648
  %v857 = vor.u32 1.1754944e-38, %v856
  %v858 = vsel %vm855, %v857, %v853
  %v859 = vmul.f32 1.0, %v858
  %v860 = vtanh.pop %v820
  %v861 = vxor.u32 %v821, 2147483648
  %v862 = vmul.f32 %v861, 1.442695
  %v863 = vpow.pop %v862
  %v864 = vadd.f32 %v863, 1.0
  %v865 = vrcp.pop %v864
  %v866 = vmul.f32 %v864, %v865
  %v867 = vsub.f32 1.0, %v866
  %v868 = vmul.f32 %v865, %v867
  %v869 = vadd.f32 %v865, %v868
  %vm870 = vweird.f32 %v864
  %vm871 = vweird.f32 %v865
  %vm872 = vmor %vm870, %vm871
  %v873 = vsel %vm872, %v865, %v869
  %v874 = vand.u32 2147483647, %v864
  %vm875 = vcmp.eq.f32.partialorder %v874, 8.507059e+37
  %v876 = vand.u32 %v864, 2147483648
  %v877 = vor.u32 1.1754944e-38, %v876
  %v878 = vsel %vm875, %v877, %v873
  %v879 = vmul.f32 1.0, %v878
  %v880 = vmul.f32 %v859, %v759
  %v881 = vmul.f32 %v840, %v860
  %v882 = vadd.f32 %v880, %v881
  %v883 = vtanh.pop %v882
  %v884 = vmul.f32 %v879, %v883
  %885 = vst [vmem:[#allocation5] sm:$0xff] %v884
  %886 = vst [vmem:[#allocation6] sm:$0xff] %v882
  %s887 = scalar_lea.vmem %s4, 8
  %888 = vst [vmem:[%s887] sm:$0xff] %v884
  %v889 = vld [vmem:[#allocation5] sm:$0xff]
  %v890 = vld [vmem:[#allocation6] sm:$0xff]
  %s891 = scalar_lea.vmem [#allocation4], 64
  %v892 = vld [vmem:[%s891] sm:$0xff]
  %v893 = vld [vmem:[%s891 + $0x8] sm:$0xff]
  %v894 = vld [vmem:[%s891 + $0x10] sm:$0xff]
  %v895 = vld [vmem:[%s891 + $0x18] sm:$0xff]
  %v896 = vpack.c.bf16 %v889, %v889
  %897 = vmatpush.bf16.msra.mxu0 %v600
  %898 = vmatpush.bf16.msra.mxu0 %v596
  %899 = vmatpush.bf16.msra.mxu0 %v592
  %900 = vmatpush.bf16.msra.mxu0 %v588
  %901 = vmatpush.bf16.msra.mxu0 %v584
  %902 = vmatpush.bf16.msra.mxu0 %v580
  %903 = vmatpush.bf16.msra.mxu0 %v576
  %904 = vmatpush.bf16.msra.mxu0 %v572
  %905 = vmatmul.bf16.gmra.mxu0 %v896
  %v906 = vpop.f32.mrf.mxu0
  %v907 = vadd.f32 0.0, %v906
  %v908 = vpop.f32.mrf.mxu0
  %909 = vdwg.mxu0
  %910 = vmatpush.bf16.msra.mxu0 %v601
  %911 = vmatpush.bf16.msra.mxu0 %v597
  %912 = vmatpush.bf16.msra.mxu0 %v593
  %913 = vmatpush.bf16.msra.mxu0 %v589
  %914 = vmatpush.bf16.msra.mxu0 %v585
  %915 = vmatpush.bf16.msra.mxu0 %v581
  %916 = vmatpush.bf16.msra.mxu0 %v577
  %917 = vmatpush.bf16.msra.mxu0 %v573
  %918 = vmatmul.bf16.gmra.mxu0 %v896
  %v919 = vpop.f32.mrf.mxu0
  %v920 = vadd.f32 0.0, %v919
  %v921 = vpop.f32.mrf.mxu0
  %922 = vdwg.mxu0
  %923 = vmatpush.bf16.msra.mxu0 %v602
  %924 = vmatpush.bf16.msra.mxu0 %v598
  %925 = vmatpush.bf16.msra.mxu0 %v594
  %926 = vmatpush.bf16.msra.mxu0 %v590
  %927 = vmatpush.bf16.msra.mxu0 %v586
  %928 = vmatpush.bf16.msra.mxu0 %v582
  %929 = vmatpush.bf16.msra.mxu0 %v578
  %930 = vmatpush.bf16.msra.mxu0 %v574
  %931 = vmatmul.bf16.gmra.mxu0 %v896
  %v932 = vpop.f32.mrf.mxu0
  %v933 = vadd.f32 0.0, %v932
  %v934 = vpop.f32.mrf.mxu0
  %935 = vdwg.mxu0
  %936 = vmatpush.bf16.msra.mxu0 %v603
  %937 = vmatpush.bf16.msra.mxu0 %v599
  %938 = vmatpush.bf16.msra.mxu0 %v595
  %939 = vmatpush.bf16.msra.mxu0 %v591
  %940 = vmatpush.bf16.msra.mxu0 %v587
  %941 = vmatpush.bf16.msra.mxu0 %v583
  %942 = vmatpush.bf16.msra.mxu0 %v579
  %943 = vmatpush.bf16.msra.mxu0 %v575
  %944 = vmatmul.bf16.gmra.mxu0 %v896
  %v945 = vpop.f32.mrf.mxu0
  %v946 = vadd.f32 0.0, %v945
  %v947 = vpop.f32.mrf.mxu0
  %948 = vdwg.mxu0
  %v949 = vadd.f32 %v892, %v907
  %v950 = vadd.f32 %v893, %v920
  %v951 = vadd.f32 %v894, %v933
  %v952 = vadd.f32 %v895, %v946
  %v953 = vxor.u32 %v949, 2147483648
  %v954 = vmul.f32 %v953, 1.442695
  %v955 = vpow.pop %v954
  %v956 = vadd.f32 %v955, 1.0
  %v957 = vrcp.pop %v956
  %v958 = vmul.f32 %v956, %v957
  %v959 = vsub.f32 1.0, %v958
  %v960 = vmul.f32 %v957, %v959
  %v961 = vadd.f32 %v957, %v960
  %vm962 = vweird.f32 %v956
  %vm963 = vweird.f32 %v957
  %vm964 = vmor %vm962, %vm963
  %v965 = vsel %vm964, %v957, %v961
  %v966 = vand.u32 2147483647, %v956
  %vm967 = vcmp.eq.f32.partialorder %v966, 8.507059e+37
  %v968 = vand.u32 %v956, 2147483648
  %v969 = vor.u32 1.1754944e-38, %v968
  %v970 = vsel %vm967, %v969, %v965
  %v971 = vmul.f32 1.0, %v970
  %v972 = vxor.u32 %v950, 2147483648
  %v973 = vmul.f32 %v972, 1.442695
  %v974 = vpow.pop %v973
  %v975 = vadd.f32 %v974, 1.0
  %v976 = vrcp.pop %v975
  %v977 = vmul.f32 %v975, %v976
  %v978 = vsub.f32 1.0, %v977
  %v979 = vmul.f32 %v976, %v978
  %v980 = vadd.f32 %v976, %v979
  %vm981 = vweird.f32 %v975
  %vm982 = vweird.f32 %v976
  %vm983 = vmor %vm981, %vm982
  %v984 = vsel %vm983, %v976, %v980
  %v985 = vand.u32 2147483647, %v975
  %vm986 = vcmp.eq.f32.partialorder %v985, 8.507059e+37
  %v987 = vand.u32 %v975, 2147483648
  %v988 = vor.u32 1.1754944e-38, %v987
  %v989 = vsel %vm986, %v988, %v984
  %v990 = vmul.f32 1.0, %v989
  %v991 = vtanh.pop %v951
  %v992 = vxor.u32 %v952, 2147483648
  %v993 = vmul.f32 %v992, 1.442695
  %v994 = vpow.pop %v993
  %v995 = vadd.f32 %v994, 1.0
  %v996 = vrcp.pop %v995
  %v997 = vmul.f32 %v995, %v996
  %v998 = vsub.f32 1.0, %v997
  %v999 = vmul.f32 %v996, %v998
  %v1000 = vadd.f32 %v996, %v999
  %vm1001 = vweird.f32 %v995
  %vm1002 = vweird.f32 %v996
  %vm1003 = vmor %vm1001, %vm1002
  %v1004 = vsel %vm1003, %v996, %v1000
  %v1005 = vand.u32 2147483647, %v995
  %vm1006 = vcmp.eq.f32.partialorder %v1005, 8.507059e+37
  %v1007 = vand.u32 %v995, 2147483648
  %v1008 = vor.u32 1.1754944e-38, %v1007
  %v1009 = vsel %vm1006, %v1008, %v1004
  %v1010 = vmul.f32 1.0, %v1009
  %v1011 = vmul.f32 %v990, %v890
  %v1012 = vmul.f32 %v971, %v991
  %v1013 = vadd.f32 %v1011, %v1012
  %v1014 = vtanh.pop %v1013
  %v1015 = vmul.f32 %v1010, %v1014
  %1016 = vst [vmem:[#allocation5] sm:$0xff] %v1015
  %1017 = vst [vmem:[#allocation6] sm:$0xff] %v1013
  %s1018 = scalar_lea.vmem %s4, 16
  %1019 = vst [vmem:[%s1018] sm:$0xff] %v1015
  %v1020 = vld [vmem:[#allocation5] sm:$0xff]
  %v1021 = vld [vmem:[#allocation6] sm:$0xff]
  %s1022 = scalar_lea.vmem [#allocation4], 96
  %v1023 = vld [vmem:[%s1022] sm:$0xff]
  %v1024 = vld [vmem:[%s1022 + $0x8] sm:$0xff]
  %v1025 = vld [vmem:[%s1022 + $0x10] sm:$0xff]
  %v1026 = vld [vmem:[%s1022 + $0x18] sm:$0xff]
  %v1027 = vpack.c.bf16 %v1020, %v1020
  %1028 = vmatpush.bf16.msra.mxu0 %v600
  %1029 = vmatpush.bf16.msra.mxu0 %v596
  %1030 = vmatpush.bf16.msra.mxu0 %v592
  %1031 = vmatpush.bf16.msra.mxu0 %v588
  %1032 = vmatpush.bf16.msra.mxu0 %v584
  %1033 = vmatpush.bf16.msra.mxu0 %v580
  %1034 = vmatpush.bf16.msra.mxu0 %v576
  %1035 = vmatpush.bf16.msra.mxu0 %v572
  %1036 = vmatmul.bf16.gmra.mxu0 %v1027
  %v1037 = vpop.f32.mrf.mxu0
  %v1038 = vadd.f32 0.0, %v1037
  %v1039 = vpop.f32.mrf.mxu0
  %1040 = vdwg.mxu0
  %1041 = vmatpush.bf16.msra.mxu0 %v601
  %1042 = vmatpush.bf16.msra.mxu0 %v597
  %1043 = vmatpush.bf16.msra.mxu0 %v593
  %1044 = vmatpush.bf16.msra.mxu0 %v589
  %1045 = vmatpush.bf16.msra.mxu0 %v585
  %1046 = vmatpush.bf16.msra.mxu0 %v581
  %1047 = vmatpush.bf16.msra.mxu0 %v577
  %1048 = vmatpush.bf16.msra.mxu0 %v573
  %1049 = vmatmul.bf16.gmra.mxu0 %v1027
  %v1050 = vpop.f32.mrf.mxu0
  %v1051 = vadd.f32 0.0, %v1050
  %v1052 = vpop.f32.mrf.mxu0
  %1053 = vdwg.mxu0
  %1054 = vmatpush.bf16.msra.mxu0 %v602
  %1055 = vmatpush.bf16.msra.mxu0 %v598
  %1056 = vmatpush.bf16.msra.mxu0 %v594
  %1057 = vmatpush.bf16.msra.mxu0 %v590
  %1058 = vmatpush.bf16.msra.mxu0 %v586
  %1059 = vmatpush.bf16.msra.mxu0 %v582
  %1060 = vmatpush.bf16.msra.mxu0 %v578
  %1061 = vmatpush.bf16.msra.mxu0 %v574
  %1062 = vmatmul.bf16.gmra.mxu0 %v1027
  %v1063 = vpop.f32.mrf.mxu0
  %v1064 = vadd.f32 0.0, %v1063
  %v1065 = vpop.f32.mrf.mxu0
  %1066 = vdwg.mxu0
  %1067 = vmatpush.bf16.msra.mxu0 %v603
  %1068 = vmatpush.bf16.msra.mxu0 %v599
  %1069 = vmatpush.bf16.msra.mxu0 %v595
  %1070 = vmatpush.bf16.msra.mxu0 %v591
  %1071 = vmatpush.bf16.msra.mxu0 %v587
  %1072 = vmatpush.bf16.msra.mxu0 %v583
  %1073 = vmatpush.bf16.msra.mxu0 %v579
  %1074 = vmatpush.bf16.msra.mxu0 %v575
  %1075 = vmatmul.bf16.gmra.mxu0 %v1027
  %v1076 = vpop.f32.mrf.mxu0
  %v1077 = vadd.f32 0.0, %v1076
  %v1078 = vpop.f32.mrf.mxu0
  %1079 = vdwg.mxu0
  %v1080 = vadd.f32 %v1023, %v1038
  %v1081 = vadd.f32 %v1024, %v1051
  %v1082 = vadd.f32 %v1025, %v1064
  %v1083 = vadd.f32 %v1026, %v1077
  %v1084 = vxor.u32 %v1080, 2147483648
  %v1085 = vmul.f32 %v1084, 1.442695
  %v1086 = vpow.pop %v1085
  %v1087 = vadd.f32 %v1086, 1.0
  %v1088 = vrcp.pop %v1087
  %v1089 = vmul.f32 %v1087, %v1088
  %v1090 = vsub.f32 1.0, %v1089
  %v1091 = vmul.f32 %v1088, %v1090
  %v1092 = vadd.f32 %v1088, %v1091
  %vm1093 = vweird.f32 %v1087
  %vm1094 = vweird.f32 %v1088
  %vm1095 = vmor %vm1093, %vm1094
  %v1096 = vsel %vm1095, %v1088, %v1092
  %v1097 = vand.u32 2147483647, %v1087
  %vm1098 = vcmp.eq.f32.partialorder %v1097, 8.507059e+37
  %v1099 = vand.u32 %v1087, 2147483648
  %v1100 = vor.u32 1.1754944e-38, %v1099
  %v1101 = vsel %vm1098, %v1100, %v1096
  %v1102 = vmul.f32 1.0, %v1101
  %v1103 = vxor.u32 %v1081, 2147483648
  %v1104 = vmul.f32 %v1103, 1.442695
  %v1105 = vpow.pop %v1104
  %v1106 = vadd.f32 %v1105, 1.0
  %v1107 = vrcp.pop %v1106
  %v1108 = vmul.f32 %v1106, %v1107
  %v1109 = vsub.f32 1.0, %v1108
  %v1110 = vmul.f32 %v1107, %v1109
  %v1111 = vadd.f32 %v1107, %v1110
  %vm1112 = vweird.f32 %v1106
  %vm1113 = vweird.f32 %v1107
  %vm1114 = vmor %vm1112, %vm1113
  %v1115 = vsel %vm1114, %v1107, %v1111
  %v1116 = vand.u32 2147483647, %v1106
  %vm1117 = vcmp.eq.f32.partialorder %v1116, 8.507059e+37
  %v1118 = vand.u32 %v1106, 2147483648
  %v1119 = vor.u32 1.1754944e-38, %v1118
  %v1120 = vsel %vm1117, %v1119, %v1115
  %v1121 = vmul.f32 1.0, %v1120
  %v1122 = vtanh.pop %v1082
  %v1123 = vxor.u32 %v1083, 2147483648
  %v1124 = vmul.f32 %v1123, 1.442695
  %v1125 = vpow.pop %v1124
  %v1126 = vadd.f32 %v1125, 1.0
  %v1127 = vrcp.pop %v1126
  %v1128 = vmul.f32 %v1126, %v1127
  %v1129 = vsub.f32 1.0, %v1128
  %v1130 = vmul.f32 %v1127, %v1129
  %v1131 = vadd.f32 %v1127, %v1130
  %vm1132 = vweird.f32 %v1126
  %vm1133 = vweird.f32 %v1127
  %vm1134 = vmor %vm1132, %vm1133
  %v1135 = vsel %vm1134, %v1127, %v1131
  %v1136 = vand.u32 2147483647, %v1126
  %vm1137 = vcmp.eq.f32.partialorder %v1136, 8.507059e+37
  %v1138 = vand.u32 %v1126, 2147483648
  %v1139 = vor.u32 1.1754944e-38, %v1138
  %v1140 = vsel %vm1137, %v1139, %v1135
  %v1141 = vmul.f32 1.0, %v1140
  %v1142 = vmul.f32 %v1121, %v1021
  %v1143 = vmul.f32 %v1102, %v1122
  %v1144 = vadd.f32 %v1142, %v1143
  %v1145 = vtanh.pop %v1144
  %v1146 = vmul.f32 %v1141, %v1145
  %1147 = vst [vmem:[#allocation5] sm:$0xff] %v1146
  %1148 = vst [vmem:[#allocation6] sm:$0xff] %v1144
  %s1149 = scalar_lea.vmem %s4, 24
  %1150 = vst [vmem:[%s1149] sm:$0xff] %v1146
  %v1151 = vld [vmem:[#allocation5] sm:$0xff]
  %v1152 = vld [vmem:[#allocation6] sm:$0xff]
  %s1153 = scalar_lea.vmem [#allocation4], 128
  %v1154 = vld [vmem:[%s1153] sm:$0xff]
  %v1155 = vld [vmem:[%s1153 + $0x8] sm:$0xff]
  %v1156 = vld [vmem:[%s1153 + $0x10] sm:$0xff]
  %v1157 = vld [vmem:[%s1153 + $0x18] sm:$0xff]
  %v1158 = vpack.c.bf16 %v1151, %v1151
  %1159 = vmatpush.bf16.msra.mxu0 %v600
  %1160 = vmatpush.bf16.msra.mxu0 %v596
  %1161 = vmatpush.bf16.msra.mxu0 %v592
  %1162 = vmatpush.bf16.msra.mxu0 %v588
  %1163 = vmatpush.bf16.msra.mxu0 %v584
  %1164 = vmatpush.bf16.msra.mxu0 %v580
  %1165 = vmatpush.bf16.msra.mxu0 %v576
  %1166 = vmatpush.bf16.msra.mxu0 %v572
  %1167 = vmatmul.bf16.gmra.mxu0 %v1158
  %v1168 = vpop.f32.mrf.mxu0
  %v1169 = vadd.f32 0.0, %v1168
  %v1170 = vpop.f32.mrf.mxu0
  %1171 = vdwg.mxu0
  %1172 = vmatpush.bf16.msra.mxu0 %v601
  %1173 = vmatpush.bf16.msra.mxu0 %v597
  %1174 = vmatpush.bf16.msra.mxu0 %v593
  %1175 = vmatpush.bf16.msra.mxu0 %v589
  %1176 = vmatpush.bf16.msra.mxu0 %v585
  %1177 = vmatpush.bf16.msra.mxu0 %v581
  %1178 = vmatpush.bf16.msra.mxu0 %v577
  %1179 = vmatpush.bf16.msra.mxu0 %v573
  %1180 = vmatmul.bf16.gmra.mxu0 %v1158
  %v1181 = vpop.f32.mrf.mxu0
  %v1182 = vadd.f32 0.0, %v1181
  %v1183 = vpop.f32.mrf.mxu0
  %1184 = vdwg.mxu0
  %1185 = vmatpush.bf16.msra.mxu0 %v602
  %1186 = vmatpush.bf16.msra.mxu0 %v598
  %1187 = vmatpush.bf16.msra.mxu0 %v594
  %1188 = vmatpush.bf16.msra.mxu0 %v590
  %1189 = vmatpush.bf16.msra.mxu0 %v586
  %1190 = vmatpush.bf16.msra.mxu0 %v582
  %1191 = vmatpush.bf16.msra.mxu0 %v578
  %1192 = vmatpush.bf16.msra.mxu0 %v574
  %1193 = vmatmul.bf16.gmra.mxu0 %v1158
  %v1194 = vpop.f32.mrf.mxu0
  %v1195 = vadd.f32 0.0, %v1194
  %v1196 = vpop.f32.mrf.mxu0
  %1197 = vdwg.mxu0
  %1198 = vmatpush.bf16.msra.mxu0 %v603
  %1199 = vmatpush.bf16.msra.mxu0 %v599
  %1200 = vmatpush.bf16.msra.mxu0 %v595
  %1201 = vmatpush.bf16.msra.mxu0 %v591
  %1202 = vmatpush.bf16.msra.mxu0 %v587
  %1203 = vmatpush.bf16.msra.mxu0 %v583
  %1204 = vmatpush.bf16.msra.mxu0 %v579
  %1205 = vmatpush.bf16.msra.mxu0 %v575
  %1206 = vmatmul.bf16.gmra.mxu0 %v1158
  %v1207 = vpop.f32.mrf.mxu0
  %v1208 = vadd.f32 0.0, %v1207
  %v1209 = vpop.f32.mrf.mxu0
  %1210 = vdwg.mxu0
  %v1211 = vadd.f32 %v1154, %v1169
  %v1212 = vadd.f32 %v1155, %v1182
  %v1213 = vadd.f32 %v1156, %v1195
  %v1214 = vadd.f32 %v1157, %v1208
  %v1215 = vxor.u32 %v1211, 2147483648
  %v1216 = vmul.f32 %v1215, 1.442695
  %v1217 = vpow.pop %v1216
  %v1218 = vadd.f32 %v1217, 1.0
  %v1219 = vrcp.pop %v1218
  %v1220 = vmul.f32 %v1218, %v1219
  %v1221 = vsub.f32 1.0, %v1220
  %v1222 = vmul.f32 %v1219, %v1221
  %v1223 = vadd.f32 %v1219, %v1222
  %vm1224 = vweird.f32 %v1218
  %vm1225 = vweird.f32 %v1219
  %vm1226 = vmor %vm1224, %vm1225
  %v1227 = vsel %vm1226, %v1219, %v1223
  %v1228 = vand.u32 2147483647, %v1218
  %vm1229 = vcmp.eq.f32.partialorder %v1228, 8.507059e+37
  %v1230 = vand.u32 %v1218, 2147483648
  %v1231 = vor.u32 1.1754944e-38, %v1230
  %v1232 = vsel %vm1229, %v1231, %v1227
  %v1233 = vmul.f32 1.0, %v1232
  %v1234 = vxor.u32 %v1212, 2147483648
  %v1235 = vmul.f32 %v1234, 1.442695
  %v1236 = vpow.pop %v1235
  %v1237 = vadd.f32 %v1236, 1.0
  %v1238 = vrcp.pop %v1237
  %v1239 = vmul.f32 %v1237, %v1238
  %v1240 = vsub.f32 1.0, %v1239
  %v1241 = vmul.f32 %v1238, %v1240
  %v1242 = vadd.f32 %v1238, %v1241
  %vm1243 = vweird.f32 %v1237
  %vm1244 = vweird.f32 %v1238
  %vm1245 = vmor %vm1243, %vm1244
  %v1246 = vsel %vm1245, %v1238, %v1242
  %v1247 = vand.u32 2147483647, %v1237
  %vm1248 = vcmp.eq.f32.partialorder %v1247, 8.507059e+37
  %v1249 = vand.u32 %v1237, 2147483648
  %v1250 = vor.u32 1.1754944e-38, %v1249
  %v1251 = vsel %vm1248, %v1250, %v1246
  %v1252 = vmul.f32 1.0, %v1251
  %v1253 = vtanh.pop %v1213
  %v1254 = vxor.u32 %v1214, 2147483648
  %v1255 = vmul.f32 %v1254, 1.442695
  %v1256 = vpow.pop %v1255
  %v1257 = vadd.f32 %v1256, 1.0
  %v1258 = vrcp.pop %v1257
  %v1259 = vmul.f32 %v1257, %v1258
  %v1260 = vsub.f32 1.0, %v1259
  %v1261 = vmul.f32 %v1258, %v1260
  %v1262 = vadd.f32 %v1258, %v1261
  %vm1263 = vweird.f32 %v1257
  %vm1264 = vweird.f32 %v1258
  %vm1265 = vmor %vm1263, %vm1264
  %v1266 = vsel %vm1265, %v1258, %v1262
  %v1267 = vand.u32 2147483647, %v1257
  %vm1268 = vcmp.eq.f32.partialorder %v1267, 8.507059e+37
  %v1269 = vand.u32 %v1257, 2147483648
  %v1270 = vor.u32 1.1754944e-38, %v1269
  %v1271 = vsel %vm1268, %v1270, %v1266
  %v1272 = vmul.f32 1.0, %v1271
  %v1273 = vmul.f32 %v1252, %v1152
  %v1274 = vmul.f32 %v1233, %v1253
  %v1275 = vadd.f32 %v1273, %v1274
  %v1276 = vtanh.pop %v1275
  %v1277 = vmul.f32 %v1272, %v1276
  %1278 = vst [vmem:[#allocation5] sm:$0xff] %v1277
  %1279 = vst [vmem:[#allocation6] sm:$0xff] %v1275
  %s1280 = scalar_lea.vmem %s4, 32
  %1281 = vst [vmem:[%s1280] sm:$0xff] %v1277
  %v1282 = vld [vmem:[#allocation5] sm:$0xff]
  %v1283 = vld [vmem:[#allocation6] sm:$0xff]
  %s1284 = scalar_lea.vmem [#allocation4], 160
  %v1285 = vld [vmem:[%s1284] sm:$0xff]
  %v1286 = vld [vmem:[%s1284 + $0x8] sm:$0xff]
  %v1287 = vld [vmem:[%s1284 + $0x10] sm:$0xff]
  %v1288 = vld [vmem:[%s1284 + $0x18] sm:$0xff]
  %v1289 = vpack.c.bf16 %v1282, %v1282
  %1290 = vmatpush.bf16.msra.mxu0 %v600
  %1291 = vmatpush.bf16.msra.mxu0 %v596
  %1292 = vmatpush.bf16.msra.mxu0 %v592
  %1293 = vmatpush.bf16.msra.mxu0 %v588
  %1294 = vmatpush.bf16.msra.mxu0 %v584
  %1295 = vmatpush.bf16.msra.mxu0 %v580
  %1296 = vmatpush.bf16.msra.mxu0 %v576
  %1297 = vmatpush.bf16.msra.mxu0 %v572
  %1298 = vmatmul.bf16.gmra.mxu0 %v1289
  %v1299 = vpop.f32.mrf.mxu0
  %v1300 = vadd.f32 0.0, %v1299
  %v1301 = vpop.f32.mrf.mxu0
  %1302 = vdwg.mxu0
  %1303 = vmatpush.bf16.msra.mxu0 %v601
  %1304 = vmatpush.bf16.msra.mxu0 %v597
  %1305 = vmatpush.bf16.msra.mxu0 %v593
  %1306 = vmatpush.bf16.msra.mxu0 %v589
  %1307 = vmatpush.bf16.msra.mxu0 %v585
  %1308 = vmatpush.bf16.msra.mxu0 %v581
  %1309 = vmatpush.bf16.msra.mxu0 %v577
  %1310 = vmatpush.bf16.msra.mxu0 %v573
  %1311 = vmatmul.bf16.gmra.mxu0 %v1289
  %v1312 = vpop.f32.mrf.mxu0
  %v1313 = vadd.f32 0.0, %v1312
  %v1314 = vpop.f32.mrf.mxu0
  %1315 = vdwg.mxu0
  %1316 = vmatpush.bf16.msra.mxu0 %v602
  %1317 = vmatpush.bf16.msra.mxu0 %v598
  %1318 = vmatpush.bf16.msra.mxu0 %v594
  %1319 = vmatpush.bf16.msra.mxu0 %v590
  %1320 = vmatpush.bf16.msra.mxu0 %v586
  %1321 = vmatpush.bf16.msra.mxu0 %v582
  %1322 = vmatpush.bf16.msra.mxu0 %v578
  %1323 = vmatpush.bf16.msra.mxu0 %v574
  %1324 = vmatmul.bf16.gmra.mxu0 %v1289
  %v1325 = vpop.f32.mrf.mxu0
  %v1326 = vadd.f32 0.0, %v1325
  %v1327 = vpop.f32.mrf.mxu0
  %1328 = vdwg.mxu0
  %1329 = vmatpush.bf16.msra.mxu0 %v603
  %1330 = vmatpush.bf16.msra.mxu0 %v599
  %1331 = vmatpush.bf16.msra.mxu0 %v595
  %1332 = vmatpush.bf16.msra.mxu0 %v591
  %1333 = vmatpush.bf16.msra.mxu0 %v587
  %1334 = vmatpush.bf16.msra.mxu0 %v583
  %1335 = vmatpush.bf16.msra.mxu0 %v579
  %1336 = vmatpush.bf16.msra.mxu0 %v575
  %1337 = vmatmul.bf16.gmra.mxu0 %v1289
  %v1338 = vpop.f32.mrf.mxu0
  %v1339 = vadd.f32 0.0, %v1338
  %v1340 = vpop.f32.mrf.mxu0
  %1341 = vdwg.mxu0
  %v1342 = vadd.f32 %v1285, %v1300
  %v1343 = vadd.f32 %v1286, %v1313
  %v1344 = vadd.f32 %v1287, %v1326
  %v1345 = vadd.f32 %v1288, %v1339
  %v1346 = vxor.u32 %v1342, 2147483648
  %v1347 = vmul.f32 %v1346, 1.442695
  %v1348 = vpow.pop %v1347
  %v1349 = vadd.f32 %v1348, 1.0
  %v1350 = vrcp.pop %v1349
  %v1351 = vmul.f32 %v1349, %v1350
  %v1352 = vsub.f32 1.0, %v1351
  %v1353 = vmul.f32 %v1350, %v1352
  %v1354 = vadd.f32 %v1350, %v1353
  %vm1355 = vweird.f32 %v1349
  %vm1356 = vweird.f32 %v1350
  %vm1357 = vmor %vm1355, %vm1356
  %v1358 = vsel %vm1357, %v1350, %v1354
  %v1359 = vand.u32 2147483647, %v1349
  %vm1360 = vcmp.eq.f32.partialorder %v1359, 8.507059e+37
  %v1361 = vand.u32 %v1349, 2147483648
  %v1362 = vor.u32 1.1754944e-38, %v1361
  %v1363 = vsel %vm1360, %v1362, %v1358
  %v1364 = vmul.f32 1.0, %v1363
  %v1365 = vxor.u32 %v1343, 2147483648
  %v1366 = vmul.f32 %v1365, 1.442695
  %v1367 = vpow.pop %v1366
  %v1368 = vadd.f32 %v1367, 1.0
  %v1369 = vrcp.pop %v1368
  %v1370 = vmul.f32 %v1368, %v1369
  %v1371 = vsub.f32 1.0, %v1370
  %v1372 = vmul.f32 %v1369, %v1371
  %v1373 = vadd.f32 %v1369, %v1372
  %vm1374 = vweird.f32 %v1368
  %vm1375 = vweird.f32 %v1369
  %vm1376 = vmor %vm1374, %vm1375
  %v1377 = vsel %vm1376, %v1369, %v1373
  %v1378 = vand.u32 2147483647, %v1368
  %vm1379 = vcmp.eq.f32.partialorder %v1378, 8.507059e+37
  %v1380 = vand.u32 %v1368, 2147483648
  %v1381 = vor.u32 1.1754944e-38, %v1380
  %v1382 = vsel %vm1379, %v1381, %v1377
  %v1383 = vmul.f32 1.0, %v1382
  %v1384 = vtanh.pop %v1344
  %v1385 = vxor.u32 %v1345, 2147483648
  %v1386 = vmul.f32 %v1385, 1.442695
  %v1387 = vpow.pop %v1386
  %v1388 = vadd.f32 %v1387, 1.0
  %v1389 = vrcp.pop %v1388
  %v1390 = vmul.f32 %v1388, %v1389
  %v1391 = vsub.f32 1.0, %v1390
  %v1392 = vmul.f32 %v1389, %v1391
  %v1393 = vadd.f32 %v1389, %v1392
  %vm1394 = vweird.f32 %v1388
  %vm1395 = vweird.f32 %v1389
  %vm1396 = vmor %vm1394, %vm1395
  %v1397 = vsel %vm1396, %v1389, %v1393
  %v1398 = vand.u32 2147483647, %v1388
  %vm1399 = vcmp.eq.f32.partialorder %v1398, 8.507059e+37
  %v1400 = vand.u32 %v1388, 2147483648
  %v1401 = vor.u32 1.1754944e-38, %v1400
  %v1402 = vsel %vm1399, %v1401, %v1397
  %v1403 = vmul.f32 1.0, %v1402
  %v1404 = vmul.f32 %v1383, %v1283
  %v1405 = vmul.f32 %v1364, %v1384
  %v1406 = vadd.f32 %v1404, %v1405
  %v1407 = vtanh.pop %v1406
  %v1408 = vmul.f32 %v1403, %v1407
  %1409 = vst [vmem:[#allocation5] sm:$0xff] %v1408
  %1410 = vst [vmem:[#allocation6] sm:$0xff] %v1406
  %s1411 = scalar_lea.vmem %s4, 40
  %1412 = vst [vmem:[%s1411] sm:$0xff] %v1408
  %v1413 = vld [vmem:[#allocation5] sm:$0xff]
  %v1414 = vld [vmem:[#allocation6] sm:$0xff]
  %s1415 = scalar_lea.vmem [#allocation4], 192
  %v1416 = vld [vmem:[%s1415] sm:$0xff]
  %v1417 = vld [vmem:[%s1415 + $0x8] sm:$0xff]
  %v1418 = vld [vmem:[%s1415 + $0x10] sm:$0xff]
  %v1419 = vld [vmem:[%s1415 + $0x18] sm:$0xff]
  %v1420 = vpack.c.bf16 %v1413, %v1413
  %1421 = vmatpush.bf16.msra.mxu0 %v600
  %1422 = vmatpush.bf16.msra.mxu0 %v596
  %1423 = vmatpush.bf16.msra.mxu0 %v592
  %1424 = vmatpush.bf16.msra.mxu0 %v588
  %1425 = vmatpush.bf16.msra.mxu0 %v584
  %1426 = vmatpush.bf16.msra.mxu0 %v580
  %1427 = vmatpush.bf16.msra.mxu0 %v576
  %1428 = vmatpush.bf16.msra.mxu0 %v572
  %1429 = vmatmul.bf16.gmra.mxu0 %v1420
  %v1430 = vpop.f32.mrf.mxu0
  %v1431 = vadd.f32 0.0, %v1430
  %v1432 = vpop.f32.mrf.mxu0
  %1433 = vdwg.mxu0
  %1434 = vmatpush.bf16.msra.mxu0 %v601
  %1435 = vmatpush.bf16.msra.mxu0 %v597
  %1436 = vmatpush.bf16.msra.mxu0 %v593
  %1437 = vmatpush.bf16.msra.mxu0 %v589
  %1438 = vmatpush.bf16.msra.mxu0 %v585
  %1439 = vmatpush.bf16.msra.mxu0 %v581
  %1440 = vmatpush.bf16.msra.mxu0 %v577
  %1441 = vmatpush.bf16.msra.mxu0 %v573
  %1442 = vmatmul.bf16.gmra.mxu0 %v1420
  %v1443 = vpop.f32.mrf.mxu0
  %v1444 = vadd.f32 0.0, %v1443
  %v1445 = vpop.f32.mrf.mxu0
  %1446 = vdwg.mxu0
  %1447 = vmatpush.bf16.msra.mxu0 %v602
  %1448 = vmatpush.bf16.msra.mxu0 %v598
  %1449 = vmatpush.bf16.msra.mxu0 %v594
  %1450 = vmatpush.bf16.msra.mxu0 %v590
  %1451 = vmatpush.bf16.msra.mxu0 %v586
  %1452 = vmatpush.bf16.msra.mxu0 %v582
  %1453 = vmatpush.bf16.msra.mxu0 %v578
  %1454 = vmatpush.bf16.msra.mxu0 %v574
  %1455 = vmatmul.bf16.gmra.mxu0 %v1420
  %v1456 = vpop.f32.mrf.mxu0
  %v1457 = vadd.f32 0.0, %v1456
  %v1458 = vpop.f32.mrf.mxu0
  %1459 = vdwg.mxu0
  %1460 = vmatpush.bf16.msra.mxu0 %v603
  %1461 = vmatpush.bf16.msra.mxu0 %v599
  %1462 = vmatpush.bf16.msra.mxu0 %v595
  %1463 = vmatpush.bf16.msra.mxu0 %v591
  %1464 = vmatpush.bf16.msra.mxu0 %v587
  %1465 = vmatpush.bf16.msra.mxu0 %v583
  %1466 = vmatpush.bf16.msra.mxu0 %v579
  %1467 = vmatpush.bf16.msra.mxu0 %v575
  %1468 = vmatmul.bf16.gmra.mxu0 %v1420
  %v1469 = vpop.f32.mrf.mxu0
  %v1470 = vadd.f32 0.0, %v1469
  %v1471 = vpop.f32.mrf.mxu0
  %1472 = vdwg.mxu0
  %v1473 = vadd.f32 %v1416, %v1431
  %v1474 = vadd.f32 %v1417, %v1444
  %v1475 = vadd.f32 %v1418, %v1457
  %v1476 = vadd.f32 %v1419, %v1470
  %v1477 = vxor.u32 %v1473, 2147483648
  %v1478 = vmul.f32 %v1477, 1.442695
  %v1479 = vpow.pop %v1478
  %v1480 = vadd.f32 %v1479, 1.0
  %v1481 = vrcp.pop %v1480
  %v1482 = vmul.f32 %v1480, %v1481
  %v1483 = vsub.f32 1.0, %v1482
  %v1484 = vmul.f32 %v1481, %v1483
  %v1485 = vadd.f32 %v1481, %v1484
  %vm1486 = vweird.f32 %v1480
  %vm1487 = vweird.f32 %v1481
  %vm1488 = vmor %vm1486, %vm1487
  %v1489 = vsel %vm1488, %v1481, %v1485
  %v1490 = vand.u32 2147483647, %v1480
  %vm1491 = vcmp.eq.f32.partialorder %v1490, 8.507059e+37
  %v1492 = vand.u32 %v1480, 2147483648
  %v1493 = vor.u32 1.1754944e-38, %v1492
  %v1494 = vsel %vm1491, %v1493, %v1489
  %v1495 = vmul.f32 1.0, %v1494
  %v1496 = vxor.u32 %v1474, 2147483648
  %v1497 = vmul.f32 %v1496, 1.442695
  %v1498 = vpow.pop %v1497
  %v1499 = vadd.f32 %v1498, 1.0
  %v1500 = vrcp.pop %v1499
  %v1501 = vmul.f32 %v1499, %v1500
  %v1502 = vsub.f32 1.0, %v1501
  %v1503 = vmul.f32 %v1500, %v1502
  %v1504 = vadd.f32 %v1500, %v1503
  %vm1505 = vweird.f32 %v1499
  %vm1506 = vweird.f32 %v1500
  %vm1507 = vmor %vm1505, %vm1506
  %v1508 = vsel %vm1507, %v1500, %v1504
  %v1509 = vand.u32 2147483647, %v1499
  %vm1510 = vcmp.eq.f32.partialorder %v1509, 8.507059e+37
  %v1511 = vand.u32 %v1499, 2147483648
  %v1512 = vor.u32 1.1754944e-38, %v1511
  %v1513 = vsel %vm1510, %v1512, %v1508
  %v1514 = vmul.f32 1.0, %v1513
  %v1515 = vtanh.pop %v1475
  %v1516 = vxor.u32 %v1476, 2147483648
  %v1517 = vmul.f32 %v1516, 1.442695
  %v1518 = vpow.pop %v1517
  %v1519 = vadd.f32 %v1518, 1.0
  %v1520 = vrcp.pop %v1519
  %v1521 = vmul.f32 %v1519, %v1520
  %v1522 = vsub.f32 1.0, %v1521
  %v1523 = vmul.f32 %v1520, %v1522
  %v1524 = vadd.f32 %v1520, %v1523
  %vm1525 = vweird.f32 %v1519
  %vm1526 = vweird.f32 %v1520
  %vm1527 = vmor %vm1525, %vm1526
  %v1528 = vsel %vm1527, %v1520, %v1524
  %v1529 = vand.u32 2147483647, %v1519
  %vm1530 = vcmp.eq.f32.partialorder %v1529, 8.507059e+37
  %v1531 = vand.u32 %v1519, 2147483648
  %v1532 = vor.u32 1.1754944e-38, %v1531
  %v1533 = vsel %vm1530, %v1532, %v1528
  %v1534 = vmul.f32 1.0, %v1533
  %v1535 = vmul.f32 %v1514, %v1414
  %v1536 = vmul.f32 %v1495, %v1515
  %v1537 = vadd.f32 %v1535, %v1536
  %v1538 = vtanh.pop %v1537
  %v1539 = vmul.f32 %v1534, %v1538
  %1540 = vst [vmem:[#allocation5] sm:$0xff] %v1539
  %1541 = vst [vmem:[#allocation6] sm:$0xff] %v1537
  %s1542 = scalar_lea.vmem %s4, 48
  %1543 = vst [vmem:[%s1542] sm:$0xff] %v1539
  %v1544 = vld [vmem:[#allocation5] sm:$0xff]
  %v1545 = vld [vmem:[#allocation6] sm:$0xff]
  %s1546 = scalar_lea.vmem [#allocation4], 224
  %v1547 = vld [vmem:[%s1546] sm:$0xff]
  %v1548 = vld [vmem:[%s1546 + $0x8] sm:$0xff]
  %v1549 = vld [vmem:[%s1546 + $0x10] sm:$0xff]
  %v1550 = vld [vmem:[%s1546 + $0x18] sm:$0xff]
  %v1551 = vpack.c.bf16 %v1544, %v1544
  %1552 = vmatpush.bf16.msra.mxu0 %v600
  %1553 = vmatpush.bf16.msra.mxu0 %v596
  %1554 = vmatpush.bf16.msra.mxu0 %v592
  %1555 = vmatpush.bf16.msra.mxu0 %v588
  %1556 = vmatpush.bf16.msra.mxu0 %v584
  %1557 = vmatpush.bf16.msra.mxu0 %v580
  %1558 = vmatpush.bf16.msra.mxu0 %v576
  %1559 = vmatpush.bf16.msra.mxu0 %v572
  %1560 = vmatmul.bf16.gmra.mxu0 %v1551
  %v1561 = vpop.f32.mrf.mxu0
  %v1562 = vadd.f32 0.0, %v1561
  %v1563 = vpop.f32.mrf.mxu0
  %1564 = vdwg.mxu0
  %1565 = vmatpush.bf16.msra.mxu0 %v601
  %1566 = vmatpush.bf16.msra.mxu0 %v597
  %1567 = vmatpush.bf16.msra.mxu0 %v593
  %1568 = vmatpush.bf16.msra.mxu0 %v589
  %1569 = vmatpush.bf16.msra.mxu0 %v585
  %1570 = vmatpush.bf16.msra.mxu0 %v581
  %1571 = vmatpush.bf16.msra.mxu0 %v577
  %1572 = vmatpush.bf16.msra.mxu0 %v573
  %1573 = vmatmul.bf16.gmra.mxu0 %v1551
  %v1574 = vpop.f32.mrf.mxu0
  %v1575 = vadd.f32 0.0, %v1574
  %v1576 = vpop.f32.mrf.mxu0
  %1577 = vdwg.mxu0
  %1578 = vmatpush.bf16.msra.mxu0 %v602
  %1579 = vmatpush.bf16.msra.mxu0 %v598
  %1580 = vmatpush.bf16.msra.mxu0 %v594
  %1581 = vmatpush.bf16.msra.mxu0 %v590
  %1582 = vmatpush.bf16.msra.mxu0 %v586
  %1583 = vmatpush.bf16.msra.mxu0 %v582
  %1584 = vmatpush.bf16.msra.mxu0 %v578
  %1585 = vmatpush.bf16.msra.mxu0 %v574
  %1586 = vmatmul.bf16.gmra.mxu0 %v1551
  %v1587 = vpop.f32.mrf.mxu0
  %v1588 = vadd.f32 0.0, %v1587
  %v1589 = vpop.f32.mrf.mxu0
  %1590 = vdwg.mxu0
  %1591 = vmatpush.bf16.msra.mxu0 %v603
  %1592 = vmatpush.bf16.msra.mxu0 %v599
  %1593 = vmatpush.bf16.msra.mxu0 %v595
  %1594 = vmatpush.bf16.msra.mxu0 %v591
  %1595 = vmatpush.bf16.msra.mxu0 %v587
  %1596 = vmatpush.bf16.msra.mxu0 %v583
  %1597 = vmatpush.bf16.msra.mxu0 %v579
  %1598 = vmatpush.bf16.msra.mxu0 %v575
  %1599 = vmatmul.bf16.gmra.mxu0 %v1551
  %v1600 = vpop.f32.mrf.mxu0
  %v1601 = vadd.f32 0.0, %v1600
  %v1602 = vpop.f32.mrf.mxu0
  %1603 = vdwg.mxu0
  %v1604 = vadd.f32 %v1547, %v1562
  %v1605 = vadd.f32 %v1548, %v1575
  %v1606 = vadd.f32 %v1549, %v1588
  %v1607 = vadd.f32 %v1550, %v1601
  %v1608 = vxor.u32 %v1604, 2147483648
  %v1609 = vmul.f32 %v1608, 1.442695
  %v1610 = vpow.pop %v1609
  %v1611 = vadd.f32 %v1610, 1.0
  %v1612 = vrcp.pop %v1611
  %v1613 = vmul.f32 %v1611, %v1612
  %v1614 = vsub.f32 1.0, %v1613
  %v1615 = vmul.f32 %v1612, %v1614
  %v1616 = vadd.f32 %v1612, %v1615
  %vm1617 = vweird.f32 %v1611
  %vm1618 = vweird.f32 %v1612
  %vm1619 = vmor %vm1617, %vm1618
  %v1620 = vsel %vm1619, %v1612, %v1616
  %v1621 = vand.u32 2147483647, %v1611
  %vm1622 = vcmp.eq.f32.partialorder %v1621, 8.507059e+37
  %v1623 = vand.u32 %v1611, 2147483648
  %v1624 = vor.u32 1.1754944e-38, %v1623
  %v1625 = vsel %vm1622, %v1624, %v1620
  %v1626 = vmul.f32 1.0, %v1625
  %v1627 = vxor.u32 %v1605, 2147483648
  %v1628 = vmul.f32 %v1627, 1.442695
  %v1629 = vpow.pop %v1628
  %v1630 = vadd.f32 %v1629, 1.0
  %v1631 = vrcp.pop %v1630
  %v1632 = vmul.f32 %v1630, %v1631
  %v1633 = vsub.f32 1.0, %v1632
  %v1634 = vmul.f32 %v1631, %v1633
  %v1635 = vadd.f32 %v1631, %v1634
  %vm1636 = vweird.f32 %v1630
  %vm1637 = vweird.f32 %v1631
  %vm1638 = vmor %vm1636, %vm1637
  %v1639 = vsel %vm1638, %v1631, %v1635
  %v1640 = vand.u32 2147483647, %v1630
  %vm1641 = vcmp.eq.f32.partialorder %v1640, 8.507059e+37
  %v1642 = vand.u32 %v1630, 2147483648
  %v1643 = vor.u32 1.1754944e-38, %v1642
  %v1644 = vsel %vm1641, %v1643, %v1639
  %v1645 = vmul.f32 1.0, %v1644
  %v1646 = vtanh.pop %v1606
  %v1647 = vxor.u32 %v1607, 2147483648
  %v1648 = vmul.f32 %v1647, 1.442695
  %v1649 = vpow.pop %v1648
  %v1650 = vadd.f32 %v1649, 1.0
  %v1651 = vrcp.pop %v1650
  %v1652 = vmul.f32 %v1650, %v1651
  %v1653 = vsub.f32 1.0, %v1652
  %v1654 = vmul.f32 %v1651, %v1653
  %v1655 = vadd.f32 %v1651, %v1654
  %vm1656 = vweird.f32 %v1650
  %vm1657 = vweird.f32 %v1651
  %vm1658 = vmor %vm1656, %vm1657
  %v1659 = vsel %vm1658, %v1651, %v1655
  %v1660 = vand.u32 2147483647, %v1650
  %vm1661 = vcmp.eq.f32.partialorder %v1660, 8.507059e+37
  %v1662 = vand.u32 %v1650, 2147483648
  %v1663 = vor.u32 1.1754944e-38, %v1662
  %v1664 = vsel %vm1661, %v1663, %v1659
  %v1665 = vmul.f32 1.0, %v1664
  %v1666 = vmul.f32 %v1645, %v1545
  %v1667 = vmul.f32 %v1626, %v1646
  %v1668 = vadd.f32 %v1666, %v1667
  %v1669 = vtanh.pop %v1668
  %v1670 = vmul.f32 %v1665, %v1669
  %1671 = vst [vmem:[#allocation5] sm:$0xff] %v1670
  %1672 = vst [vmem:[#allocation6] sm:$0xff] %v1668
  %s1673 = scalar_lea.vmem %s4, 56
  %1674 = vst [vmem:[%s1673] sm:$0xff] %v1670
  // Predicated region
  $region22: #{encoder_lstm_forward.3} parent=0 // pred_check
    %p1675 = pneg %p16
  $region23: #{encoder_lstm_forward.3} parent=0 // pred_check_branch
    %1677 = sbr.rel (%p1675) target = $region25
  $region24: #{encoder_lstm_forward.3} parent=0 // pred_region
    %v1678 = vld [vmem:[#allocation5] sm:$0xff]
    %1679 = vst [vmem:[%s5] sm:$0xff] %v1678
    %v1680 = vld [vmem:[#allocation6] sm:$0xff]
    %1681 = vst [vmem:[%s6] sm:$0xff] %v1680
  $region25: #{encoder_lstm_forward.3} parent=0 // pred_fallthru
    _
  // Predicated region
  $region26: #{encoder_lstm_forward.3} parent=0 // pred_check
    _
  $region27: #{encoder_lstm_forward.3} parent=0 // pred_check_branch
    %1683 = sbr.rel (0) target = $region29
  $region28: #{encoder_lstm_forward.3} parent=0 // pred_region
    _
  $region29: #{encoder_lstm_forward.3} parent=0 // pred_fallthru
    _
  // Predicated region
  $region30: #{encoder_lstm_forward.3} parent=0 // pred_check
    _
  $region31: #{encoder_lstm_forward.3} parent=0 // pred_check_branch
    %1685 = sbr.rel (0) target = $region33
  $region32: #{encoder_lstm_forward.3} parent=0 // pred_region
    _
  $region33: #{encoder_lstm_forward.3} parent=0 // pred_fallthru
    _
  // Predicated region
  $region34: #{encoder_lstm_forward.3} parent=0 // pred_check
    _
  $region35: #{encoder_lstm_forward.3} parent=0 // pred_check_branch
    %1687 = sbr.rel (0) target = $region37
  $region36: #{encoder_lstm_forward.3} parent=0 // pred_region
    _
  $region37: #{encoder_lstm_forward.3} parent=0 // pred_fallthru
    _
  // Predicated region
  $region38: #{encoder_lstm_forward.3} parent=0 // pred_check
    _
  $region39: #{encoder_lstm_forward.3} parent=0 // pred_check_branch
    %1689 = sbr.rel (0) target = $region41
  $region40: #{encoder_lstm_forward.3} parent=0 // pred_region
    _
  $region41: #{encoder_lstm_forward.3} parent=0 // pred_fallthru
    _
  // Predicated region
  $region42: #{encoder_lstm_forward.3} parent=0 // pred_check
    _
  $region43: #{encoder_lstm_forward.3} parent=0 // pred_check_branch
    %1691 = sbr.rel (0) target = $region45
  $region44: #{encoder_lstm_forward.3} parent=0 // pred_region
    _
  $region45: #{encoder_lstm_forward.3} parent=0 // pred_fallthru
    _
  // Predicated region
  $region46: #{encoder_lstm_forward.3} parent=0 // pred_check
    _
  $region47: #{encoder_lstm_forward.3} parent=0 // pred_check_branch
    %1693 = sbr.rel (0) target = $region49
  $region48: #{encoder_lstm_forward.3} parent=0 // pred_region
    _
  $region49: #{encoder_lstm_forward.3} parent=0 // pred_fallthru
    _
  %1694 = vsyncmov [#allocation7]
  %s1695 = vpop.sfrf %1694
  %p1696 = scmp.eq.s32.totalorder %s1695, 0
  %p1697 = pneg %p1696
  %1699 = shalt.err (%p1697)
  %s1700 = scalar_lea.sflag [#allocation7], 1
  %1701 = vsyncmov %s1700
  %s1702 = vpop.sfrf %1701
  %p1703 = scmp.eq.s32.totalorder %s1702, 0
  %p1704 = pneg %p1703
  %1706 = shalt.err (%p1704)

</llo_original>
